<compile_context>
chip_gen: v7x
topology: tpu7x:2x2x1
jax: 0.10.0
libtpu: 0.0.40
codegen_flags: <defaults>
</compile_context>

<pallas_src>
import functools

import jax
import jax.numpy as jnp
import numpy as np
from jax.experimental import pallas as pl
from jax.experimental.pallas import tpu as pltpu


# ------------------------------- Pallas kernel -------------------------------


def _residual_block_kernel(x_ref, mask_ref, w1_ref, b1_ref, w2_ref, b2_ref, *rest,
                           H, W, Cin, Cout, proj):
    """Fused residual block for one batch element (channel-major, flat spatial).

    x_ref    : (Cin, H*W)        bf16  input (batch dim squeezed, spatial flattened)
    mask_ref : (1, L)            f32   1.0 at interior pixels of the padded flat domain,
                                       0.0 at the left/right column-halo positions
    w1_ref   : (9, Cout, Cin)    bf16  conv1 per-tap weights, BN1 scale folded in
    b1_ref   : (Cout, 1)         f32   folded BN1 bias (incl. conv1 bias)
    w2_ref   : (9, Cout, Cout)   bf16  conv2 per-tap weights, BN2 scale folded in
    b2_ref   : (Cout, 1)         f32   folded BN2 bias (incl. conv2 bias)
    [proj only]
    ws_ref   : (Cout, Cin)       bf16  1x1 projection-shortcut weights, BN_s folded
    bs_ref   : (Cout, 1)         f32   folded shortcut bias
    out_ref  : (Cout, H*W)       bf16  output (lane-dense spatial minor dim)
    xp_ref   : (Cin, P)          bf16  scratch: zero-halo padded x, P = (H+2)*(W+2)
    hp_ref   : (Cout, P)         bf16  scratch: zero-halo padded conv1 output
    """
    if proj:
        ws_ref, bs_ref, out_ref, xp_ref, hp_ref = rest
    else:
        out_ref, xp_ref, hp_ref = rest
        ws_ref = bs_ref = None

    Wp = W + 2                      # padded row pitch
    P = (H + 2) * Wp                # padded flat length
    p_lo = Wp + 1                   # flat index of padded pixel (1, 1)
    L = H * Wp - 2                  # flat span covering every interior output pixel

    # ---- build the zero-halo padded input in VMEM -------------------------------
    # Only O(H + W) halo lanes are zeroed; the interior is fully overwritten each step
    # (no reliance on scratch state from previous grid steps -> megacore safe).
    zedge = jnp.zeros((Cin, W + 3), dtype=xp_ref.dtype)
    xp_ref[:, 0:W + 3] = zedge                      # top halo row + left halo of row 0
    xp_ref[:, P - (W + 3):P] = zedge                # right halo of last row + bottom row
    zgap = jnp.zeros((Cin, 2), dtype=xp_ref.dtype)
    for r in range(H):
        dst = (r + 1) * Wp + 1
        xp_ref[:, dst:dst + W] = x_ref[:, r * W:(r + 1) * W]
        if r < H - 1:                               # column halo between rows r, r+1
            xp_ref[:, dst + W:dst + W + 2] = zgap

    def conv3x3(src_ref, w_ref):
        """9 per-tap (Cout, C) @ (C, L) matmuls accumulated in f32 (no im2col)."""
        acc = None
        for kh in range(3):
            for kw in range(3):
                start = kh * Wp + kw                # contiguous lane slice per tap
                tap = src_ref[:, start:start + L]
                part = jnp.dot(w_ref[kh * 3 + kw], tap,
                               preferred_element_type=jnp.float32)
                acc = part if acc is None else acc + part
        return acc                                  # (Cout, L) f32

    # ---- conv1 (3x3, pad 1) + folded BN1 + ReLU ----------------------------------
    h = jnp.maximum(conv3x3(xp_ref, w1_ref) + b1_ref[...], 0.0) * mask_ref[...]
    zseg = jnp.zeros((Cout, W + 3), dtype=hp_ref.dtype)
    hp_ref[:, 0:p_lo] = zseg                        # top halo segment
    hp_ref[:, p_lo + L:P] = zseg                    # bottom halo segment
    hp_ref[:, p_lo:p_lo + L] = h.astype(hp_ref.dtype)

    # ---- conv2 (3x3, pad 1) + folded BN2 ------------------------------------------
    out = conv3x3(hp_ref, w2_ref) + b2_ref[...]     # (Cout, L) f32

    # ---- shortcut + residual add + ReLU -------------------------------------------
    xs = xp_ref[:, p_lo:p_lo + L]                   # x in padded pitch (halo lanes = 0)
    if proj:
        out = out + jnp.dot(ws_ref[...], xs, preferred_element_type=jnp.float32)
        out = out + bs_ref[...]
    else:
        out = out + xs.astype(jnp.float32)          # identity shortcut: plain add
    res = jnp.maximum(out, 0.0).astype(out_ref.dtype)

    # ---- extract interior pixels -> lane-dense (Cout, H*W) output -----------------
    for r in range(H):
        out_ref[:, r * W:(r + 1) * W] = res[:, r * Wp:r * Wp + W]


# ------------------------------ JAX wrappers ---------------------------------


def _prepare_params(params, cin, cout, proj):
    """Fold inference BN (+conv bias) into per-channel scale/bias, fold the scale into
    the weights, lay weights out per-tap channel-major, cast weights bf16 (biases f32)."""
    f32, bf16 = jnp.float32, jnp.bfloat16
    # conv1: OIHW (Cout,Cin,3,3) -> (kh*3+kw, Cout, Cin)
    w1 = jnp.transpose(params["w1"], (2, 3, 0, 1)).reshape(9, cout, cin)
    w1f = (w1 * params["bn1_scale"][None, :, None]).astype(bf16)
    b1 = params["bn1_bias"].reshape(cout, 1).astype(f32)
    w2 = jnp.transpose(params["w2"], (2, 3, 0, 1)).reshape(9, cout, cout)
    w2f = (w2 * params["bn2_scale"][None, :, None]).astype(bf16)
    b2 = params["bn2_bias"].reshape(cout, 1).astype(f32)
    out = {"w1f": w1f, "b1": b1, "w2f": w2f, "b2": b2}
    if proj:
        ws = params["ws"].reshape(cout, cin)
        out["wsf"] = (ws * params["bns_scale"][:, None]).astype(bf16)
        out["bs"] = params["bns_bias"].reshape(cout, 1).astype(f32)
    return out


def residual_block(x_nchw, params, *, stride=1):
    """Pallas implementation of ResidualBlock.forward (inference BN). NCHW in, NCHW out
    (bf16 output, ready for the next layer)."""
    if stride != 1:
        # TODO(synk): strided conv1 / strided projection shortcut not implemented.
        raise NotImplementedError("residual_block: only stride=1 is implemented")
    N, Cin, H, W = x_nchw.shape
    Cout = params["w1"].shape[0]
    proj = Cin != Cout            # stride == 1 here
    Wp = W + 2
    P = (H + 2) * Wp
    p_lo = Wp + 1
    L = H * Wp - 2
    kp = _prepare_params(params, Cin, Cout, proj)

    # Channel-major, spatially flat input: minor (lane/DMA) dim is H*W, not Cin.
    x = x_nchw.astype(jnp.bfloat16).reshape(N, Cin, H * W)

    # Interior mask over the padded flat span [p_lo, p_lo + L): zero at column halos.
    q = np.arange(L)
    c = (q + p_lo) % Wp
    mask = jnp.asarray(((c >= 1) & (c <= W)).astype(np.float32).reshape(1, L))

    kernel = functools.partial(_residual_block_kernel, H=H, W=W, Cin=Cin, Cout=Cout,
                               proj=proj)

    in_specs = [
        pl.BlockSpec((None, Cin, H * W), lambda n: (n, 0, 0)),
        pl.BlockSpec((1, L), lambda n: (0, 0)),
        pl.BlockSpec((9, Cout, Cin), lambda n: (0, 0, 0)),
        pl.BlockSpec((Cout, 1), lambda n: (0, 0)),
        pl.BlockSpec((9, Cout, Cout), lambda n: (0, 0, 0)),
        pl.BlockSpec((Cout, 1), lambda n: (0, 0)),
    ]
    args = [x, mask, kp["w1f"], kp["b1"], kp["w2f"], kp["b2"]]
    if proj:
        in_specs += [pl.BlockSpec((Cout, Cin), lambda n: (0, 0)),
                     pl.BlockSpec((Cout, 1), lambda n: (0, 0))]
        args += [kp["wsf"], kp["bs"]]

    out = pl.pallas_call(
        kernel,
        grid=(N,),
        in_specs=in_specs,
        out_specs=pl.BlockSpec((None, Cout, H * W), lambda n: (n, 0, 0)),
        out_shape=jax.ShapeDtypeStruct((N, Cout, H * W), jnp.bfloat16),
        scratch_shapes=[
            pltpu.VMEM((Cin, P), jnp.bfloat16),
            pltpu.VMEM((Cout, P), jnp.bfloat16),
        ],
        compiler_params=pltpu.CompilerParams(dimension_semantics=("parallel",)),
    )(*args)

    # (N, Cout, H*W) -> (N, Cout, H, W): already channel-major NCHW, free reshape.
    return out.reshape(N, Cout, H, W)


# ---------------------- deterministic parameter init -------------------------


def _folded_bn(key, cout, conv_bias, eps=1e-5):
    k1, k2, k3, k4 = jax.random.split(key, 4)
    gamma = jax.random.uniform(k1, (cout,), jnp.float32, 0.5, 1.5)
    beta = jax.random.normal(k2, (cout,), jnp.float32) * 0.1
    running_mean = jax.random.normal(k3, (cout,), jnp.float32) * 0.1
    running_var = jax.random.uniform(k4, (cout,), jnp.float32, 0.5, 1.5)
    scale = gamma / jnp.sqrt(running_var + eps)
    bias = beta - running_mean * scale + scale * conv_bias   # conv bias folded in
    return scale, bias


def init_params(key, cin, cout):
    ks = jax.random.split(key, 9)
    p = {}
    p["w1"] = jax.random.normal(ks[0], (cout, cin, 3, 3), jnp.float32) * 0.1
    b1 = jax.random.normal(ks[1], (cout,), jnp.float32) * 0.1
    p["w2"] = jax.random.normal(ks[2], (cout, cout, 3, 3), jnp.float32) * 0.1
    b2 = jax.random.normal(ks[3], (cout,), jnp.float32) * 0.1
    p["ws"] = jax.random.normal(ks[4], (cout, cin, 1, 1), jnp.float32) * 0.1
    bs = jax.random.normal(ks[5], (cout,), jnp.float32) * 0.1
    p["bn1_scale"], p["bn1_bias"] = _folded_bn(ks[6], cout, b1)
    p["bn2_scale"], p["bn2_bias"] = _folded_bn(ks[7], cout, b2)
    p["bns_scale"], p["bns_bias"] = _folded_bn(ks[8], cout, bs)
    return p


# ----------------------------- pure-JAX reference ----------------------------


def residual_block_ref(x_nchw, params, *, stride=1):
    """Reference mirroring the kernel's bf16 weight/activation quantization
    (bf16 x bf16 products are exact in f32; accumulation is f32 on both paths)."""
    N, Cin, H, W = x_nchw.shape
    Cout = params["w1"].shape[0]
    proj = (stride != 1) or (Cin != Cout)
    kp = _prepare_params(params, Cin, Cout, proj)
    f32 = jnp.float32
    x = jnp.transpose(x_nchw.astype(jnp.bfloat16).astype(f32), (0, 2, 3, 1))  # NHWC

    def conv(v, w_hwio, s, pad):
        return jax.lax.conv_general_dilated(
            v, w_hwio.astype(f32), window_strides=(s, s),
            padding=[(pad, pad), (pad, pad)],
            dimension_numbers=("NHWC", "HWIO", "NHWC"))

    w1 = jnp.transpose(kp["w1f"].reshape(3, 3, Cout, Cin), (0, 1, 3, 2))
    w2 = jnp.transpose(kp["w2f"].reshape(3, 3, Cout, Cout), (0, 1, 3, 2))
    h = jax.nn.relu(conv(x, w1, stride, 1) + kp["b1"].reshape(1, 1, 1, Cout))
    h = h.astype(jnp.bfloat16).astype(f32)          # kernel feeds conv2 with bf16 h
    o = conv(h, w2, 1, 1) + kp["b2"].reshape(1, 1, 1, Cout)
    if proj:
        ws = jnp.transpose(kp["wsf"], (1, 0)).reshape(1, 1, Cin, Cout)
        sc = conv(x, ws, stride, 0) + kp["bs"].reshape(1, 1, 1, Cout)
    else:
        sc = x
    return jnp.transpose(jax.nn.relu(o + sc), (0, 3, 1, 2))


# ---------------------------------- main --------------------------------------


def _check(x, params, stride):
    out = jax.block_until_ready(residual_block(x, params, stride=stride))
    ref = residual_block_ref(x, params, stride=stride)
    # bf16-level agreement (weights / activations / output deliberately bf16-quantized).
    np.testing.assert_allclose(np.asarray(out.astype(jnp.float32)), np.asarray(ref),
                               rtol=2e-2, atol=2e-2)


if __name__ == "__main__":
    key = jax.random.PRNGKey(0)
    k1, k2, k3, k4 = jax.random.split(key, 4)

    # Case 1: projection shortcut (Cin != Cout), stride 1. NCHW like PyTorch.
    N, Cin, Cout, H, W = 2, 4, 8, 16, 16
    x = jax.random.normal(k1, (N, Cin, H, W), jnp.float32)
    params = init_params(k2, Cin, Cout)
    _check(x, params, stride=1)

    # Case 2: identity shortcut (Cin == Cout, stride == 1): no eye-matmul, no ws/bs.
    x2 = jax.random.normal(k3, (N, Cout, H, W), jnp.float32)
    params2 = init_params(k4, Cout, Cout)
    _check(x2, params2, stride=1)

    print("KERNEL_OK")
</pallas_src>

<mosaic_0001>
module attributes {stable_mosaic.version = 11 : i64} {
  func.func @_residual_block_kernel(%arg0: i32, %arg1: memref<1x4x256xbf16, #tpu.memory_space<vmem>>, %arg2: memref<1x286xf32, #tpu.memory_space<vmem>>, %arg3: memref<9x8x4xbf16, #tpu.memory_space<vmem>>, %arg4: memref<8x1xf32, #tpu.memory_space<vmem>>, %arg5: memref<9x8x8xbf16, #tpu.memory_space<vmem>>, %arg6: memref<8x1xf32, #tpu.memory_space<vmem>>, %arg7: memref<8x4xbf16, #tpu.memory_space<vmem>>, %arg8: memref<8x1xf32, #tpu.memory_space<vmem>>, %arg9: memref<1x8x256xbf16, #tpu.memory_space<vmem>>, %arg10: memref<4x324xbf16, #tpu.memory_space<vmem>>, %arg11: memref<8x324xbf16, #tpu.memory_space<vmem>>) attributes {dimension_semantics = [#tpu.dimension_semantics<parallel>], iteration_bounds = array<i64: 2>, scalar_prefetch = 0 : i64, scratch_operands = 2 : i64, tpu.core_type = #tpu.core_type<tc>, window_params = [{transform_indices = @transform_0, window_bounds = array<i64: 1, 4, 256>}, {pipeline_mode = #tpu.pipeline_mode<synchronous>, transform_indices = @transform_1, window_bounds = array<i64: 1, 286>}, {pipeline_mode = #tpu.pipeline_mode<synchronous>, transform_indices = @transform_2, window_bounds = array<i64: 9, 8, 4>}, {pipeline_mode = #tpu.pipeline_mode<synchronous>, transform_indices = @transform_3, window_bounds = array<i64: 8, 1>}, {pipeline_mode = #tpu.pipeline_mode<synchronous>, transform_indices = @transform_4, window_bounds = array<i64: 9, 8, 8>}, {pipeline_mode = #tpu.pipeline_mode<synchronous>, transform_indices = @transform_5, window_bounds = array<i64: 8, 1>}, {pipeline_mode = #tpu.pipeline_mode<synchronous>, transform_indices = @transform_6, window_bounds = array<i64: 8, 4>}, {pipeline_mode = #tpu.pipeline_mode<synchronous>, transform_indices = @transform_7, window_bounds = array<i64: 8, 1>}, {transform_indices = @transform_8, window_bounds = array<i64: 1, 8, 256>}]} {
    %cst = arith.constant 0.000000e+00 : bf16
    %0 = vector.broadcast %cst : bf16 to vector<4x19xbf16>
    %c0 = arith.constant 0 : index
    %c0_0 = arith.constant 0 : index
    %1 = vector.load %arg10[%c0, %c0_0] : memref<4x324xbf16, #tpu.memory_space<vmem>>, vector<4x19xbf16>
    tpu.vector_store %arg10[%c0, %c0_0], %0 {strides = array<i32>} : memref<4x324xbf16, #tpu.memory_space<vmem>>, vector<4x19xbf16>,
    %c0_1 = arith.constant 0 : index
    %c305 = arith.constant 305 : index
    %2 = vector.load %arg10[%c0_1, %c305] : memref<4x324xbf16, #tpu.memory_space<vmem>>, vector<4x19xbf16>
    tpu.vector_store %arg10[%c0_1, %c305], %0 {strides = array<i32>} : memref<4x324xbf16, #tpu.memory_space<vmem>>, vector<4x19xbf16>,
    %cst_2 = arith.constant 0.000000e+00 : bf16
    %3 = vector.broadcast %cst_2 : bf16 to vector<4x2xbf16>
    %c0_3 = arith.constant 0 : index
    %c0_4 = arith.constant 0 : index
    %c0_5 = arith.constant 0 : index
    %4 = vector.load %arg1[%c0_3, %c0_4, %c0_5] : memref<1x4x256xbf16, #tpu.memory_space<vmem>>, vector<1x4x16xbf16>
    %5 = vector.shape_cast %4 : vector<1x4x16xbf16> to vector<4x16xbf16>
    %c0_6 = arith.constant 0 : index
    %c19 = arith.constant 19 : index
    %6 = vector.load %arg10[%c0_6, %c19] : memref<4x324xbf16, #tpu.memory_space<vmem>>, vector<4x16xbf16>
    tpu.vector_store %arg10[%c0_6, %c19], %5 {strides = array<i32>} : memref<4x324xbf16, #tpu.memory_space<vmem>>, vector<4x16xbf16>,
    %c0_7 = arith.constant 0 : index
    %c35 = arith.constant 35 : index
    %7 = vector.load %arg10[%c0_7, %c35] : memref<4x324xbf16, #tpu.memory_space<vmem>>, vector<4x2xbf16>
    tpu.vector_store %arg10[%c0_7, %c35], %3 {strides = array<i32>} : memref<4x324xbf16, #tpu.memory_space<vmem>>, vector<4x2xbf16>,
    %c0_8 = arith.constant 0 : index
    %c0_9 = arith.constant 0 : index
    %c16 = arith.constant 16 : index
    %8 = vector.load %arg1[%c0_8, %c0_9, %c16] : memref<1x4x256xbf16, #tpu.memory_space<vmem>>, vector<1x4x16xbf16>
    %9 = vector.shape_cast %8 : vector<1x4x16xbf16> to vector<4x16xbf16>
    %c0_10 = arith.constant 0 : index
    %c37 = arith.constant 37 : index
    %10 = vector.load %arg10[%c0_10, %c37] : memref<4x324xbf16, #tpu.memory_space<vmem>>, vector<4x16xbf16>
    tpu.vector_store %arg10[%c0_10, %c37], %9 {strides = array<i32>} : memref<4x324xbf16, #tpu.memory_space<vmem>>, vector<4x16xbf16>,
    %c0_11 = arith.constant 0 : index
    %c53 = arith.constant 53 : index
    %11 = vector.load %arg10[%c0_11, %c53] : memref<4x324xbf16, #tpu.memory_space<vmem>>, vector<4x2xbf16>
    tpu.vector_store %arg10[%c0_11, %c53], %3 {strides = array<i32>} : memref<4x324xbf16, #tpu.memory_space<vmem>>, vector<4x2xbf16>,
    %c0_12 = arith.constant 0 : index
    %c0_13 = arith.constant 0 : index
    %c32 = arith.constant 32 : index
    %12 = vector.load %arg1[%c0_12, %c0_13, %c32] : memref<1x4x256xbf16, #tpu.memory_space<vmem>>, vector<1x4x16xbf16>
    %13 = vector.shape_cast %12 : vector<1x4x16xbf16> to vector<4x16xbf16>
    %c0_14 = arith.constant 0 : index
    %c55 = arith.constant 55 : index
    %14 = vector.load %arg10[%c0_14, %c55] : memref<4x324xbf16, #tpu.memory_space<vmem>>, vector<4x16xbf16>
    tpu.vector_store %arg10[%c0_14, %c55], %13 {strides = array<i32>} : memref<4x324xbf16, #tpu.memory_space<vmem>>, vector<4x16xbf16>,
    %c0_15 = arith.constant 0 : index
    %c71 = arith.constant 71 : index
    %15 = vector.load %arg10[%c0_15, %c71] : memref<4x324xbf16, #tpu.memory_space<vmem>>, vector<4x2xbf16>
    tpu.vector_store %arg10[%c0_15, %c71], %3 {strides = array<i32>} : memref<4x324xbf16, #tpu.memory_space<vmem>>, vector<4x2xbf16>,
    %c0_16 = arith.constant 0 : index
    %c0_17 = arith.constant 0 : index
    %c48 = arith.constant 48 : index
    %16 = vector.load %arg1[%c0_16, %c0_17, %c48] : memref<1x4x256xbf16, #tpu.memory_space<vmem>>, vector<1x4x16xbf16>
    %17 = vector.shape_cast %16 : vector<1x4x16xbf16> to vector<4x16xbf16>
    %c0_18 = arith.constant 0 : index
    %c73 = arith.constant 73 : index
    %18 = vector.load %arg10[%c0_18, %c73] : memref<4x324xbf16, #tpu.memory_space<vmem>>, vector<4x16xbf16>
    tpu.vector_store %arg10[%c0_18, %c73], %17 {strides = array<i32>} : memref<4x324xbf16, #tpu.memory_space<vmem>>, vector<4x16xbf16>,
    %c0_19 = arith.constant 0 : index
    %c89 = arith.constant 89 : index
    %19 = vector.load %arg10[%c0_19, %c89] : memref<4x324xbf16, #tpu.memory_space<vmem>>, vector<4x2xbf16>
    tpu.vector_store %arg10[%c0_19, %c89], %3 {strides = array<i32>} : memref<4x324xbf16, #tpu.memory_space<vmem>>, vector<4x2xbf16>,
    %c0_20 = arith.constant 0 : index
    %c0_21 = arith.constant 0 : index
    %c64 = arith.constant 64 : index
    %20 = vector.load %arg1[%c0_20, %c0_21, %c64] : memref<1x4x256xbf16, #tpu.memory_space<vmem>>, vector<1x4x16xbf16>
    %21 = vector.shape_cast %20 : vector<1x4x16xbf16> to vector<4x16xbf16>
    %c0_22 = arith.constant 0 : index
    %c91 = arith.constant 91 : index
    %22 = vector.load %arg10[%c0_22, %c91] : memref<4x324xbf16, #tpu.memory_space<vmem>>, vector<4x16xbf16>
    tpu.vector_store %arg10[%c0_22, %c91], %21 {strides = array<i32>} : memref<4x324xbf16, #tpu.memory_space<vmem>>, vector<4x16xbf16>,
    %c0_23 = arith.constant 0 : index
    %c107 = arith.constant 107 : index
    %23 = vector.load %arg10[%c0_23, %c107] : memref<4x324xbf16, #tpu.memory_space<vmem>>, vector<4x2xbf16>
    tpu.vector_store %arg10[%c0_23, %c107], %3 {strides = array<i32>} : memref<4x324xbf16, #tpu.memory_space<vmem>>, vector<4x2xbf16>,
    %c0_24 = arith.constant 0 : index
    %c0_25 = arith.constant 0 : index
    %c80 = arith.constant 80 : index
    %24 = vector.load %arg1[%c0_24, %c0_25, %c80] : memref<1x4x256xbf16, #tpu.memory_space<vmem>>, vector<1x4x16xbf16>
    %25 = vector.shape_cast %24 : vector<1x4x16xbf16> to vector<4x16xbf16>
    %c0_26 = arith.constant 0 : index
    %c109 = arith.constant 109 : index
    %26 = vector.load %arg10[%c0_26, %c109] : memref<4x324xbf16, #tpu.memory_space<vmem>>, vector<4x16xbf16>
    tpu.vector_store %arg10[%c0_26, %c109], %25 {strides = array<i32>} : memref<4x324xbf16, #tpu.memory_space<vmem>>, vector<4x16xbf16>,
    %c0_27 = arith.constant 0 : index
    %c125 = arith.constant 125 : index
    %27 = vector.load %arg10[%c0_27, %c125] : memref<4x324xbf16, #tpu.memory_space<vmem>>, vector<4x2xbf16>
    tpu.vector_store %arg10[%c0_27, %c125], %3 {strides = array<i32>} : memref<4x324xbf16, #tpu.memory_space<vmem>>, vector<4x2xbf16>,
    %c0_28 = arith.constant 0 : index
    %c0_29 = arith.constant 0 : index
    %c96 = arith.constant 96 : index
    %28 = vector.load %arg1[%c0_28, %c0_29, %c96] : memref<1x4x256xbf16, #tpu.memory_space<vmem>>, vector<1x4x16xbf16>
    %29 = vector.shape_cast %28 : vector<1x4x16xbf16> to vector<4x16xbf16>
    %c0_30 = arith.constant 0 : index
    %c127 = arith.constant 127 : index
    %30 = vector.load %arg10[%c0_30, %c127] : memref<4x324xbf16, #tpu.memory_space<vmem>>, vector<4x16xbf16>
    tpu.vector_store %arg10[%c0_30, %c127], %29 {strides = array<i32>} : memref<4x324xbf16, #tpu.memory_space<vmem>>, vector<4x16xbf16>,
    %c0_31 = arith.constant 0 : index
    %c143 = arith.constant 143 : index
    %31 = vector.load %arg10[%c0_31, %c143] : memref<4x324xbf16, #tpu.memory_space<vmem>>, vector<4x2xbf16>
    tpu.vector_store %arg10[%c0_31, %c143], %3 {strides = array<i32>} : memref<4x324xbf16, #tpu.memory_space<vmem>>, vector<4x2xbf16>,
    %c0_32 = arith.constant 0 : index
    %c0_33 = arith.constant 0 : index
    %c112 = arith.constant 112 : index
    %32 = vector.load %arg1[%c0_32, %c0_33, %c112] : memref<1x4x256xbf16, #tpu.memory_space<vmem>>, vector<1x4x16xbf16>
    %33 = vector.shape_cast %32 : vector<1x4x16xbf16> to vector<4x16xbf16>
    %c0_34 = arith.constant 0 : index
    %c145 = arith.constant 145 : index
    %34 = vector.load %arg10[%c0_34, %c145] : memref<4x324xbf16, #tpu.memory_space<vmem>>, vector<4x16xbf16>
    tpu.vector_store %arg10[%c0_34, %c145], %33 {strides = array<i32>} : memref<4x324xbf16, #tpu.memory_space<vmem>>, vector<4x16xbf16>,
    %c0_35 = arith.constant 0 : index
    %c161 = arith.constant 161 : index
    %35 = vector.load %arg10[%c0_35, %c161] : memref<4x324xbf16, #tpu.memory_space<vmem>>, vector<4x2xbf16>
    tpu.vector_store %arg10[%c0_35, %c161], %3 {strides = array<i32>} : memref<4x324xbf16, #tpu.memory_space<vmem>>, vector<4x2xbf16>,
    %c0_36 = arith.constant 0 : index
    %c0_37 = arith.constant 0 : index
    %c128 = arith.constant 128 : index
    %36 = vector.load %arg1[%c0_36, %c0_37, %c128] : memref<1x4x256xbf16, #tpu.memory_space<vmem>>, vector<1x4x16xbf16>
    %37 = vector.shape_cast %36 : vector<1x4x16xbf16> to vector<4x16xbf16>
    %c0_38 = arith.constant 0 : index
    %c163 = arith.constant 163 : index
    %38 = vector.load %arg10[%c0_38, %c163] : memref<4x324xbf16, #tpu.memory_space<vmem>>, vector<4x16xbf16>
    tpu.vector_store %arg10[%c0_38, %c163], %37 {strides = array<i32>} : memref<4x324xbf16, #tpu.memory_space<vmem>>, vector<4x16xbf16>,
    %c0_39 = arith.constant 0 : index
    %c179 = arith.constant 179 : index
    %39 = vector.load %arg10[%c0_39, %c179] : memref<4x324xbf16, #tpu.memory_space<vmem>>, vector<4x2xbf16>
    tpu.vector_store %arg10[%c0_39, %c179], %3 {strides = array<i32>} : memref<4x324xbf16, #tpu.memory_space<vmem>>, vector<4x2xbf16>,
    %c0_40 = arith.constant 0 : index
    %c0_41 = arith.constant 0 : index
    %c144 = arith.constant 144 : index
    %40 = vector.load %arg1[%c0_40, %c0_41, %c144] : memref<1x4x256xbf16, #tpu.memory_space<vmem>>, vector<1x4x16xbf16>
    %41 = vector.shape_cast %40 : vector<1x4x16xbf16> to vector<4x16xbf16>
    %c0_42 = arith.constant 0 : index
    %c181 = arith.constant 181 : index
    %42 = vector.load %arg10[%c0_42, %c181] : memref<4x324xbf16, #tpu.memory_space<vmem>>, vector<4x16xbf16>
    tpu.vector_store %arg10[%c0_42, %c181], %41 {strides = array<i32>} : memref<4x324xbf16, #tpu.memory_space<vmem>>, vector<4x16xbf16>,
    %c0_43 = arith.constant 0 : index
    %c197 = arith.constant 197 : index
    %43 = vector.load %arg10[%c0_43, %c197] : memref<4x324xbf16, #tpu.memory_space<vmem>>, vector<4x2xbf16>
    tpu.vector_store %arg10[%c0_43, %c197], %3 {strides = array<i32>} : memref<4x324xbf16, #tpu.memory_space<vmem>>, vector<4x2xbf16>,
    %c0_44 = arith.constant 0 : index
    %c0_45 = arith.constant 0 : index
    %c160 = arith.constant 160 : index
    %44 = vector.load %arg1[%c0_44, %c0_45, %c160] : memref<1x4x256xbf16, #tpu.memory_space<vmem>>, vector<1x4x16xbf16>
    %45 = vector.shape_cast %44 : vector<1x4x16xbf16> to vector<4x16xbf16>
    %c0_46 = arith.constant 0 : index
    %c199 = arith.constant 199 : index
    %46 = vector.load %arg10[%c0_46, %c199] : memref<4x324xbf16, #tpu.memory_space<vmem>>, vector<4x16xbf16>
    tpu.vector_store %arg10[%c0_46, %c199], %45 {strides = array<i32>} : memref<4x324xbf16, #tpu.memory_space<vmem>>, vector<4x16xbf16>,
    %c0_47 = arith.constant 0 : index
    %c215 = arith.constant 215 : index
    %47 = vector.load %arg10[%c0_47, %c215] : memref<4x324xbf16, #tpu.memory_space<vmem>>, vector<4x2xbf16>
    tpu.vector_store %arg10[%c0_47, %c215], %3 {strides = array<i32>} : memref<4x324xbf16, #tpu.memory_space<vmem>>, vector<4x2xbf16>,
    %c0_48 = arith.constant 0 : index
    %c0_49 = arith.constant 0 : index
    %c176 = arith.constant 176 : index
    %48 = vector.load %arg1[%c0_48, %c0_49, %c176] : memref<1x4x256xbf16, #tpu.memory_space<vmem>>, vector<1x4x16xbf16>
    %49 = vector.shape_cast %48 : vector<1x4x16xbf16> to vector<4x16xbf16>
    %c0_50 = arith.constant 0 : index
    %c217 = arith.constant 217 : index
    %50 = vector.load %arg10[%c0_50, %c217] : memref<4x324xbf16, #tpu.memory_space<vmem>>, vector<4x16xbf16>
    tpu.vector_store %arg10[%c0_50, %c217], %49 {strides = array<i32>} : memref<4x324xbf16, #tpu.memory_space<vmem>>, vector<4x16xbf16>,
    %c0_51 = arith.constant 0 : index
    %c233 = arith.constant 233 : index
    %51 = vector.load %arg10[%c0_51, %c233] : memref<4x324xbf16, #tpu.memory_space<vmem>>, vector<4x2xbf16>
    tpu.vector_store %arg10[%c0_51, %c233], %3 {strides = array<i32>} : memref<4x324xbf16, #tpu.memory_space<vmem>>, vector<4x2xbf16>,
    %c0_52 = arith.constant 0 : index
    %c0_53 = arith.constant 0 : index
    %c192 = arith.constant 192 : index
    %52 = vector.load %arg1[%c0_52, %c0_53, %c192] : memref<1x4x256xbf16, #tpu.memory_space<vmem>>, vector<1x4x16xbf16>
    %53 = vector.shape_cast %52 : vector<1x4x16xbf16> to vector<4x16xbf16>
    %c0_54 = arith.constant 0 : index
    %c235 = arith.constant 235 : index
    %54 = vector.load %arg10[%c0_54, %c235] : memref<4x324xbf16, #tpu.memory_space<vmem>>, vector<4x16xbf16>
    tpu.vector_store %arg10[%c0_54, %c235], %53 {strides = array<i32>} : memref<4x324xbf16, #tpu.memory_space<vmem>>, vector<4x16xbf16>,
    %c0_55 = arith.constant 0 : index
    %c251 = arith.constant 251 : index
    %55 = vector.load %arg10[%c0_55, %c251] : memref<4x324xbf16, #tpu.memory_space<vmem>>, vector<4x2xbf16>
    tpu.vector_store %arg10[%c0_55, %c251], %3 {strides = array<i32>} : memref<4x324xbf16, #tpu.memory_space<vmem>>, vector<4x2xbf16>,
    %c0_56 = arith.constant 0 : index
    %c0_57 = arith.constant 0 : index
    %c208 = arith.constant 208 : index
    %56 = vector.load %arg1[%c0_56, %c0_57, %c208] : memref<1x4x256xbf16, #tpu.memory_space<vmem>>, vector<1x4x16xbf16>
    %57 = vector.shape_cast %56 : vector<1x4x16xbf16> to vector<4x16xbf16>
    %c0_58 = arith.constant 0 : index
    %c253 = arith.constant 253 : index
    %58 = vector.load %arg10[%c0_58, %c253] : memref<4x324xbf16, #tpu.memory_space<vmem>>, vector<4x16xbf16>
    tpu.vector_store %arg10[%c0_58, %c253], %57 {strides = array<i32>} : memref<4x324xbf16, #tpu.memory_space<vmem>>, vector<4x16xbf16>,
    %c0_59 = arith.constant 0 : index
    %c269 = arith.constant 269 : index
    %59 = vector.load %arg10[%c0_59, %c269] : memref<4x324xbf16, #tpu.memory_space<vmem>>, vector<4x2xbf16>
    tpu.vector_store %arg10[%c0_59, %c269], %3 {strides = array<i32>} : memref<4x324xbf16, #tpu.memory_space<vmem>>, vector<4x2xbf16>,
    %c0_60 = arith.constant 0 : index
    %c0_61 = arith.constant 0 : index
    %c224 = arith.constant 224 : index
    %60 = vector.load %arg1[%c0_60, %c0_61, %c224] : memref<1x4x256xbf16, #tpu.memory_space<vmem>>, vector<1x4x16xbf16>
    %61 = vector.shape_cast %60 : vector<1x4x16xbf16> to vector<4x16xbf16>
    %c0_62 = arith.constant 0 : index
    %c271 = arith.constant 271 : index
    %62 = vector.load %arg10[%c0_62, %c271] : memref<4x324xbf16, #tpu.memory_space<vmem>>, vector<4x16xbf16>
    tpu.vector_store %arg10[%c0_62, %c271], %61 {strides = array<i32>} : memref<4x324xbf16, #tpu.memory_space<vmem>>, vector<4x16xbf16>,
    %c0_63 = arith.constant 0 : index
    %c287 = arith.constant 287 : index
    %63 = vector.load %arg10[%c0_63, %c287] : memref<4x324xbf16, #tpu.memory_space<vmem>>, vector<4x2xbf16>
    tpu.vector_store %arg10[%c0_63, %c287], %3 {strides = array<i32>} : memref<4x324xbf16, #tpu.memory_space<vmem>>, vector<4x2xbf16>,
    %c0_64 = arith.constant 0 : index
    %c0_65 = arith.constant 0 : index
    %c240 = arith.constant 240 : index
    %64 = vector.load %arg1[%c0_64, %c0_65, %c240] : memref<1x4x256xbf16, #tpu.memory_space<vmem>>, vector<1x4x16xbf16>
    %65 = vector.shape_cast %64 : vector<1x4x16xbf16> to vector<4x16xbf16>
    %c0_66 = arith.constant 0 : index
    %c289 = arith.constant 289 : index
    %66 = vector.load %arg10[%c0_66, %c289] : memref<4x324xbf16, #tpu.memory_space<vmem>>, vector<4x16xbf16>
    tpu.vector_store %arg10[%c0_66, %c289], %65 {strides = array<i32>} : memref<4x324xbf16, #tpu.memory_space<vmem>>, vector<4x16xbf16>,
    %c0_67 = arith.constant 0 : index
    %c0_68 = arith.constant 0 : index
    %67 = vector.load %arg10[%c0_67, %c0_68] : memref<4x324xbf16, #tpu.memory_space<vmem>>, vector<4x286xbf16>
    %c0_69 = arith.constant 0 : index
    %c0_70 = arith.constant 0 : index
    %c0_71 = arith.constant 0 : index
    %68 = vector.load %arg3[%c0_69, %c0_70, %c0_71] : memref<9x8x4xbf16, #tpu.memory_space<vmem>>, vector<1x8x4xbf16>
    %69 = vector.shape_cast %68 : vector<1x8x4xbf16> to vector<8x4xbf16>
    %cst_72 = arith.constant dense<0.000000e+00> : vector<8x286xf32>
    %70 = tpu.matmul %69, %67, %cst_72 {dimension_numbers = #tpu.dot_dimension_numbers<[1], [0], [0], [1], [0, 0, 1, 1], [], []>} : vector<8x4xbf16>, vector<4x286xbf16>, vector<8x286xf32> -> vector<8x286xf32>
    %c0_73 = arith.constant 0 : index
    %c1 = arith.constant 1 : index
    %71 = vector.load %arg10[%c0_73, %c1] : memref<4x324xbf16, #tpu.memory_space<vmem>>, vector<4x286xbf16>
    %c1_74 = arith.constant 1 : index
    %c0_75 = arith.constant 0 : index
    %c0_76 = arith.constant 0 : index
    %72 = vector.load %arg3[%c1_74, %c0_75, %c0_76] : memref<9x8x4xbf16, #tpu.memory_space<vmem>>, vector<1x8x4xbf16>
    %73 = vector.shape_cast %72 : vector<1x8x4xbf16> to vector<8x4xbf16>
    %cst_77 = arith.constant dense<0.000000e+00> : vector<8x286xf32>
    %74 = tpu.matmul %73, %71, %cst_77 {dimension_numbers = #tpu.dot_dimension_numbers<[1], [0], [0], [1], [0, 0, 1, 1], [], []>} : vector<8x4xbf16>, vector<4x286xbf16>, vector<8x286xf32> -> vector<8x286xf32>
    %75 = arith.addf %70, %74 : vector<8x286xf32>
    %c0_78 = arith.constant 0 : index
    %c2 = arith.constant 2 : index
    %76 = vector.load %arg10[%c0_78, %c2] : memref<4x324xbf16, #tpu.memory_space<vmem>>, vector<4x286xbf16>
    %c2_79 = arith.constant 2 : index
    %c0_80 = arith.constant 0 : index
    %c0_81 = arith.constant 0 : index
    %77 = vector.load %arg3[%c2_79, %c0_80, %c0_81] : memref<9x8x4xbf16, #tpu.memory_space<vmem>>, vector<1x8x4xbf16>
    %78 = vector.shape_cast %77 : vector<1x8x4xbf16> to vector<8x4xbf16>
    %cst_82 = arith.constant dense<0.000000e+00> : vector<8x286xf32>
    %79 = tpu.matmul %78, %76, %cst_82 {dimension_numbers = #tpu.dot_dimension_numbers<[1], [0], [0], [1], [0, 0, 1, 1], [], []>} : vector<8x4xbf16>, vector<4x286xbf16>, vector<8x286xf32> -> vector<8x286xf32>
    %80 = arith.addf %75, %79 : vector<8x286xf32>
    %c0_83 = arith.constant 0 : index
    %c18 = arith.constant 18 : index
    %81 = vector.load %arg10[%c0_83, %c18] : memref<4x324xbf16, #tpu.memory_space<vmem>>, vector<4x286xbf16>
    %c3 = arith.constant 3 : index
    %c0_84 = arith.constant 0 : index
    %c0_85 = arith.constant 0 : index
    %82 = vector.load %arg3[%c3, %c0_84, %c0_85] : memref<9x8x4xbf16, #tpu.memory_space<vmem>>, vector<1x8x4xbf16>
    %83 = vector.shape_cast %82 : vector<1x8x4xbf16> to vector<8x4xbf16>
    %cst_86 = arith.constant dense<0.000000e+00> : vector<8x286xf32>
    %84 = tpu.matmul %83, %81, %cst_86 {dimension_numbers = #tpu.dot_dimension_numbers<[1], [0], [0], [1], [0, 0, 1, 1], [], []>} : vector<8x4xbf16>, vector<4x286xbf16>, vector<8x286xf32> -> vector<8x286xf32>
    %85 = arith.addf %80, %84 : vector<8x286xf32>
    %c0_87 = arith.constant 0 : index
    %c19_88 = arith.constant 19 : index
    %86 = vector.load %arg10[%c0_87, %c19_88] : memref<4x324xbf16, #tpu.memory_space<vmem>>, vector<4x286xbf16>
    %c4 = arith.constant 4 : index
    %c0_89 = arith.constant 0 : index
    %c0_90 = arith.constant 0 : index
    %87 = vector.load %arg3[%c4, %c0_89, %c0_90] : memref<9x8x4xbf16, #tpu.memory_space<vmem>>, vector<1x8x4xbf16>
    %88 = vector.shape_cast %87 : vector<1x8x4xbf16> to vector<8x4xbf16>
    %cst_91 = arith.constant dense<0.000000e+00> : vector<8x286xf32>
    %89 = tpu.matmul %88, %86, %cst_91 {dimension_numbers = #tpu.dot_dimension_numbers<[1], [0], [0], [1], [0, 0, 1, 1], [], []>} : vector<8x4xbf16>, vector<4x286xbf16>, vector<8x286xf32> -> vector<8x286xf32>
    %90 = arith.addf %85, %89 : vector<8x286xf32>
    %c0_92 = arith.constant 0 : index
    %c20 = arith.constant 20 : index
    %91 = vector.load %arg10[%c0_92, %c20] : memref<4x324xbf16, #tpu.memory_space<vmem>>, vector<4x286xbf16>
    %c5 = arith.constant 5 : index
    %c0_93 = arith.constant 0 : index
    %c0_94 = arith.constant 0 : index
    %92 = vector.load %arg3[%c5, %c0_93, %c0_94] : memref<9x8x4xbf16, #tpu.memory_space<vmem>>, vector<1x8x4xbf16>
    %93 = vector.shape_cast %92 : vector<1x8x4xbf16> to vector<8x4xbf16>
    %cst_95 = arith.constant dense<0.000000e+00> : vector<8x286xf32>
    %94 = tpu.matmul %93, %91, %cst_95 {dimension_numbers = #tpu.dot_dimension_numbers<[1], [0], [0], [1], [0, 0, 1, 1], [], []>} : vector<8x4xbf16>, vector<4x286xbf16>, vector<8x286xf32> -> vector<8x286xf32>
    %95 = arith.addf %90, %94 : vector<8x286xf32>
    %c0_96 = arith.constant 0 : index
    %c36 = arith.constant 36 : index
    %96 = vector.load %arg10[%c0_96, %c36] : memref<4x324xbf16, #tpu.memory_space<vmem>>, vector<4x286xbf16>
    %c6 = arith.constant 6 : index
    %c0_97 = arith.constant 0 : index
    %c0_98 = arith.constant 0 : index
    %97 = vector.load %arg3[%c6, %c0_97, %c0_98] : memref<9x8x4xbf16, #tpu.memory_space<vmem>>, vector<1x8x4xbf16>
    %98 = vector.shape_cast %97 : vector<1x8x4xbf16> to vector<8x4xbf16>
    %cst_99 = arith.constant dense<0.000000e+00> : vector<8x286xf32>
    %99 = tpu.matmul %98, %96, %cst_99 {dimension_numbers = #tpu.dot_dimension_numbers<[1], [0], [0], [1], [0, 0, 1, 1], [], []>} : vector<8x4xbf16>, vector<4x286xbf16>, vector<8x286xf32> -> vector<8x286xf32>
    %100 = arith.addf %95, %99 : vector<8x286xf32>
    %c0_100 = arith.constant 0 : index
    %c37_101 = arith.constant 37 : index
    %101 = vector.load %arg10[%c0_100, %c37_101] : memref<4x324xbf16, #tpu.memory_space<vmem>>, vector<4x286xbf16>
    %c7 = arith.constant 7 : index
    %c0_102 = arith.constant 0 : index
    %c0_103 = arith.constant 0 : index
    %102 = vector.load %arg3[%c7, %c0_102, %c0_103] : memref<9x8x4xbf16, #tpu.memory_space<vmem>>, vector<1x8x4xbf16>
    %103 = vector.shape_cast %102 : vector<1x8x4xbf16> to vector<8x4xbf16>
    %cst_104 = arith.constant dense<0.000000e+00> : vector<8x286xf32>
    %104 = tpu.matmul %103, %101, %cst_104 {dimension_numbers = #tpu.dot_dimension_numbers<[1], [0], [0], [1], [0, 0, 1, 1], [], []>} : vector<8x4xbf16>, vector<4x286xbf16>, vector<8x286xf32> -> vector<8x286xf32>
    %105 = arith.addf %100, %104 : vector<8x286xf32>
    %c0_105 = arith.constant 0 : index
    %c38 = arith.constant 38 : index
    %106 = vector.load %arg10[%c0_105, %c38] : memref<4x324xbf16, #tpu.memory_space<vmem>>, vector<4x286xbf16>
    %c8 = arith.constant 8 : index
    %c0_106 = arith.constant 0 : index
    %c0_107 = arith.constant 0 : index
    %107 = vector.load %arg3[%c8, %c0_106, %c0_107] : memref<9x8x4xbf16, #tpu.memory_space<vmem>>, vector<1x8x4xbf16>
    %108 = vector.shape_cast %107 : vector<1x8x4xbf16> to vector<8x4xbf16>
    %cst_108 = arith.constant dense<0.000000e+00> : vector<8x286xf32>
    %109 = tpu.matmul %108, %106, %cst_108 {dimension_numbers = #tpu.dot_dimension_numbers<[1], [0], [0], [1], [0, 0, 1, 1], [], []>} : vector<8x4xbf16>, vector<4x286xbf16>, vector<8x286xf32> -> vector<8x286xf32>
    %110 = arith.addf %105, %109 : vector<8x286xf32>
    %c0_109 = arith.constant 0 : index
    %c0_110 = arith.constant 0 : index
    %111 = vector.load %arg4[%c0_109, %c0_110] : memref<8x1xf32, #tpu.memory_space<vmem>>, vector<8x1xf32>
    %112 = vector.broadcast %111 : vector<8x1xf32> to vector<8x286xf32>
    %113 = arith.addf %110, %112 : vector<8x286xf32>
    %cst_111 = arith.constant 0.000000e+00 : f32
    %114 = vector.broadcast %cst_111 : f32 to vector<8x286xf32>
    %115 = arith.maximumf %113, %114 : vector<8x286xf32>
    %c0_112 = arith.constant 0 : index
    %c0_113 = arith.constant 0 : index
    %116 = vector.load %arg2[%c0_112, %c0_113] : memref<1x286xf32, #tpu.memory_space<vmem>>, vector<1x286xf32>
    %117 = vector.broadcast %116 : vector<1x286xf32> to vector<8x286xf32>
    %118 = arith.mulf %115, %117 : vector<8x286xf32>
    %cst_114 = arith.constant 0.000000e+00 : bf16
    %119 = vector.broadcast %cst_114 : bf16 to vector<8x19xbf16>
    %c0_115 = arith.constant 0 : index
    %c0_116 = arith.constant 0 : index
    %120 = vector.load %arg11[%c0_115, %c0_116] : memref<8x324xbf16, #tpu.memory_space<vmem>>, vector<8x19xbf16>
    tpu.vector_store %arg11[%c0_115, %c0_116], %119 {strides = array<i32>} : memref<8x324xbf16, #tpu.memory_space<vmem>>, vector<8x19xbf16>,
    %c0_117 = arith.constant 0 : index
    %c305_118 = arith.constant 305 : index
    %121 = vector.load %arg11[%c0_117, %c305_118] : memref<8x324xbf16, #tpu.memory_space<vmem>>, vector<8x19xbf16>
    tpu.vector_store %arg11[%c0_117, %c305_118], %119 {strides = array<i32>} : memref<8x324xbf16, #tpu.memory_space<vmem>>, vector<8x19xbf16>,
    %122 = arith.truncf %118 : vector<8x286xf32> to vector<8x286xbf16>
    %c0_119 = arith.constant 0 : index
    %c19_120 = arith.constant 19 : index
    %123 = vector.load %arg11[%c0_119, %c19_120] : memref<8x324xbf16, #tpu.memory_space<vmem>>, vector<8x286xbf16>
    tpu.vector_store %arg11[%c0_119, %c19_120], %122 {strides = array<i32>} : memref<8x324xbf16, #tpu.memory_space<vmem>>, vector<8x286xbf16>,
    %c0_121 = arith.constant 0 : index
    %c0_122 = arith.constant 0 : index
    %124 = vector.load %arg11[%c0_121, %c0_122] : memref<8x324xbf16, #tpu.memory_space<vmem>>, vector<8x286xbf16>
    %c0_123 = arith.constant 0 : index
    %c0_124 = arith.constant 0 : index
    %c0_125 = arith.constant 0 : index
    %125 = vector.load %arg5[%c0_123, %c0_124, %c0_125] : memref<9x8x8xbf16, #tpu.memory_space<vmem>>, vector<1x8x8xbf16>
    %126 = vector.shape_cast %125 : vector<1x8x8xbf16> to vector<8x8xbf16>
    %cst_126 = arith.constant dense<0.000000e+00> : vector<8x286xf32>
    %127 = tpu.matmul %126, %124, %cst_126 {dimension_numbers = #tpu.dot_dimension_numbers<[1], [0], [0], [1], [0, 0, 1, 1], [], []>} : vector<8x8xbf16>, vector<8x286xbf16>, vector<8x286xf32> -> vector<8x286xf32>
    %c0_127 = arith.constant 0 : index
    %c1_128 = arith.constant 1 : index
    %128 = vector.load %arg11[%c0_127, %c1_128] : memref<8x324xbf16, #tpu.memory_space<vmem>>, vector<8x286xbf16>
    %c1_129 = arith.constant 1 : index
    %c0_130 = arith.constant 0 : index
    %c0_131 = arith.constant 0 : index
    %129 = vector.load %arg5[%c1_129, %c0_130, %c0_131] : memref<9x8x8xbf16, #tpu.memory_space<vmem>>, vector<1x8x8xbf16>
    %130 = vector.shape_cast %129 : vector<1x8x8xbf16> to vector<8x8xbf16>
    %cst_132 = arith.constant dense<0.000000e+00> : vector<8x286xf32>
    %131 = tpu.matmul %130, %128, %cst_132 {dimension_numbers = #tpu.dot_dimension_numbers<[1], [0], [0], [1], [0, 0, 1, 1], [], []>} : vector<8x8xbf16>, vector<8x286xbf16>, vector<8x286xf32> -> vector<8x286xf32>
    %132 = arith.addf %127, %131 : vector<8x286xf32>
    %c0_133 = arith.constant 0 : index
    %c2_134 = arith.constant 2 : index
    %133 = vector.load %arg11[%c0_133, %c2_134] : memref<8x324xbf16, #tpu.memory_space<vmem>>, vector<8x286xbf16>
    %c2_135 = arith.constant 2 : index
    %c0_136 = arith.constant 0 : index
    %c0_137 = arith.constant 0 : index
    %134 = vector.load %arg5[%c2_135, %c0_136, %c0_137] : memref<9x8x8xbf16, #tpu.memory_space<vmem>>, vector<1x8x8xbf16>
    %135 = vector.shape_cast %134 : vector<1x8x8xbf16> to vector<8x8xbf16>
    %cst_138 = arith.constant dense<0.000000e+00> : vector<8x286xf32>
    %136 = tpu.matmul %135, %133, %cst_138 {dimension_numbers = #tpu.dot_dimension_numbers<[1], [0], [0], [1], [0, 0, 1, 1], [], []>} : vector<8x8xbf16>, vector<8x286xbf16>, vector<8x286xf32> -> vector<8x286xf32>
    %137 = arith.addf %132, %136 : vector<8x286xf32>
    %c0_139 = arith.constant 0 : index
    %c18_140 = arith.constant 18 : index
    %138 = vector.load %arg11[%c0_139, %c18_140] : memref<8x324xbf16, #tpu.memory_space<vmem>>, vector<8x286xbf16>
    %c3_141 = arith.constant 3 : index
    %c0_142 = arith.constant 0 : index
    %c0_143 = arith.constant 0 : index
    %139 = vector.load %arg5[%c3_141, %c0_142, %c0_143] : memref<9x8x8xbf16, #tpu.memory_space<vmem>>, vector<1x8x8xbf16>
    %140 = vector.shape_cast %139 : vector<1x8x8xbf16> to vector<8x8xbf16>
    %cst_144 = arith.constant dense<0.000000e+00> : vector<8x286xf32>
    %141 = tpu.matmul %140, %138, %cst_144 {dimension_numbers = #tpu.dot_dimension_numbers<[1], [0], [0], [1], [0, 0, 1, 1], [], []>} : vector<8x8xbf16>, vector<8x286xbf16>, vector<8x286xf32> -> vector<8x286xf32>
    %142 = arith.addf %137, %141 : vector<8x286xf32>
    %c0_145 = arith.constant 0 : index
    %c19_146 = arith.constant 19 : index
    %143 = vector.load %arg11[%c0_145, %c19_146] : memref<8x324xbf16, #tpu.memory_space<vmem>>, vector<8x286xbf16>
    %c4_147 = arith.constant 4 : index
    %c0_148 = arith.constant 0 : index
    %c0_149 = arith.constant 0 : index
    %144 = vector.load %arg5[%c4_147, %c0_148, %c0_149] : memref<9x8x8xbf16, #tpu.memory_space<vmem>>, vector<1x8x8xbf16>
    %145 = vector.shape_cast %144 : vector<1x8x8xbf16> to vector<8x8xbf16>
    %cst_150 = arith.constant dense<0.000000e+00> : vector<8x286xf32>
    %146 = tpu.matmul %145, %143, %cst_150 {dimension_numbers = #tpu.dot_dimension_numbers<[1], [0], [0], [1], [0, 0, 1, 1], [], []>} : vector<8x8xbf16>, vector<8x286xbf16>, vector<8x286xf32> -> vector<8x286xf32>
    %147 = arith.addf %142, %146 : vector<8x286xf32>
    %c0_151 = arith.constant 0 : index
    %c20_152 = arith.constant 20 : index
    %148 = vector.load %arg11[%c0_151, %c20_152] : memref<8x324xbf16, #tpu.memory_space<vmem>>, vector<8x286xbf16>
    %c5_153 = arith.constant 5 : index
    %c0_154 = arith.constant 0 : index
    %c0_155 = arith.constant 0 : index
    %149 = vector.load %arg5[%c5_153, %c0_154, %c0_155] : memref<9x8x8xbf16, #tpu.memory_space<vmem>>, vector<1x8x8xbf16>
    %150 = vector.shape_cast %149 : vector<1x8x8xbf16> to vector<8x8xbf16>
    %cst_156 = arith.constant dense<0.000000e+00> : vector<8x286xf32>
    %151 = tpu.matmul %150, %148, %cst_156 {dimension_numbers = #tpu.dot_dimension_numbers<[1], [0], [0], [1], [0, 0, 1, 1], [], []>} : vector<8x8xbf16>, vector<8x286xbf16>, vector<8x286xf32> -> vector<8x286xf32>
    %152 = arith.addf %147, %151 : vector<8x286xf32>
    %c0_157 = arith.constant 0 : index
    %c36_158 = arith.constant 36 : index
    %153 = vector.load %arg11[%c0_157, %c36_158] : memref<8x324xbf16, #tpu.memory_space<vmem>>, vector<8x286xbf16>
    %c6_159 = arith.constant 6 : index
    %c0_160 = arith.constant 0 : index
    %c0_161 = arith.constant 0 : index
    %154 = vector.load %arg5[%c6_159, %c0_160, %c0_161] : memref<9x8x8xbf16, #tpu.memory_space<vmem>>, vector<1x8x8xbf16>
    %155 = vector.shape_cast %154 : vector<1x8x8xbf16> to vector<8x8xbf16>
    %cst_162 = arith.constant dense<0.000000e+00> : vector<8x286xf32>
    %156 = tpu.matmul %155, %153, %cst_162 {dimension_numbers = #tpu.dot_dimension_numbers<[1], [0], [0], [1], [0, 0, 1, 1], [], []>} : vector<8x8xbf16>, vector<8x286xbf16>, vector<8x286xf32> -> vector<8x286xf32>
    %157 = arith.addf %152, %156 : vector<8x286xf32>
    %c0_163 = arith.constant 0 : index
    %c37_164 = arith.constant 37 : index
    %158 = vector.load %arg11[%c0_163, %c37_164] : memref<8x324xbf16, #tpu.memory_space<vmem>>, vector<8x286xbf16>
    %c7_165 = arith.constant 7 : index
    %c0_166 = arith.constant 0 : index
    %c0_167 = arith.constant 0 : index
    %159 = vector.load %arg5[%c7_165, %c0_166, %c0_167] : memref<9x8x8xbf16, #tpu.memory_space<vmem>>, vector<1x8x8xbf16>
    %160 = vector.shape_cast %159 : vector<1x8x8xbf16> to vector<8x8xbf16>
    %cst_168 = arith.constant dense<0.000000e+00> : vector<8x286xf32>
    %161 = tpu.matmul %160, %158, %cst_168 {dimension_numbers = #tpu.dot_dimension_numbers<[1], [0], [0], [1], [0, 0, 1, 1], [], []>} : vector<8x8xbf16>, vector<8x286xbf16>, vector<8x286xf32> -> vector<8x286xf32>
    %162 = arith.addf %157, %161 : vector<8x286xf32>
    %c0_169 = arith.constant 0 : index
    %c38_170 = arith.constant 38 : index
    %163 = vector.load %arg11[%c0_169, %c38_170] : memref<8x324xbf16, #tpu.memory_space<vmem>>, vector<8x286xbf16>
    %c8_171 = arith.constant 8 : index
    %c0_172 = arith.constant 0 : index
    %c0_173 = arith.constant 0 : index
    %164 = vector.load %arg5[%c8_171, %c0_172, %c0_173] : memref<9x8x8xbf16, #tpu.memory_space<vmem>>, vector<1x8x8xbf16>
    %165 = vector.shape_cast %164 : vector<1x8x8xbf16> to vector<8x8xbf16>
    %cst_174 = arith.constant dense<0.000000e+00> : vector<8x286xf32>
    %166 = tpu.matmul %165, %163, %cst_174 {dimension_numbers = #tpu.dot_dimension_numbers<[1], [0], [0], [1], [0, 0, 1, 1], [], []>} : vector<8x8xbf16>, vector<8x286xbf16>, vector<8x286xf32> -> vector<8x286xf32>
    %167 = arith.addf %162, %166 : vector<8x286xf32>
    %c0_175 = arith.constant 0 : index
    %c0_176 = arith.constant 0 : index
    %168 = vector.load %arg6[%c0_175, %c0_176] : memref<8x1xf32, #tpu.memory_space<vmem>>, vector<8x1xf32>
    %169 = vector.broadcast %168 : vector<8x1xf32> to vector<8x286xf32>
    %170 = arith.addf %167, %169 : vector<8x286xf32>
    %c0_177 = arith.constant 0 : index
    %c19_178 = arith.constant 19 : index
    %171 = vector.load %arg10[%c0_177, %c19_178] : memref<4x324xbf16, #tpu.memory_space<vmem>>, vector<4x286xbf16>
    %c0_179 = arith.constant 0 : index
    %c0_180 = arith.constant 0 : index
    %172 = vector.load %arg7[%c0_179, %c0_180] : memref<8x4xbf16, #tpu.memory_space<vmem>>, vector<8x4xbf16>
    %cst_181 = arith.constant dense<0.000000e+00> : vector<8x286xf32>
    %173 = tpu.matmul %172, %171, %cst_181 {dimension_numbers = #tpu.dot_dimension_numbers<[1], [0], [0], [1], [0, 0, 1, 1], [], []>} : vector<8x4xbf16>, vector<4x286xbf16>, vector<8x286xf32> -> vector<8x286xf32>
    %174 = arith.addf %170, %173 : vector<8x286xf32>
    %c0_182 = arith.constant 0 : index
    %c0_183 = arith.constant 0 : index
    %175 = vector.load %arg8[%c0_182, %c0_183] : memref<8x1xf32, #tpu.memory_space<vmem>>, vector<8x1xf32>
    %176 = vector.broadcast %175 : vector<8x1xf32> to vector<8x286xf32>
    %177 = arith.addf %174, %176 : vector<8x286xf32>
    %cst_184 = arith.constant 0.000000e+00 : f32
    %178 = vector.broadcast %cst_184 : f32 to vector<8x286xf32>
    %179 = arith.maximumf %177, %178 : vector<8x286xf32>
    %180 = arith.truncf %179 : vector<8x286xf32> to vector<8x286xbf16>
    %181 = vector.extract_strided_slice %180 {offsets = [0, 0], sizes = [8, 16], strides = [1, 1]} : vector<8x286xbf16> to vector<8x16xbf16>
    %c0_185 = arith.constant 0 : index
    %c0_186 = arith.constant 0 : index
    %c0_187 = arith.constant 0 : index
    %182 = vector.load %arg9[%c0_185, %c0_186, %c0_187] : memref<1x8x256xbf16, #tpu.memory_space<vmem>>, vector<1x8x16xbf16>
    %183 = vector.shape_cast %182 : vector<1x8x16xbf16> to vector<8x16xbf16>
    %184 = vector.shape_cast %181 : vector<8x16xbf16> to vector<1x8x16xbf16>
    tpu.vector_store %arg9[%c0_185, %c0_186, %c0_187], %184 {strides = array<i32>} : memref<1x8x256xbf16, #tpu.memory_space<vmem>>, vector<1x8x16xbf16>,
    %185 = vector.extract_strided_slice %180 {offsets = [0, 18], sizes = [8, 16], strides = [1, 1]} : vector<8x286xbf16> to vector<8x16xbf16>
    %c0_188 = arith.constant 0 : index
    %c0_189 = arith.constant 0 : index
    %c16_190 = arith.constant 16 : index
    %186 = vector.load %arg9[%c0_188, %c0_189, %c16_190] : memref<1x8x256xbf16, #tpu.memory_space<vmem>>, vector<1x8x16xbf16>
    %187 = vector.shape_cast %186 : vector<1x8x16xbf16> to vector<8x16xbf16>
    %188 = vector.shape_cast %185 : vector<8x16xbf16> to vector<1x8x16xbf16>
    tpu.vector_store %arg9[%c0_188, %c0_189, %c16_190], %188 {strides = array<i32>} : memref<1x8x256xbf16, #tpu.memory_space<vmem>>, vector<1x8x16xbf16>,
    %189 = vector.extract_strided_slice %180 {offsets = [0, 36], sizes = [8, 16], strides = [1, 1]} : vector<8x286xbf16> to vector<8x16xbf16>
    %c0_191 = arith.constant 0 : index
    %c0_192 = arith.constant 0 : index
    %c32_193 = arith.constant 32 : index
    %190 = vector.load %arg9[%c0_191, %c0_192, %c32_193] : memref<1x8x256xbf16, #tpu.memory_space<vmem>>, vector<1x8x16xbf16>
    %191 = vector.shape_cast %190 : vector<1x8x16xbf16> to vector<8x16xbf16>
    %192 = vector.shape_cast %189 : vector<8x16xbf16> to vector<1x8x16xbf16>
    tpu.vector_store %arg9[%c0_191, %c0_192, %c32_193], %192 {strides = array<i32>} : memref<1x8x256xbf16, #tpu.memory_space<vmem>>, vector<1x8x16xbf16>,
    %193 = vector.extract_strided_slice %180 {offsets = [0, 54], sizes = [8, 16], strides = [1, 1]} : vector<8x286xbf16> to vector<8x16xbf16>
    %c0_194 = arith.constant 0 : index
    %c0_195 = arith.constant 0 : index
    %c48_196 = arith.constant 48 : index
    %194 = vector.load %arg9[%c0_194, %c0_195, %c48_196] : memref<1x8x256xbf16, #tpu.memory_space<vmem>>, vector<1x8x16xbf16>
    %195 = vector.shape_cast %194 : vector<1x8x16xbf16> to vector<8x16xbf16>
    %196 = vector.shape_cast %193 : vector<8x16xbf16> to vector<1x8x16xbf16>
    tpu.vector_store %arg9[%c0_194, %c0_195, %c48_196], %196 {strides = array<i32>} : memref<1x8x256xbf16, #tpu.memory_space<vmem>>, vector<1x8x16xbf16>,
    %197 = vector.extract_strided_slice %180 {offsets = [0, 72], sizes = [8, 16], strides = [1, 1]} : vector<8x286xbf16> to vector<8x16xbf16>
    %c0_197 = arith.constant 0 : index
    %c0_198 = arith.constant 0 : index
    %c64_199 = arith.constant 64 : index
    %198 = vector.load %arg9[%c0_197, %c0_198, %c64_199] : memref<1x8x256xbf16, #tpu.memory_space<vmem>>, vector<1x8x16xbf16>
    %199 = vector.shape_cast %198 : vector<1x8x16xbf16> to vector<8x16xbf16>
    %200 = vector.shape_cast %197 : vector<8x16xbf16> to vector<1x8x16xbf16>
    tpu.vector_store %arg9[%c0_197, %c0_198, %c64_199], %200 {strides = array<i32>} : memref<1x8x256xbf16, #tpu.memory_space<vmem>>, vector<1x8x16xbf16>,
    %201 = vector.extract_strided_slice %180 {offsets = [0, 90], sizes = [8, 16], strides = [1, 1]} : vector<8x286xbf16> to vector<8x16xbf16>
    %c0_200 = arith.constant 0 : index
    %c0_201 = arith.constant 0 : index
    %c80_202 = arith.constant 80 : index
    %202 = vector.load %arg9[%c0_200, %c0_201, %c80_202] : memref<1x8x256xbf16, #tpu.memory_space<vmem>>, vector<1x8x16xbf16>
    %203 = vector.shape_cast %202 : vector<1x8x16xbf16> to vector<8x16xbf16>
    %204 = vector.shape_cast %201 : vector<8x16xbf16> to vector<1x8x16xbf16>
    tpu.vector_store %arg9[%c0_200, %c0_201, %c80_202], %204 {strides = array<i32>} : memref<1x8x256xbf16, #tpu.memory_space<vmem>>, vector<1x8x16xbf16>,
    %205 = vector.extract_strided_slice %180 {offsets = [0, 108], sizes = [8, 16], strides = [1, 1]} : vector<8x286xbf16> to vector<8x16xbf16>
    %c0_203 = arith.constant 0 : index
    %c0_204 = arith.constant 0 : index
    %c96_205 = arith.constant 96 : index
    %206 = vector.load %arg9[%c0_203, %c0_204, %c96_205] : memref<1x8x256xbf16, #tpu.memory_space<vmem>>, vector<1x8x16xbf16>
    %207 = vector.shape_cast %206 : vector<1x8x16xbf16> to vector<8x16xbf16>
    %208 = vector.shape_cast %205 : vector<8x16xbf16> to vector<1x8x16xbf16>
    tpu.vector_store %arg9[%c0_203, %c0_204, %c96_205], %208 {strides = array<i32>} : memref<1x8x256xbf16, #tpu.memory_space<vmem>>, vector<1x8x16xbf16>,
    %209 = vector.extract_strided_slice %180 {offsets = [0, 126], sizes = [8, 16], strides = [1, 1]} : vector<8x286xbf16> to vector<8x16xbf16>
    %c0_206 = arith.constant 0 : index
    %c0_207 = arith.constant 0 : index
    %c112_208 = arith.constant 112 : index
    %210 = vector.load %arg9[%c0_206, %c0_207, %c112_208] : memref<1x8x256xbf16, #tpu.memory_space<vmem>>, vector<1x8x16xbf16>
    %211 = vector.shape_cast %210 : vector<1x8x16xbf16> to vector<8x16xbf16>
    %212 = vector.shape_cast %209 : vector<8x16xbf16> to vector<1x8x16xbf16>
    tpu.vector_store %arg9[%c0_206, %c0_207, %c112_208], %212 {strides = array<i32>} : memref<1x8x256xbf16, #tpu.memory_space<vmem>>, vector<1x8x16xbf16>,
    %213 = vector.extract_strided_slice %180 {offsets = [0, 144], sizes = [8, 16], strides = [1, 1]} : vector<8x286xbf16> to vector<8x16xbf16>
    %c0_209 = arith.constant 0 : index
    %c0_210 = arith.constant 0 : index
    %c128_211 = arith.constant 128 : index
    %214 = vector.load %arg9[%c0_209, %c0_210, %c128_211] : memref<1x8x256xbf16, #tpu.memory_space<vmem>>, vector<1x8x16xbf16>
    %215 = vector.shape_cast %214 : vector<1x8x16xbf16> to vector<8x16xbf16>
    %216 = vector.shape_cast %213 : vector<8x16xbf16> to vector<1x8x16xbf16>
    tpu.vector_store %arg9[%c0_209, %c0_210, %c128_211], %216 {strides = array<i32>} : memref<1x8x256xbf16, #tpu.memory_space<vmem>>, vector<1x8x16xbf16>,
    %217 = vector.extract_strided_slice %180 {offsets = [0, 162], sizes = [8, 16], strides = [1, 1]} : vector<8x286xbf16> to vector<8x16xbf16>
    %c0_212 = arith.constant 0 : index
    %c0_213 = arith.constant 0 : index
    %c144_214 = arith.constant 144 : index
    %218 = vector.load %arg9[%c0_212, %c0_213, %c144_214] : memref<1x8x256xbf16, #tpu.memory_space<vmem>>, vector<1x8x16xbf16>
    %219 = vector.shape_cast %218 : vector<1x8x16xbf16> to vector<8x16xbf16>
    %220 = vector.shape_cast %217 : vector<8x16xbf16> to vector<1x8x16xbf16>
    tpu.vector_store %arg9[%c0_212, %c0_213, %c144_214], %220 {strides = array<i32>} : memref<1x8x256xbf16, #tpu.memory_space<vmem>>, vector<1x8x16xbf16>,
    %221 = vector.extract_strided_slice %180 {offsets = [0, 180], sizes = [8, 16], strides = [1, 1]} : vector<8x286xbf16> to vector<8x16xbf16>
    %c0_215 = arith.constant 0 : index
    %c0_216 = arith.constant 0 : index
    %c160_217 = arith.constant 160 : index
    %222 = vector.load %arg9[%c0_215, %c0_216, %c160_217] : memref<1x8x256xbf16, #tpu.memory_space<vmem>>, vector<1x8x16xbf16>
    %223 = vector.shape_cast %222 : vector<1x8x16xbf16> to vector<8x16xbf16>
    %224 = vector.shape_cast %221 : vector<8x16xbf16> to vector<1x8x16xbf16>
    tpu.vector_store %arg9[%c0_215, %c0_216, %c160_217], %224 {strides = array<i32>} : memref<1x8x256xbf16, #tpu.memory_space<vmem>>, vector<1x8x16xbf16>,
    %225 = vector.extract_strided_slice %180 {offsets = [0, 198], sizes = [8, 16], strides = [1, 1]} : vector<8x286xbf16> to vector<8x16xbf16>
    %c0_218 = arith.constant 0 : index
    %c0_219 = arith.constant 0 : index
    %c176_220 = arith.constant 176 : index
    %226 = vector.load %arg9[%c0_218, %c0_219, %c176_220] : memref<1x8x256xbf16, #tpu.memory_space<vmem>>, vector<1x8x16xbf16>
    %227 = vector.shape_cast %226 : vector<1x8x16xbf16> to vector<8x16xbf16>
    %228 = vector.shape_cast %225 : vector<8x16xbf16> to vector<1x8x16xbf16>
    tpu.vector_store %arg9[%c0_218, %c0_219, %c176_220], %228 {strides = array<i32>} : memref<1x8x256xbf16, #tpu.memory_space<vmem>>, vector<1x8x16xbf16>,
    %229 = vector.extract_strided_slice %180 {offsets = [0, 216], sizes = [8, 16], strides = [1, 1]} : vector<8x286xbf16> to vector<8x16xbf16>
    %c0_221 = arith.constant 0 : index
    %c0_222 = arith.constant 0 : index
    %c192_223 = arith.constant 192 : index
    %230 = vector.load %arg9[%c0_221, %c0_222, %c192_223] : memref<1x8x256xbf16, #tpu.memory_space<vmem>>, vector<1x8x16xbf16>
    %231 = vector.shape_cast %230 : vector<1x8x16xbf16> to vector<8x16xbf16>
    %232 = vector.shape_cast %229 : vector<8x16xbf16> to vector<1x8x16xbf16>
    tpu.vector_store %arg9[%c0_221, %c0_222, %c192_223], %232 {strides = array<i32>} : memref<1x8x256xbf16, #tpu.memory_space<vmem>>, vector<1x8x16xbf16>,
    %233 = vector.extract_strided_slice %180 {offsets = [0, 234], sizes = [8, 16], strides = [1, 1]} : vector<8x286xbf16> to vector<8x16xbf16>
    %c0_224 = arith.constant 0 : index
    %c0_225 = arith.constant 0 : index
    %c208_226 = arith.constant 208 : index
    %234 = vector.load %arg9[%c0_224, %c0_225, %c208_226] : memref<1x8x256xbf16, #tpu.memory_space<vmem>>, vector<1x8x16xbf16>
    %235 = vector.shape_cast %234 : vector<1x8x16xbf16> to vector<8x16xbf16>
    %236 = vector.shape_cast %233 : vector<8x16xbf16> to vector<1x8x16xbf16>
    tpu.vector_store %arg9[%c0_224, %c0_225, %c208_226], %236 {strides = array<i32>} : memref<1x8x256xbf16, #tpu.memory_space<vmem>>, vector<1x8x16xbf16>,
    %237 = vector.extract_strided_slice %180 {offsets = [0, 252], sizes = [8, 16], strides = [1, 1]} : vector<8x286xbf16> to vector<8x16xbf16>
    %c0_227 = arith.constant 0 : index
    %c0_228 = arith.constant 0 : index
    %c224_229 = arith.constant 224 : index
    %238 = vector.load %arg9[%c0_227, %c0_228, %c224_229] : memref<1x8x256xbf16, #tpu.memory_space<vmem>>, vector<1x8x16xbf16>
    %239 = vector.shape_cast %238 : vector<1x8x16xbf16> to vector<8x16xbf16>
    %240 = vector.shape_cast %237 : vector<8x16xbf16> to vector<1x8x16xbf16>
    tpu.vector_store %arg9[%c0_227, %c0_228, %c224_229], %240 {strides = array<i32>} : memref<1x8x256xbf16, #tpu.memory_space<vmem>>, vector<1x8x16xbf16>,
    %241 = vector.extract_strided_slice %180 {offsets = [0, 270], sizes = [8, 16], strides = [1, 1]} : vector<8x286xbf16> to vector<8x16xbf16>
    %c0_230 = arith.constant 0 : index
    %c0_231 = arith.constant 0 : index
    %c240_232 = arith.constant 240 : index
    %242 = vector.load %arg9[%c0_230, %c0_231, %c240_232] : memref<1x8x256xbf16, #tpu.memory_space<vmem>>, vector<1x8x16xbf16>
    %243 = vector.shape_cast %242 : vector<1x8x16xbf16> to vector<8x16xbf16>
    %244 = vector.shape_cast %241 : vector<8x16xbf16> to vector<1x8x16xbf16>
    tpu.vector_store %arg9[%c0_230, %c0_231, %c240_232], %244 {strides = array<i32>} : memref<1x8x256xbf16, #tpu.memory_space<vmem>>, vector<1x8x16xbf16>,
    return
  }
  func.func @transform_0(%arg0: i32) -> (i32, i32, i32) {
    %c0_i32 = arith.constant 0 : i32
    %c0_i32_0 = arith.constant 0 : i32
    %c0_i32_1 = arith.constant 0 : i32
    return %arg0, %c0_i32, %c0_i32_0 : i32, i32, i32
  }
  func.func @transform_1(%arg0: i32) -> (i32, i32) {
    %c0_i32 = arith.constant 0 : i32
    %c0_i32_0 = arith.constant 0 : i32
    %c0_i32_1 = arith.constant 0 : i32
    return %c0_i32, %c0_i32_0 : i32, i32
  }
  func.func @transform_2(%arg0: i32) -> (i32, i32, i32) {
    %c0_i32 = arith.constant 0 : i32
    %c0_i32_0 = arith.constant 0 : i32
    %c0_i32_1 = arith.constant 0 : i32
    %c0_i32_2 = arith.constant 0 : i32
    return %c0_i32, %c0_i32_0, %c0_i32_1 : i32, i32, i32
  }
  func.func @transform_3(%arg0: i32) -> (i32, i32) {
    %c0_i32 = arith.constant 0 : i32
    %c0_i32_0 = arith.constant 0 : i32
    %c0_i32_1 = arith.constant 0 : i32
    return %c0_i32, %c0_i32_0 : i32, i32
  }
  func.func @transform_4(%arg0: i32) -> (i32, i32, i32) {
    %c0_i32 = arith.constant 0 : i32
    %c0_i32_0 = arith.constant 0 : i32
    %c0_i32_1 = arith.constant 0 : i32
    %c0_i32_2 = arith.constant 0 : i32
    return %c0_i32, %c0_i32_0, %c0_i32_1 : i32, i32, i32
  }
  func.func @transform_5(%arg0: i32) -> (i32, i32) {
    %c0_i32 = arith.constant 0 : i32
    %c0_i32_0 = arith.constant 0 : i32
    %c0_i32_1 = arith.constant 0 : i32
    return %c0_i32, %c0_i32_0 : i32, i32
  }
  func.func @transform_6(%arg0: i32) -> (i32, i32) {
    %c0_i32 = arith.constant 0 : i32
    %c0_i32_0 = arith.constant 0 : i32
    %c0_i32_1 = arith.constant 0 : i32
    return %c0_i32, %c0_i32_0 : i32, i32
  }
  func.func @transform_7(%arg0: i32) -> (i32, i32) {
    %c0_i32 = arith.constant 0 : i32
    %c0_i32_0 = arith.constant 0 : i32
    %c0_i32_1 = arith.constant 0 : i32
    return %c0_i32, %c0_i32_0 : i32, i32
  }
  func.func @transform_8(%arg0: i32) -> (i32, i32, i32) {
    %c0_i32 = arith.constant 0 : i32
    %c0_i32_0 = arith.constant 0 : i32
    %c0_i32_1 = arith.constant 0 : i32
    return %arg0, %c0_i32, %c0_i32_0 : i32, i32, i32
  }
}

</mosaic_0001>

<llo_original>
// kernel: tpu_custom_call.1
$region0: #{tpu_custom_call.1}
  #allocation0 [shape = 'u32[]', space=smem, size = 0x4, offset = 0x4, fixed_abs, tag = 'smem constant byte address 0x4 - core index']
  #allocation1 [shape = 'u32[144,128]{1,0:T(1,128)}', space=vmem, size = 0x12000, scoped, tag = 'internal scratch']
  #allocation2 [shape = 'bf16[4,324]{1,0:T(4,128)(2,1)}', space=vmem, size = 0xc00, scoped, tag = 'scratch operand']
  #allocation3 [shape = 'bf16[8,324]{1,0:T(8,128)(2,1)}', space=vmem, size = 0x1800, scoped, tag = 'scratch operand']
  %s0 = inlined_call_operand.vmem [shape: bf16[2,4,256], index: 0, kind: input, shape index: {}]
  %s1 = inlined_call_operand.vmem [shape: f32[1,286], index: 1, kind: input, shape index: {}]
  %s2 = inlined_call_operand.vmem [shape: bf16[9,8,4], index: 2, kind: input, shape index: {}]
  %s3 = inlined_call_operand.vmem [shape: f32[8,1], index: 3, kind: input, shape index: {}]
  %s4 = inlined_call_operand.vmem [shape: bf16[9,8,8], index: 4, kind: input, shape index: {}]
  %s5 = inlined_call_operand.vmem [shape: f32[8,1], index: 5, kind: input, shape index: {}]
  %s6 = inlined_call_operand.vmem [shape: bf16[8,4], index: 6, kind: input, shape index: {}]
  %s7 = inlined_call_operand.vmem [shape: f32[8,1], index: 7, kind: input, shape index: {}]
  %s8 = inlined_call_operand.hbm [shape: bf16[2,8,256], index: 8, kind: output, shape index: {}]
  %s9 = sld [smem:[#allocation0]]
  $region65: #{tpu_custom_call.1} parent=0
    _
  %s11 = ssub.s32 1, %s9
  %s12 = scalar_select 0, %s11, %s9
  $region1: #{tpu_custom_call.1} parent=0
    #allocation4 [shape = 'u8[8192]{0}', space=vmem, size = 0x2000, scoped, tag = 'output window, operand 0']
    #allocation5 [shape = 's32[2]{0}', space=sflag, size = 0x8, scoped, tag = 'scoped memory for tpu_custom_call.1']
    %13 = vsyncpa [#allocation5], 0
    %s14 = scalar_lea.sflag [#allocation5], 1
    %15 = vsyncpa %s14, 0
    loop: start=0, step=1, limit=4
    $region2: #{tpu_custom_call.1} parent=1 // loop_pre_header
      _
    $region3: #{tpu_custom_call.1} parent=1 // loop_header
      %s17 = sphi 0, %s21
      %p18 = scmp.ge.s32.totalorder %s17, 4
      %s27 = sphi 0, %s29
      %s30 = sphi 0, %s27
      %s31 = sphi 0, %s30
      %s47 = sphi 0, %s31
      %s51 = sphi 0, %s51
      %s53 = sphi 0, %s51
      %s54 = sphi 0, %s53
      %s68 = sphi 0, %s54
      %s72 = sphi 0, %s72
      %s74 = sphi 0, %s72
      %s75 = sphi 0, %s74
      %s89 = sphi 0, %s75
      %s93 = sphi 0, %s93
      %s95 = sphi 0, %s93
      %s96 = sphi 0, %s95
      %s110 = sphi 0, %s96
      %s114 = sphi 0, %s114
      %s116 = sphi 0, %s114
      %s117 = sphi 0, %s116
      %s131 = sphi 0, %s117
      %s135 = sphi 0, %s135
      %s137 = sphi 0, %s135
      %s138 = sphi 0, %s137
      %s152 = sphi 0, %s138
      %s156 = sphi 0, %s156
      %s158 = sphi 0, %s156
      %s159 = sphi 0, %s158
      %s173 = sphi 0, %s159
      %s177 = sphi 0, %s177
      %s179 = sphi 0, %s177
      %s180 = sphi 0, %s179
      %s194 = sphi 0, %s180
      %s200 = sphi 0, %s202
      %s203 = sphi 0, %s200
      %s204 = sphi 0, %s203
      %s220 = sphi 0, %s204
    $region4: #{tpu_custom_call.1} parent=1 // loop_header_branch
      %20 = sbr.rel (%p18) target = $region8
    $region5: #{tpu_custom_call.1} parent=1 // loop_body
      %s22 = ssub.s32 %s17, 1
      %s23 = ssub.s32 %s17, 2
      %s24 = sadd.s32 %s17, 1
      %s25 = ssub.s32 %s17, %s24
      %p26 = scmp.eq.s32.totalorder %s25, 0
      %s28 = sadd.s32 %s27, 1
      %s29 = scalar_select %p26, %s27, %s28
      %p32 = pneg %p26
      %p33 = scmp.eq.s32.totalorder %s17, 1
      %p34 = por %p32, %p33
      %p35 = scmp.ne.s32.totalorder %s27, %s30
      %p36 = scmp.eq.s32.totalorder %s17, 0
      %p37 = por %p35, %p36
      %p38 = scmp.ne.s32.totalorder %s27, %s30
      %p39 = scmp.eq.s32.totalorder %s22, 1
      %p40 = por %p38, %p39
      %p41 = scmp.ne.s32.totalorder %s30, %s31
      %p42 = scmp.eq.s32.totalorder %s22, 0
      %p43 = por %p41, %p42
      %p44 = scmp.ne.s32.totalorder %s30, %s31
      %p45 = scmp.eq.s32.totalorder %s23, 1
      %p46 = por %p44, %p45
      %p48 = scmp.ne.s32.totalorder %s31, %s47
      %p49 = scmp.eq.s32.totalorder %s23, 0
      %p50 = por %p48, %p49
      %s52 = sadd.s32 %s51, 1
      %p55 = scmp.eq.s32.totalorder %s17, 1
      %p56 = scmp.ne.s32.totalorder %s51, %s53
      %p57 = scmp.eq.s32.totalorder %s17, 0
      %p58 = por %p56, %p57
      %p59 = scmp.ne.s32.totalorder %s51, %s53
      %p60 = scmp.eq.s32.totalorder %s22, 1
      %p61 = por %p59, %p60
      %p62 = scmp.ne.s32.totalorder %s53, %s54
      %p63 = scmp.eq.s32.totalorder %s22, 0
      %p64 = por %p62, %p63
      %p65 = scmp.ne.s32.totalorder %s53, %s54
      %p66 = scmp.eq.s32.totalorder %s23, 1
      %p67 = por %p65, %p66
      %p69 = scmp.ne.s32.totalorder %s54, %s68
      %p70 = scmp.eq.s32.totalorder %s23, 0
      %p71 = por %p69, %p70
      %s73 = sadd.s32 %s72, 1
      %p76 = scmp.eq.s32.totalorder %s17, 1
      %p77 = scmp.ne.s32.totalorder %s72, %s74
      %p78 = scmp.eq.s32.totalorder %s17, 0
      %p79 = por %p77, %p78
      %p80 = scmp.ne.s32.totalorder %s72, %s74
      %p81 = scmp.eq.s32.totalorder %s22, 1
      %p82 = por %p80, %p81
      %p83 = scmp.ne.s32.totalorder %s74, %s75
      %p84 = scmp.eq.s32.totalorder %s22, 0
      %p85 = por %p83, %p84
      %p86 = scmp.ne.s32.totalorder %s74, %s75
      %p87 = scmp.eq.s32.totalorder %s23, 1
      %p88 = por %p86, %p87
      %p90 = scmp.ne.s32.totalorder %s75, %s89
      %p91 = scmp.eq.s32.totalorder %s23, 0
      %p92 = por %p90, %p91
      %s94 = sadd.s32 %s93, 1
      %p97 = scmp.eq.s32.totalorder %s17, 1
      %p98 = scmp.ne.s32.totalorder %s93, %s95
      %p99 = scmp.eq.s32.totalorder %s17, 0
      %p100 = por %p98, %p99
      %p101 = scmp.ne.s32.totalorder %s93, %s95
      %p102 = scmp.eq.s32.totalorder %s22, 1
      %p103 = por %p101, %p102
      %p104 = scmp.ne.s32.totalorder %s95, %s96
      %p105 = scmp.eq.s32.totalorder %s22, 0
      %p106 = por %p104, %p105
      %p107 = scmp.ne.s32.totalorder %s95, %s96
      %p108 = scmp.eq.s32.totalorder %s23, 1
      %p109 = por %p107, %p108
      %p111 = scmp.ne.s32.totalorder %s96, %s110
      %p112 = scmp.eq.s32.totalorder %s23, 0
      %p113 = por %p111, %p112
      %s115 = sadd.s32 %s114, 1
      %p118 = scmp.eq.s32.totalorder %s17, 1
      %p119 = scmp.ne.s32.totalorder %s114, %s116
      %p120 = scmp.eq.s32.totalorder %s17, 0
      %p121 = por %p119, %p120
      %p122 = scmp.ne.s32.totalorder %s114, %s116
      %p123 = scmp.eq.s32.totalorder %s22, 1
      %p124 = por %p122, %p123
      %p125 = scmp.ne.s32.totalorder %s116, %s117
      %p126 = scmp.eq.s32.totalorder %s22, 0
      %p127 = por %p125, %p126
      %p128 = scmp.ne.s32.totalorder %s116, %s117
      %p129 = scmp.eq.s32.totalorder %s23, 1
      %p130 = por %p128, %p129
      %p132 = scmp.ne.s32.totalorder %s117, %s131
      %p133 = scmp.eq.s32.totalorder %s23, 0
      %p134 = por %p132, %p133
      %s136 = sadd.s32 %s135, 1
      %p139 = scmp.eq.s32.totalorder %s17, 1
      %p140 = scmp.ne.s32.totalorder %s135, %s137
      %p141 = scmp.eq.s32.totalorder %s17, 0
      %p142 = por %p140, %p141
      %p143 = scmp.ne.s32.totalorder %s135, %s137
      %p144 = scmp.eq.s32.totalorder %s22, 1
      %p145 = por %p143, %p144
      %p146 = scmp.ne.s32.totalorder %s137, %s138
      %p147 = scmp.eq.s32.totalorder %s22, 0
      %p148 = por %p146, %p147
      %p149 = scmp.ne.s32.totalorder %s137, %s138
      %p150 = scmp.eq.s32.totalorder %s23, 1
      %p151 = por %p149, %p150
      %p153 = scmp.ne.s32.totalorder %s138, %s152
      %p154 = scmp.eq.s32.totalorder %s23, 0
      %p155 = por %p153, %p154
      %s157 = sadd.s32 %s156, 1
      %p160 = scmp.eq.s32.totalorder %s17, 1
      %p161 = scmp.ne.s32.totalorder %s156, %s158
      %p162 = scmp.eq.s32.totalorder %s17, 0
      %p163 = por %p161, %p162
      %p164 = scmp.ne.s32.totalorder %s156, %s158
      %p165 = scmp.eq.s32.totalorder %s22, 1
      %p166 = por %p164, %p165
      %p167 = scmp.ne.s32.totalorder %s158, %s159
      %p168 = scmp.eq.s32.totalorder %s22, 0
      %p169 = por %p167, %p168
      %p170 = scmp.ne.s32.totalorder %s158, %s159
      %p171 = scmp.eq.s32.totalorder %s23, 1
      %p172 = por %p170, %p171
      %p174 = scmp.ne.s32.totalorder %s159, %s173
      %p175 = scmp.eq.s32.totalorder %s23, 0
      %p176 = por %p174, %p175
      %s178 = sadd.s32 %s177, 1
      %p181 = scmp.eq.s32.totalorder %s17, 1
      %p182 = scmp.ne.s32.totalorder %s177, %s179
      %p183 = scmp.eq.s32.totalorder %s17, 0
      %p184 = por %p182, %p183
      %p185 = scmp.ne.s32.totalorder %s177, %s179
      %p186 = scmp.eq.s32.totalorder %s22, 1
      %p187 = por %p185, %p186
      %p188 = scmp.ne.s32.totalorder %s179, %s180
      %p189 = scmp.eq.s32.totalorder %s22, 0
      %p190 = por %p188, %p189
      %p191 = scmp.ne.s32.totalorder %s179, %s180
      %p192 = scmp.eq.s32.totalorder %s23, 1
      %p193 = por %p191, %p192
      %p195 = scmp.ne.s32.totalorder %s180, %s194
      %p196 = scmp.eq.s32.totalorder %s23, 0
      %p197 = por %p195, %p196
      %s198 = ssub.s32 %s17, %s24
      %p199 = scmp.eq.s32.totalorder %s198, 0
      %s201 = sadd.s32 %s200, 1
      %s202 = scalar_select %p199, %s200, %s201
      %p205 = pneg %p199
      %p206 = scmp.eq.s32.totalorder %s17, 1
      %p207 = por %p205, %p206
      %p208 = scmp.ne.s32.totalorder %s200, %s203
      %p209 = scmp.eq.s32.totalorder %s17, 0
      %p210 = por %p208, %p209
      %p211 = scmp.ne.s32.totalorder %s200, %s203
      %p212 = scmp.eq.s32.totalorder %s22, 1
      %p213 = por %p211, %p212
      %p214 = scmp.ne.s32.totalorder %s203, %s204
      %p215 = scmp.eq.s32.totalorder %s22, 0
      %p216 = por %p214, %p215
      %p217 = scmp.ne.s32.totalorder %s203, %s204
      %p218 = scmp.eq.s32.totalorder %s23, 1
      %p219 = por %p217, %p218
      %p221 = scmp.ne.s32.totalorder %s204, %s220
      %p222 = scmp.eq.s32.totalorder %s23, 0
      %p223 = por %p221, %p222
      %p224 = scmp.le.s32.totalorder 1, %s17
      %p225 = scmp.lt.s32.totalorder %s17, 3
      %p226 = pnand %p224, %p225
      %p227 = pneg %p226
      // Predicated region
      $region9: #{tpu_custom_call.1} parent=5 // pred_check
        _
      $region10: #{tpu_custom_call.1} parent=5 // pred_check_branch
        %229 = sbr.rel (%p226) target = $region12
      $region11: #{tpu_custom_call.1} parent=5 // pred_region
        %s230 = ssub.s32 %s17, 1
        // Predicated region
        $region13: #{tpu_custom_call.1} parent=11 // pred_check
          %p231 = pneg %p64
        $region14: #{tpu_custom_call.1} parent=11 // pred_check_branch
          %233 = sbr.rel (%p231) target = $region16
        $region15: #{tpu_custom_call.1} parent=11 // pred_region
          _
        $region16: #{tpu_custom_call.1} parent=11 // pred_fallthru
          _
        // Predicated region
        $region17: #{tpu_custom_call.1} parent=11 // pred_check
          %p234 = pneg %p85
        $region18: #{tpu_custom_call.1} parent=11 // pred_check_branch
          %236 = sbr.rel (%p234) target = $region20
        $region19: #{tpu_custom_call.1} parent=11 // pred_region
          _
        $region20: #{tpu_custom_call.1} parent=11 // pred_fallthru
          _
        // Predicated region
        $region21: #{tpu_custom_call.1} parent=11 // pred_check
          %p237 = pneg %p106
        $region22: #{tpu_custom_call.1} parent=11 // pred_check_branch
          %239 = sbr.rel (%p237) target = $region24
        $region23: #{tpu_custom_call.1} parent=11 // pred_region
          _
        $region24: #{tpu_custom_call.1} parent=11 // pred_fallthru
          _
        // Predicated region
        $region25: #{tpu_custom_call.1} parent=11 // pred_check
          %p240 = pneg %p127
        $region26: #{tpu_custom_call.1} parent=11 // pred_check_branch
          %242 = sbr.rel (%p240) target = $region28
        $region27: #{tpu_custom_call.1} parent=11 // pred_region
          _
        $region28: #{tpu_custom_call.1} parent=11 // pred_fallthru
          _
        // Predicated region
        $region29: #{tpu_custom_call.1} parent=11 // pred_check
          %p243 = pneg %p148
        $region30: #{tpu_custom_call.1} parent=11 // pred_check_branch
          %245 = sbr.rel (%p243) target = $region32
        $region31: #{tpu_custom_call.1} parent=11 // pred_region
          _
        $region32: #{tpu_custom_call.1} parent=11 // pred_fallthru
          _
        // Predicated region
        $region33: #{tpu_custom_call.1} parent=11 // pred_check
          %p246 = pneg %p169
        $region34: #{tpu_custom_call.1} parent=11 // pred_check_branch
          %248 = sbr.rel (%p246) target = $region36
        $region35: #{tpu_custom_call.1} parent=11 // pred_region
          _
        $region36: #{tpu_custom_call.1} parent=11 // pred_fallthru
          _
        // Predicated region
        $region37: #{tpu_custom_call.1} parent=11 // pred_check
          %p249 = pneg %p190
        $region38: #{tpu_custom_call.1} parent=11 // pred_check_branch
          %251 = sbr.rel (%p249) target = $region40
        $region39: #{tpu_custom_call.1} parent=11 // pred_region
          _
        $region40: #{tpu_custom_call.1} parent=11 // pred_fallthru
          _
      $region12: #{tpu_custom_call.1} parent=5 // pred_fallthru
        _
      %p252 = scmp.lt.s32.totalorder %s17, 2
      // Predicated region
      $region41: #{tpu_custom_call.1} parent=5 // pred_check
        %p253 = pneg %p252
      $region42: #{tpu_custom_call.1} parent=5 // pred_check_branch
        %255 = sbr.rel (%p253) target = $region44
      $region43: #{tpu_custom_call.1} parent=5 // pred_region
        // Predicated region
        $region45: #{tpu_custom_call.1} parent=43 // pred_check
          %p256 = pneg %p37
        $region46: #{tpu_custom_call.1} parent=43 // pred_check_branch
          %258 = sbr.rel (%p256) target = $region48
        $region47: #{tpu_custom_call.1} parent=43 // pred_region
          %p259 = scmp.lt.s32.totalorder %s17, 1
          %s260 = scalar_select %p259, %s17, 1
          %s261 = smul.addr %s260, 2
          %s262 = smul.addr %s261, 2
          %s263 = scalar_lea.vmem %s0, %s262
        $region48: #{tpu_custom_call.1} parent=43 // pred_fallthru
          _
      $region44: #{tpu_custom_call.1} parent=5 // pred_fallthru
        _
      %p264 = scmp.le.s32.totalorder 1, %s17
      %p265 = scmp.lt.s32.totalorder %s17, 3
      %p266 = pnand %p264, %p265
      %p267 = pneg %p266
      // Predicated region
      $region49: #{tpu_custom_call.1} parent=5 // pred_check
        _
      $region50: #{tpu_custom_call.1} parent=5 // pred_check_branch
        %269 = sbr.rel (%p266) target = $region52
      $region51: #{tpu_custom_call.1} parent=5 // pred_region
        %s270 = ssub.s32 %s17, 1
        %p271 = scmp.lt.s32.totalorder %s22, 1
        %s272 = scalar_select %p271, %s22, 1
        %s273 = smul.addr %s272, 2
        %s274 = smul.addr %s273, 2
        %s275 = scalar_lea.vmem %s0, %s274
        %p276 = pneg %p43
        %p277 = pneg %p40
        %p278 = pneg %p64
        %p279 = pneg %p61
        %p280 = pneg %p85
        %p281 = pneg %p82
        %p282 = pneg %p106
        %p283 = pneg %p103
        %p284 = pneg %p127
        %p285 = pneg %p124
        %p286 = pneg %p148
        %p287 = pneg %p145
        %p288 = pneg %p169
        %p289 = pneg %p166
        %p290 = pneg %p190
        %p291 = pneg %p187
        %p292 = pneg %p216
        %p293 = pneg %p213
        %s294 = sand.u32 %s203, 1
        %s295 = scalar_lea.sflag [#allocation5], %s294
        %s296 = sand.u32 %s203, 1
        %s297 = smul.addr %s296, 8
        %s298 = scalar_lea.vmem [#allocation4], %s297
        %p299 = scmp.lt.s32.totalorder %s22, 1
        %s300 = scalar_select %p299, %s22, 1
        %s301 = smul.addr %s300, 2
        %s302 = smul.addr %s301, 2
        %s303 = scalar_lea.vmem %s0, %s302
        %vm305 = vcmask 148480
        %306 = vst.msk [vmem:[#allocation2] sm:$0x3] %vm305, 0
        %vm307 = vcmask 550280
        %308 = vst.msk [vmem:[#allocation2 + $0x4] sm:$0x3] %vm307, 0
        %v309 = vld [vmem:[%s303] sm:$0x3]
        %311 = vrot.lane.b32.xlu0 %v309, 19
        %v312 = vpop.permute.xlu0 %311
        %vm314 = vcmask 279704
        %315 = vst.msk [vmem:[#allocation2] sm:$0x3] %vm314, %v312
        %vm316 = vcmask 296216
        %317 = vst.msk [vmem:[#allocation2] sm:$0x3] %vm316, 0
        %v318 = vld [vmem:[%s303] sm:$0x3]
        %320 = vrot.lane.b32.xlu0 %v318, 21
        %v321 = vpop.permute.xlu0 %320
        %vm323 = vcmask 427304
        %324 = vst.msk [vmem:[#allocation2] sm:$0x3] %vm323, %v321
        %vm325 = vcmask 443816
        %326 = vst.msk [vmem:[#allocation2] sm:$0x3] %vm325, 0
        %v327 = vld [vmem:[%s303] sm:$0x3]
        %329 = vrot.lane.b32.xlu0 %v327, 23
        %v330 = vpop.permute.xlu0 %329
        %vm332 = vcmask 574904
        %333 = vst.msk [vmem:[#allocation2] sm:$0x3] %vm332, %v330
        %vm334 = vcmask 591416
        %335 = vst.msk [vmem:[#allocation2] sm:$0x3] %vm334, 0
        %v336 = vld [vmem:[%s303] sm:$0x3]
        %338 = vrot.lane.b32.xlu0 %v336, 25
        %v339 = vpop.permute.xlu0 %338
        %vm341 = vcmask 722504
        %342 = vst.msk [vmem:[#allocation2] sm:$0x3] %vm341, %v339
        %vm343 = vcmask 739016
        %344 = vst.msk [vmem:[#allocation2] sm:$0x3] %vm343, 0
        %v345 = vld [vmem:[%s303] sm:$0x3]
        %347 = vrot.lane.b32.xlu0 %v345, 27
        %v348 = vpop.permute.xlu0 %347
        %vm350 = vcmask 870104
        %351 = vst.msk [vmem:[#allocation2] sm:$0x3] %vm350, %v348
        %vm352 = vcmask 886616
        %353 = vst.msk [vmem:[#allocation2] sm:$0x3] %vm352, 0
        %v354 = vld [vmem:[%s303] sm:$0x3]
        %356 = vrot.lane.b32.xlu0 %v354, 29
        %v357 = vpop.permute.xlu0 %356
        %vm359 = vcmask 1017704
        %360 = vst.msk [vmem:[#allocation2] sm:$0x3] %vm359, %v357
        %vm361 = vcmask 1034216
        %362 = vst.msk [vmem:[#allocation2] sm:$0x3] %vm361, 0
        %v363 = vld [vmem:[%s303] sm:$0x3]
        %365 = vrot.lane.b32.xlu0 %v363, 31
        %v366 = vpop.permute.xlu0 %365
        %v367 = vrot.slane %v366, 6
        %vm368 = vcmask 252928
        %v369 = vsel %vm368, %v367, %v366
        %vm371 = vcmask 1042424
        %vm372 = vcmask 117762
        %vm373 = vmor %vm372, %vm371
        %374 = vst.msk [vmem:[#allocation2] sm:$0xf] %vm373, %v369
        %vm375 = vcmask 132216
        %376 = vst.msk [vmem:[#allocation2 + $0x2] sm:$0x3] %vm375, 0
        %v377 = vld [vmem:[%s303] sm:$0x3]
        %379 = vrot.lane.b32.xlu0 %v377, 33
        %v380 = vpop.permute.xlu0 %379
        %vm382 = vcmask 263304
        %383 = vst.msk [vmem:[#allocation2 + $0x2] sm:$0x3] %vm382, %v380
        %vm384 = vcmask 279816
        %385 = vst.msk [vmem:[#allocation2 + $0x2] sm:$0x3] %vm384, 0
        %v386 = vld [vmem:[%s303 + $0x2] sm:$0x3]
        %388 = vrot.lane.b32.xlu0 %v386, 35
        %v389 = vpop.permute.xlu0 %388
        %vm391 = vcmask 410904
        %392 = vst.msk [vmem:[#allocation2 + $0x2] sm:$0x3] %vm391, %v389
        %vm393 = vcmask 427416
        %394 = vst.msk [vmem:[#allocation2 + $0x2] sm:$0x3] %vm393, 0
        %v395 = vld [vmem:[%s303 + $0x2] sm:$0x3]
        %397 = vrot.lane.b32.xlu0 %v395, 37
        %v398 = vpop.permute.xlu0 %397
        %vm400 = vcmask 558504
        %401 = vst.msk [vmem:[#allocation2 + $0x2] sm:$0x3] %vm400, %v398
        %vm402 = vcmask 575016
        %403 = vst.msk [vmem:[#allocation2 + $0x2] sm:$0x3] %vm402, 0
        %v404 = vld [vmem:[%s303 + $0x2] sm:$0x3]
        %406 = vrot.lane.b32.xlu0 %v404, 39
        %v407 = vpop.permute.xlu0 %406
        %vm409 = vcmask 706104
        %410 = vst.msk [vmem:[#allocation2 + $0x2] sm:$0x3] %vm409, %v407
        %vm411 = vcmask 722616
        %412 = vst.msk [vmem:[#allocation2 + $0x2] sm:$0x3] %vm411, 0
        %v413 = vld [vmem:[%s303 + $0x2] sm:$0x3]
        %415 = vrot.lane.b32.xlu0 %v413, 41
        %v416 = vpop.permute.xlu0 %415
        %vm418 = vcmask 853704
        %419 = vst.msk [vmem:[#allocation2 + $0x2] sm:$0x3] %vm418, %v416
        %vm420 = vcmask 870216
        %421 = vst.msk [vmem:[#allocation2 + $0x2] sm:$0x3] %vm420, 0
        %v422 = vld [vmem:[%s303 + $0x2] sm:$0x3]
        %424 = vrot.lane.b32.xlu0 %v422, 43
        %v425 = vpop.permute.xlu0 %424
        %vm427 = vcmask 1001304
        %428 = vst.msk [vmem:[#allocation2 + $0x2] sm:$0x3] %vm427, %v425
        %vm429 = vcmask 1017816
        %430 = vst.msk [vmem:[#allocation2 + $0x2] sm:$0x3] %vm429, 0
        %v431 = vld [vmem:[%s303 + $0x2] sm:$0x3]
        %433 = vrot.lane.b32.xlu0 %v431, 45
        %v434 = vpop.permute.xlu0 %433
        %v435 = vrot.slane %v434, 6
        %vm436 = vcmask 367616
        %v437 = vsel %vm436, %v435, %v434
        %vm439 = vcmask 1042408
        %vm440 = vcmask 101378
        %vm441 = vmor %vm440, %vm439
        %442 = vst.msk [vmem:[#allocation2 + $0x2] sm:$0xf] %vm441, %v437
        %vm443 = vcmask 115816
        %444 = vst.msk [vmem:[#allocation2 + $0x4] sm:$0x3] %vm443, 0
        %v445 = vld [vmem:[%s303 + $0x2] sm:$0x3]
        %447 = vrot.lane.b32.xlu0 %v445, 47
        %v448 = vpop.permute.xlu0 %447
        %vm450 = vcmask 246904
        %451 = vst.msk [vmem:[#allocation2 + $0x4] sm:$0x3] %vm450, %v448
        %vm452 = vcmask 263416
        %453 = vst.msk [vmem:[#allocation2 + $0x4] sm:$0x3] %vm452, 0
        %v454 = vld [vmem:[%s303 + $0x2] sm:$0x3]
        %456 = vrot.lane.b32.xlu0 %v454, 49
        %v457 = vpop.permute.xlu0 %456
        %vm459 = vcmask 394504
        %460 = vst.msk [vmem:[#allocation2 + $0x4] sm:$0x3] %vm459, %v457
        %v461 = vld [vmem:[#allocation2] sm:$0x3f]
        %v462 = vld [vmem:[%s2] sm:$0xf]
        %s463 = scalar_lea.vmem %s2, 4
        %v464 = vld [vmem:[%s463] sm:$0xf]
        %v466 = vcombine.high %v461, %v461
        %v468 = vunpack.c.l.s4 1983009808
        %v469 = vunpack.c.0.s8 %v468
        %v470 = vlaneseq
        %v471 = vshrl.u32 %v470, 7
        %v472 = vsub.s32 %v469, %v471
        %v473 = vrot.slane %v461, %v472
        %v475 = vunpack.c.l.s4 1983009808
        %v476 = vunpack.c.0.s8 %v475
        %v477 = vlaneseq
        %v478 = vshrl.u32 %v477, 7
        %v479 = vsub.s32 %v476, %v478
        %v480 = vrot.slane %v466, %v479
        %v481 = vcombine.high %v473, %v473
        %482 = vrot.lane.b32.xlu0 %v473, 127
        %v483 = vpop.permute.xlu0 %482
        %484 = vrot.lane.b32.xlu0 %v481, 127
        %v485 = vpop.permute.xlu0 %484
        %486 = vrot.lane.b32.xlu0 %v480, 127
        %v487 = vpop.permute.xlu0 %486
        %vm488 = vcmask 1039360
        %v489 = vsel %vm488, %v483, %v485
        %v490 = vsel %vm488, %v485, %v487
        %vm491 = vcmask 31744
        %v493 = vsel %vm491, %v464, 0
        %vm495 = vcmask 1041408
        %v497 = vsel %vm495, %v489, 0
        %v500 = vsel %vm495, %v490, 0
        %v503 = vsel %vm495, %v487, 0
        %505 = vmatprep.subr.bf16.mxu0 %v500
        %506 = vmatpush1.bf16.msra.mxu0 %v497
        %507 = vmatprep.subr.bf16.mxu0 0
        %508 = vmatpush1.bf16.msra.mxu0 0
        %509 = vmatprep.subr.bf16.mxu0 0
        %510 = vmatpush1.bf16.msra.mxu0 0
        %511 = vmatprep.subr.bf16.mxu0 0
        %512 = vmatpush1.bf16.msra.mxu0 0
        %513 = vmatprep.subr.bf16.mxu0 0
        %514 = vmatpush1.bf16.msra.mxu0 0
        %515 = vmatprep.subr.bf16.mxu0 0
        %516 = vmatpush1.bf16.msra.mxu0 0
        %517 = vmatprep.subr.bf16.mxu0 0
        %518 = vmatpush1.bf16.msra.mxu0 0
        %519 = vmatprep.subr.bf16.mxu0 0
        %520 = vmatpush1.bf16.msra.mxu0 0
        %521 = vmatprep.subr.bf16.mxu0 0
        %522 = vmatpush1.bf16.msra.mxu0 0
        %523 = vmatprep.subr.bf16.mxu0 0
        %524 = vmatpush1.bf16.msra.mxu0 0
        %525 = vmatprep.subr.bf16.mxu0 0
        %526 = vmatpush1.bf16.msra.mxu0 0
        %527 = vmatprep.subr.bf16.mxu0 0
        %528 = vmatpush1.bf16.msra.mxu0 0
        %529 = vmatprep.subr.bf16.mxu0 0
        %530 = vmatpush1.bf16.msra.mxu0 0
        %531 = vmatprep.subr.bf16.mxu0 0
        %532 = vmatpush1.bf16.msra.mxu0 0
        %533 = vmatprep.subr.bf16.mxu0 0
        %534 = vmatpush1.bf16.msra.mxu0 0
        %535 = vmatprep.subr.bf16.mxu0 0
        %536 = vmatpush1.bf16.msra.mxu0 0
        %537 = vmatprep.mubr.bf16.mxu0 0
        %538 = vmatmul.mubr.bf16.gmra.mrb[0].mxu0 %v493
        %v539 = vpop.f32.mrb[0].mxu0
        %v540 = vadd.f32 0.0, %v539
        %v541 = vpop.f32.mrb[0].mxu0
        %v542 = vadd.f32 0.0, %v541
        %v543 = vpop.f32.mrb[0].mxu0
        %v544 = vpop.f32.mrb[0].mxu0
        %545 = vdwg.mxu0
        %546 = vmatprep.subr.bf16.mxu0 0
        %547 = vmatpush1.bf16.msra.mxu0 %v503
        %548 = vmatprep.subr.bf16.mxu0 0
        %549 = vmatpush1.bf16.msra.mxu0 0
        %550 = vmatprep.subr.bf16.mxu0 0
        %551 = vmatpush1.bf16.msra.mxu0 0
        %552 = vmatprep.subr.bf16.mxu0 0
        %553 = vmatpush1.bf16.msra.mxu0 0
        %554 = vmatprep.subr.bf16.mxu0 0
        %555 = vmatpush1.bf16.msra.mxu0 0
        %556 = vmatprep.subr.bf16.mxu0 0
        %557 = vmatpush1.bf16.msra.mxu0 0
        %558 = vmatprep.subr.bf16.mxu0 0
        %559 = vmatpush1.bf16.msra.mxu0 0
        %560 = vmatprep.subr.bf16.mxu0 0
        %561 = vmatpush1.bf16.msra.mxu0 0
        %562 = vmatprep.subr.bf16.mxu0 0
        %563 = vmatpush1.bf16.msra.mxu0 0
        %564 = vmatprep.subr.bf16.mxu0 0
        %565 = vmatpush1.bf16.msra.mxu0 0
        %566 = vmatprep.subr.bf16.mxu0 0
        %567 = vmatpush1.bf16.msra.mxu0 0
        %568 = vmatprep.subr.bf16.mxu0 0
        %569 = vmatpush1.bf16.msra.mxu0 0
        %570 = vmatprep.subr.bf16.mxu0 0
        %571 = vmatpush1.bf16.msra.mxu0 0
        %572 = vmatprep.subr.bf16.mxu0 0
        %573 = vmatpush1.bf16.msra.mxu0 0
        %574 = vmatprep.subr.bf16.mxu0 0
        %575 = vmatpush1.bf16.msra.mxu0 0
        %576 = vmatprep.subr.bf16.mxu0 0
        %577 = vmatpush1.bf16.msra.mxu0 0
        %578 = vmatprep.mubr.bf16.mxu0 0
        %579 = vmatmul.mubr.bf16.gmra.mrb[0].mxu0 %v493
        %v580 = vpop.f32.mrb[0].mxu0
        %v581 = vadd.f32 0.0, %v580
        %v582 = vpop.f32.mrb[0].mxu0
        %v583 = vpop.f32.mrb[0].mxu0
        %v584 = vpop.f32.mrb[0].mxu0
        %585 = vdwg.mxu0
        %v587 = vsel %vm491, %v462, 0
        %v590 = vsel %vm495, %v473, 0
        %v593 = vsel %vm495, %v481, 0
        %v596 = vsel %vm495, %v480, 0
        %598 = vmatprep.subr.bf16.mxu0 %v593
        %599 = vmatpush1.bf16.msra.mxu0 %v590
        %600 = vmatprep.subr.bf16.mxu0 0
        %601 = vmatpush1.bf16.msra.mxu0 0
        %602 = vmatprep.subr.bf16.mxu0 0
        %603 = vmatpush1.bf16.msra.mxu0 0
        %604 = vmatprep.subr.bf16.mxu0 0
        %605 = vmatpush1.bf16.msra.mxu0 0
        %606 = vmatprep.subr.bf16.mxu0 0
        %607 = vmatpush1.bf16.msra.mxu0 0
        %608 = vmatprep.subr.bf16.mxu0 0
        %609 = vmatpush1.bf16.msra.mxu0 0
        %610 = vmatprep.subr.bf16.mxu0 0
        %611 = vmatpush1.bf16.msra.mxu0 0
        %612 = vmatprep.subr.bf16.mxu0 0
        %613 = vmatpush1.bf16.msra.mxu0 0
        %614 = vmatprep.subr.bf16.mxu0 0
        %615 = vmatpush1.bf16.msra.mxu0 0
        %616 = vmatprep.subr.bf16.mxu0 0
        %617 = vmatpush1.bf16.msra.mxu0 0
        %618 = vmatprep.subr.bf16.mxu0 0
        %619 = vmatpush1.bf16.msra.mxu0 0
        %620 = vmatprep.subr.bf16.mxu0 0
        %621 = vmatpush1.bf16.msra.mxu0 0
        %622 = vmatprep.subr.bf16.mxu0 0
        %623 = vmatpush1.bf16.msra.mxu0 0
        %624 = vmatprep.subr.bf16.mxu0 0
        %625 = vmatpush1.bf16.msra.mxu0 0
        %626 = vmatprep.subr.bf16.mxu0 0
        %627 = vmatpush1.bf16.msra.mxu0 0
        %628 = vmatprep.subr.bf16.mxu0 0
        %629 = vmatpush1.bf16.msra.mxu0 0
        %630 = vmatprep.mubr.bf16.mxu0 0
        %631 = vmatmul.mubr.bf16.gmra.mrb[0].mxu0 %v587
        %v632 = vpop.f32.mrb[0].mxu0
        %v633 = vadd.f32 %v540, %v632
        %v634 = vpop.f32.mrb[0].mxu0
        %v635 = vadd.f32 %v542, %v634
        %v636 = vpop.f32.mrb[0].mxu0
        %v637 = vpop.f32.mrb[0].mxu0
        %638 = vdwg.mxu0
        %639 = vmatprep.subr.bf16.mxu0 0
        %640 = vmatpush1.bf16.msra.mxu0 %v596
        %641 = vmatprep.subr.bf16.mxu0 0
        %642 = vmatpush1.bf16.msra.mxu0 0
        %643 = vmatprep.subr.bf16.mxu0 0
        %644 = vmatpush1.bf16.msra.mxu0 0
        %645 = vmatprep.subr.bf16.mxu0 0
        %646 = vmatpush1.bf16.msra.mxu0 0
        %647 = vmatprep.subr.bf16.mxu0 0
        %648 = vmatpush1.bf16.msra.mxu0 0
        %649 = vmatprep.subr.bf16.mxu0 0
        %650 = vmatpush1.bf16.msra.mxu0 0
        %651 = vmatprep.subr.bf16.mxu0 0
        %652 = vmatpush1.bf16.msra.mxu0 0
        %653 = vmatprep.subr.bf16.mxu0 0
        %654 = vmatpush1.bf16.msra.mxu0 0
        %655 = vmatprep.subr.bf16.mxu0 0
        %656 = vmatpush1.bf16.msra.mxu0 0
        %657 = vmatprep.subr.bf16.mxu0 0
        %658 = vmatpush1.bf16.msra.mxu0 0
        %659 = vmatprep.subr.bf16.mxu0 0
        %660 = vmatpush1.bf16.msra.mxu0 0
        %661 = vmatprep.subr.bf16.mxu0 0
        %662 = vmatpush1.bf16.msra.mxu0 0
        %663 = vmatprep.subr.bf16.mxu0 0
        %664 = vmatpush1.bf16.msra.mxu0 0
        %665 = vmatprep.subr.bf16.mxu0 0
        %666 = vmatpush1.bf16.msra.mxu0 0
        %667 = vmatprep.subr.bf16.mxu0 0
        %668 = vmatpush1.bf16.msra.mxu0 0
        %669 = vmatprep.subr.bf16.mxu0 0
        %670 = vmatpush1.bf16.msra.mxu0 0
        %671 = vmatprep.mubr.bf16.mxu0 0
        %672 = vmatmul.mubr.bf16.gmra.mrb[0].mxu0 %v587
        %v673 = vpop.f32.mrb[0].mxu0
        %v674 = vadd.f32 %v581, %v673
        %v675 = vpop.f32.mrb[0].mxu0
        %v676 = vpop.f32.mrb[0].mxu0
        %v677 = vpop.f32.mrb[0].mxu0
        %678 = vdwg.mxu0
        %v679 = vld [vmem:[#allocation2] sm:$0x3f]
        %s680 = scalar_lea.vmem %s2, 8
        %v681 = vld [vmem:[%s680] sm:$0xf]
        %v683 = vcombine.high %v679, %v679
        %v685 = vunpack.c.l.s4 1983009808
        %v686 = vunpack.c.0.s8 %v685
        %v687 = vlaneseq
        %v688 = vshrl.u32 %v687, 7
        %v689 = vsub.s32 %v686, %v688
        %v690 = vrot.slane %v679, %v689
        %v692 = vunpack.c.l.s4 1983009808
        %v693 = vunpack.c.0.s8 %v692
        %v694 = vlaneseq
        %v695 = vshrl.u32 %v694, 7
        %v696 = vsub.s32 %v693, %v695
        %v697 = vrot.slane %v683, %v696
        %v698 = vcombine.high %v690, %v690
        %699 = vrot.lane.b32.xlu0 %v690, 126
        %v700 = vpop.permute.xlu0 %699
        %701 = vrot.lane.b32.xlu0 %v698, 126
        %v702 = vpop.permute.xlu0 %701
        %703 = vrot.lane.b32.xlu0 %v697, 126
        %v704 = vpop.permute.xlu0 %703
        %vm705 = vcmask 1031168
        %v706 = vsel %vm705, %v700, %v702
        %v707 = vsel %vm705, %v702, %v704
        %v709 = vsel %vm491, %v681, 0
        %v712 = vsel %vm495, %v706, 0
        %v715 = vsel %vm495, %v707, 0
        %v718 = vsel %vm495, %v704, 0
        %720 = vmatprep.subr.bf16.mxu0 %v715
        %721 = vmatpush1.bf16.msra.mxu0 %v712
        %722 = vmatprep.subr.bf16.mxu0 0
        %723 = vmatpush1.bf16.msra.mxu0 0
        %724 = vmatprep.subr.bf16.mxu0 0
        %725 = vmatpush1.bf16.msra.mxu0 0
        %726 = vmatprep.subr.bf16.mxu0 0
        %727 = vmatpush1.bf16.msra.mxu0 0
        %728 = vmatprep.subr.bf16.mxu0 0
        %729 = vmatpush1.bf16.msra.mxu0 0
        %730 = vmatprep.subr.bf16.mxu0 0
        %731 = vmatpush1.bf16.msra.mxu0 0
        %732 = vmatprep.subr.bf16.mxu0 0
        %733 = vmatpush1.bf16.msra.mxu0 0
        %734 = vmatprep.subr.bf16.mxu0 0
        %735 = vmatpush1.bf16.msra.mxu0 0
        %736 = vmatprep.subr.bf16.mxu0 0
        %737 = vmatpush1.bf16.msra.mxu0 0
        %738 = vmatprep.subr.bf16.mxu0 0
        %739 = vmatpush1.bf16.msra.mxu0 0
        %740 = vmatprep.subr.bf16.mxu0 0
        %741 = vmatpush1.bf16.msra.mxu0 0
        %742 = vmatprep.subr.bf16.mxu0 0
        %743 = vmatpush1.bf16.msra.mxu0 0
        %744 = vmatprep.subr.bf16.mxu0 0
        %745 = vmatpush1.bf16.msra.mxu0 0
        %746 = vmatprep.subr.bf16.mxu0 0
        %747 = vmatpush1.bf16.msra.mxu0 0
        %748 = vmatprep.subr.bf16.mxu0 0
        %749 = vmatpush1.bf16.msra.mxu0 0
        %750 = vmatprep.subr.bf16.mxu0 0
        %751 = vmatpush1.bf16.msra.mxu0 0
        %752 = vmatprep.mubr.bf16.mxu0 0
        %753 = vmatmul.mubr.bf16.gmra.mrb[0].mxu0 %v709
        %v754 = vpop.f32.mrb[0].mxu0
        %v755 = vadd.f32 0.0, %v754
        %v756 = vpop.f32.mrb[0].mxu0
        %v757 = vadd.f32 0.0, %v756
        %v758 = vpop.f32.mrb[0].mxu0
        %v759 = vpop.f32.mrb[0].mxu0
        %760 = vdwg.mxu0
        %761 = vmatprep.subr.bf16.mxu0 0
        %762 = vmatpush1.bf16.msra.mxu0 %v718
        %763 = vmatprep.subr.bf16.mxu0 0
        %764 = vmatpush1.bf16.msra.mxu0 0
        %765 = vmatprep.subr.bf16.mxu0 0
        %766 = vmatpush1.bf16.msra.mxu0 0
        %767 = vmatprep.subr.bf16.mxu0 0
        %768 = vmatpush1.bf16.msra.mxu0 0
        %769 = vmatprep.subr.bf16.mxu0 0
        %770 = vmatpush1.bf16.msra.mxu0 0
        %771 = vmatprep.subr.bf16.mxu0 0
        %772 = vmatpush1.bf16.msra.mxu0 0
        %773 = vmatprep.subr.bf16.mxu0 0
        %774 = vmatpush1.bf16.msra.mxu0 0
        %775 = vmatprep.subr.bf16.mxu0 0
        %776 = vmatpush1.bf16.msra.mxu0 0
        %777 = vmatprep.subr.bf16.mxu0 0
        %778 = vmatpush1.bf16.msra.mxu0 0
        %779 = vmatprep.subr.bf16.mxu0 0
        %780 = vmatpush1.bf16.msra.mxu0 0
        %781 = vmatprep.subr.bf16.mxu0 0
        %782 = vmatpush1.bf16.msra.mxu0 0
        %783 = vmatprep.subr.bf16.mxu0 0
        %784 = vmatpush1.bf16.msra.mxu0 0
        %785 = vmatprep.subr.bf16.mxu0 0
        %786 = vmatpush1.bf16.msra.mxu0 0
        %787 = vmatprep.subr.bf16.mxu0 0
        %788 = vmatpush1.bf16.msra.mxu0 0
        %789 = vmatprep.subr.bf16.mxu0 0
        %790 = vmatpush1.bf16.msra.mxu0 0
        %791 = vmatprep.subr.bf16.mxu0 0
        %792 = vmatpush1.bf16.msra.mxu0 0
        %793 = vmatprep.mubr.bf16.mxu0 0
        %794 = vmatmul.mubr.bf16.gmra.mrb[0].mxu0 %v709
        %v795 = vpop.f32.mrb[0].mxu0
        %v796 = vadd.f32 0.0, %v795
        %v797 = vpop.f32.mrb[0].mxu0
        %v798 = vpop.f32.mrb[0].mxu0
        %v799 = vpop.f32.mrb[0].mxu0
        %800 = vdwg.mxu0
        %v801 = vadd.f32 %v633, %v755
        %v802 = vadd.f32 %v635, %v757
        %v803 = vadd.f32 %v674, %v796
        %v804 = vld [vmem:[#allocation2] sm:$0x3f]
        %s805 = scalar_lea.vmem %s2, 12
        %v806 = vld [vmem:[%s805] sm:$0xf]
        %v808 = vcombine.high %v804, %v804
        %v810 = vunpack.c.l.s4 1983009808
        %v811 = vunpack.c.0.s8 %v810
        %v812 = vlaneseq
        %v813 = vshrl.u32 %v812, 7
        %v814 = vsub.s32 %v811, %v813
        %v815 = vrot.slane %v804, %v814
        %v817 = vunpack.c.l.s4 1983009808
        %v818 = vunpack.c.0.s8 %v817
        %v819 = vlaneseq
        %v820 = vshrl.u32 %v819, 7
        %v821 = vsub.s32 %v818, %v820
        %v822 = vrot.slane %v808, %v821
        %v823 = vcombine.high %v815, %v815
        %824 = vrot.lane.b32.xlu0 %v815, 110
        %v825 = vpop.permute.xlu0 %824
        %826 = vrot.lane.b32.xlu0 %v823, 110
        %v827 = vpop.permute.xlu0 %826
        %828 = vrot.lane.b32.xlu0 %v822, 110
        %v829 = vpop.permute.xlu0 %828
        %vm830 = vcmask 900096
        %v831 = vsel %vm830, %v825, %v827
        %v832 = vsel %vm830, %v827, %v829
        %v834 = vsel %vm491, %v806, 0
        %v837 = vsel %vm495, %v831, 0
        %v840 = vsel %vm495, %v832, 0
        %v843 = vsel %vm495, %v829, 0
        %845 = vmatprep.subr.bf16.mxu0 %v840
        %846 = vmatpush1.bf16.msra.mxu0 %v837
        %847 = vmatprep.subr.bf16.mxu0 0
        %848 = vmatpush1.bf16.msra.mxu0 0
        %849 = vmatprep.subr.bf16.mxu0 0
        %850 = vmatpush1.bf16.msra.mxu0 0
        %851 = vmatprep.subr.bf16.mxu0 0
        %852 = vmatpush1.bf16.msra.mxu0 0
        %853 = vmatprep.subr.bf16.mxu0 0
        %854 = vmatpush1.bf16.msra.mxu0 0
        %855 = vmatprep.subr.bf16.mxu0 0
        %856 = vmatpush1.bf16.msra.mxu0 0
        %857 = vmatprep.subr.bf16.mxu0 0
        %858 = vmatpush1.bf16.msra.mxu0 0
        %859 = vmatprep.subr.bf16.mxu0 0
        %860 = vmatpush1.bf16.msra.mxu0 0
        %861 = vmatprep.subr.bf16.mxu0 0
        %862 = vmatpush1.bf16.msra.mxu0 0
        %863 = vmatprep.subr.bf16.mxu0 0
        %864 = vmatpush1.bf16.msra.mxu0 0
        %865 = vmatprep.subr.bf16.mxu0 0
        %866 = vmatpush1.bf16.msra.mxu0 0
        %867 = vmatprep.subr.bf16.mxu0 0
        %868 = vmatpush1.bf16.msra.mxu0 0
        %869 = vmatprep.subr.bf16.mxu0 0
        %870 = vmatpush1.bf16.msra.mxu0 0
        %871 = vmatprep.subr.bf16.mxu0 0
        %872 = vmatpush1.bf16.msra.mxu0 0
        %873 = vmatprep.subr.bf16.mxu0 0
        %874 = vmatpush1.bf16.msra.mxu0 0
        %875 = vmatprep.subr.bf16.mxu0 0
        %876 = vmatpush1.bf16.msra.mxu0 0
        %877 = vmatprep.mubr.bf16.mxu0 0
        %878 = vmatmul.mubr.bf16.gmra.mrb[0].mxu0 %v834
        %v879 = vpop.f32.mrb[0].mxu0
        %v880 = vadd.f32 0.0, %v879
        %v881 = vpop.f32.mrb[0].mxu0
        %v882 = vadd.f32 0.0, %v881
        %v883 = vpop.f32.mrb[0].mxu0
        %v884 = vpop.f32.mrb[0].mxu0
        %885 = vdwg.mxu0
        %886 = vmatprep.subr.bf16.mxu0 0
        %887 = vmatpush1.bf16.msra.mxu0 %v843
        %888 = vmatprep.subr.bf16.mxu0 0
        %889 = vmatpush1.bf16.msra.mxu0 0
        %890 = vmatprep.subr.bf16.mxu0 0
        %891 = vmatpush1.bf16.msra.mxu0 0
        %892 = vmatprep.subr.bf16.mxu0 0
        %893 = vmatpush1.bf16.msra.mxu0 0
        %894 = vmatprep.subr.bf16.mxu0 0
        %895 = vmatpush1.bf16.msra.mxu0 0
        %896 = vmatprep.subr.bf16.mxu0 0
        %897 = vmatpush1.bf16.msra.mxu0 0
        %898 = vmatprep.subr.bf16.mxu0 0
        %899 = vmatpush1.bf16.msra.mxu0 0
        %900 = vmatprep.subr.bf16.mxu0 0
        %901 = vmatpush1.bf16.msra.mxu0 0
        %902 = vmatprep.subr.bf16.mxu0 0
        %903 = vmatpush1.bf16.msra.mxu0 0
        %904 = vmatprep.subr.bf16.mxu0 0
        %905 = vmatpush1.bf16.msra.mxu0 0
        %906 = vmatprep.subr.bf16.mxu0 0
        %907 = vmatpush1.bf16.msra.mxu0 0
        %908 = vmatprep.subr.bf16.mxu0 0
        %909 = vmatpush1.bf16.msra.mxu0 0
        %910 = vmatprep.subr.bf16.mxu0 0
        %911 = vmatpush1.bf16.msra.mxu0 0
        %912 = vmatprep.subr.bf16.mxu0 0
        %913 = vmatpush1.bf16.msra.mxu0 0
        %914 = vmatprep.subr.bf16.mxu0 0
        %915 = vmatpush1.bf16.msra.mxu0 0
        %916 = vmatprep.subr.bf16.mxu0 0
        %917 = vmatpush1.bf16.msra.mxu0 0
        %918 = vmatprep.mubr.bf16.mxu0 0
        %919 = vmatmul.mubr.bf16.gmra.mrb[0].mxu0 %v834
        %v920 = vpop.f32.mrb[0].mxu0
        %v921 = vadd.f32 0.0, %v920
        %v922 = vpop.f32.mrb[0].mxu0
        %v923 = vpop.f32.mrb[0].mxu0
        %v924 = vpop.f32.mrb[0].mxu0
        %925 = vdwg.mxu0
        %v926 = vadd.f32 %v801, %v880
        %v927 = vadd.f32 %v802, %v882
        %v928 = vadd.f32 %v803, %v921
        %v929 = vld [vmem:[#allocation2] sm:$0x3f]
        %s930 = scalar_lea.vmem %s2, 16
        %v931 = vld [vmem:[%s930] sm:$0xf]
        %v933 = vcombine.high %v929, %v929
        %v935 = vunpack.c.l.s4 1983009808
        %v936 = vunpack.c.0.s8 %v935
        %v937 = vlaneseq
        %v938 = vshrl.u32 %v937, 7
        %v939 = vsub.s32 %v936, %v938
        %v940 = vrot.slane %v929, %v939
        %v942 = vunpack.c.l.s4 1983009808
        %v943 = vunpack.c.0.s8 %v942
        %v944 = vlaneseq
        %v945 = vshrl.u32 %v944, 7
        %v946 = vsub.s32 %v943, %v945
        %v947 = vrot.slane %v933, %v946
        %v948 = vcombine.high %v940, %v940
        %949 = vrot.lane.b32.xlu0 %v940, 109
        %v950 = vpop.permute.xlu0 %949
        %951 = vrot.lane.b32.xlu0 %v948, 109
        %v952 = vpop.permute.xlu0 %951
        %953 = vrot.lane.b32.xlu0 %v947, 109
        %v954 = vpop.permute.xlu0 %953
        %vm955 = vcmask 891904
        %v956 = vsel %vm955, %v950, %v952
        %v957 = vsel %vm955, %v952, %v954
        %v959 = vsel %vm491, %v931, 0
        %v962 = vsel %vm495, %v956, 0
        %v965 = vsel %vm495, %v957, 0
        %v968 = vsel %vm495, %v954, 0
        %970 = vmatprep.subr.bf16.mxu0 %v965
        %971 = vmatpush1.bf16.msra.mxu0 %v962
        %972 = vmatprep.subr.bf16.mxu0 0
        %973 = vmatpush1.bf16.msra.mxu0 0
        %974 = vmatprep.subr.bf16.mxu0 0
        %975 = vmatpush1.bf16.msra.mxu0 0
        %976 = vmatprep.subr.bf16.mxu0 0
        %977 = vmatpush1.bf16.msra.mxu0 0
        %978 = vmatprep.subr.bf16.mxu0 0
        %979 = vmatpush1.bf16.msra.mxu0 0
        %980 = vmatprep.subr.bf16.mxu0 0
        %981 = vmatpush1.bf16.msra.mxu0 0
        %982 = vmatprep.subr.bf16.mxu0 0
        %983 = vmatpush1.bf16.msra.mxu0 0
        %984 = vmatprep.subr.bf16.mxu0 0
        %985 = vmatpush1.bf16.msra.mxu0 0
        %986 = vmatprep.subr.bf16.mxu0 0
        %987 = vmatpush1.bf16.msra.mxu0 0
        %988 = vmatprep.subr.bf16.mxu0 0
        %989 = vmatpush1.bf16.msra.mxu0 0
        %990 = vmatprep.subr.bf16.mxu0 0
        %991 = vmatpush1.bf16.msra.mxu0 0
        %992 = vmatprep.subr.bf16.mxu0 0
        %993 = vmatpush1.bf16.msra.mxu0 0
        %994 = vmatprep.subr.bf16.mxu0 0
        %995 = vmatpush1.bf16.msra.mxu0 0
        %996 = vmatprep.subr.bf16.mxu0 0
        %997 = vmatpush1.bf16.msra.mxu0 0
        %998 = vmatprep.subr.bf16.mxu0 0
        %999 = vmatpush1.bf16.msra.mxu0 0
        %1000 = vmatprep.subr.bf16.mxu0 0
        %1001 = vmatpush1.bf16.msra.mxu0 0
        %1002 = vmatprep.mubr.bf16.mxu0 0
        %1003 = vmatmul.mubr.bf16.gmra.mrb[0].mxu0 %v959
        %v1004 = vpop.f32.mrb[0].mxu0
        %v1005 = vadd.f32 0.0, %v1004
        %v1006 = vpop.f32.mrb[0].mxu0
        %v1007 = vadd.f32 0.0, %v1006
        %v1008 = vpop.f32.mrb[0].mxu0
        %v1009 = vpop.f32.mrb[0].mxu0
        %1010 = vdwg.mxu0
        %1011 = vmatprep.subr.bf16.mxu0 0
        %1012 = vmatpush1.bf16.msra.mxu0 %v968
        %1013 = vmatprep.subr.bf16.mxu0 0
        %1014 = vmatpush1.bf16.msra.mxu0 0
        %1015 = vmatprep.subr.bf16.mxu0 0
        %1016 = vmatpush1.bf16.msra.mxu0 0
        %1017 = vmatprep.subr.bf16.mxu0 0
        %1018 = vmatpush1.bf16.msra.mxu0 0
        %1019 = vmatprep.subr.bf16.mxu0 0
        %1020 = vmatpush1.bf16.msra.mxu0 0
        %1021 = vmatprep.subr.bf16.mxu0 0
        %1022 = vmatpush1.bf16.msra.mxu0 0
        %1023 = vmatprep.subr.bf16.mxu0 0
        %1024 = vmatpush1.bf16.msra.mxu0 0
        %1025 = vmatprep.subr.bf16.mxu0 0
        %1026 = vmatpush1.bf16.msra.mxu0 0
        %1027 = vmatprep.subr.bf16.mxu0 0
        %1028 = vmatpush1.bf16.msra.mxu0 0
        %1029 = vmatprep.subr.bf16.mxu0 0
        %1030 = vmatpush1.bf16.msra.mxu0 0
        %1031 = vmatprep.subr.bf16.mxu0 0
        %1032 = vmatpush1.bf16.msra.mxu0 0
        %1033 = vmatprep.subr.bf16.mxu0 0
        %1034 = vmatpush1.bf16.msra.mxu0 0
        %1035 = vmatprep.subr.bf16.mxu0 0
        %1036 = vmatpush1.bf16.msra.mxu0 0
        %1037 = vmatprep.subr.bf16.mxu0 0
        %1038 = vmatpush1.bf16.msra.mxu0 0
        %1039 = vmatprep.subr.bf16.mxu0 0
        %1040 = vmatpush1.bf16.msra.mxu0 0
        %1041 = vmatprep.subr.bf16.mxu0 0
        %1042 = vmatpush1.bf16.msra.mxu0 0
        %1043 = vmatprep.mubr.bf16.mxu0 0
        %1044 = vmatmul.mubr.bf16.gmra.mrb[0].mxu0 %v959
        %v1045 = vpop.f32.mrb[0].mxu0
        %v1046 = vadd.f32 0.0, %v1045
        %v1047 = vpop.f32.mrb[0].mxu0
        %v1048 = vpop.f32.mrb[0].mxu0
        %v1049 = vpop.f32.mrb[0].mxu0
        %1050 = vdwg.mxu0
        %v1051 = vadd.f32 %v926, %v1005
        %v1052 = vadd.f32 %v927, %v1007
        %v1053 = vadd.f32 %v928, %v1046
        %v1054 = vld [vmem:[#allocation2] sm:$0x3f]
        %s1055 = scalar_lea.vmem %s2, 20
        %v1056 = vld [vmem:[%s1055] sm:$0xf]
        %v1058 = vcombine.high %v1054, %v1054
        %v1060 = vunpack.c.l.s4 1983009808
        %v1061 = vunpack.c.0.s8 %v1060
        %v1062 = vlaneseq
        %v1063 = vshrl.u32 %v1062, 7
        %v1064 = vsub.s32 %v1061, %v1063
        %v1065 = vrot.slane %v1054, %v1064
        %v1067 = vunpack.c.l.s4 1983009808
        %v1068 = vunpack.c.0.s8 %v1067
        %v1069 = vlaneseq
        %v1070 = vshrl.u32 %v1069, 7
        %v1071 = vsub.s32 %v1068, %v1070
        %v1072 = vrot.slane %v1058, %v1071
        %v1073 = vcombine.high %v1065, %v1065
        %1074 = vrot.lane.b32.xlu0 %v1065, 108
        %v1075 = vpop.permute.xlu0 %1074
        %1076 = vrot.lane.b32.xlu0 %v1073, 108
        %v1077 = vpop.permute.xlu0 %1076
        %1078 = vrot.lane.b32.xlu0 %v1072, 108
        %v1079 = vpop.permute.xlu0 %1078
        %vm1080 = vcmask 883712
        %v1081 = vsel %vm1080, %v1075, %v1077
        %v1082 = vsel %vm1080, %v1077, %v1079
        %v1084 = vsel %vm491, %v1056, 0
        %v1087 = vsel %vm495, %v1081, 0
        %v1090 = vsel %vm495, %v1082, 0
        %v1093 = vsel %vm495, %v1079, 0
        %1095 = vmatprep.subr.bf16.mxu0 %v1090
        %1096 = vmatpush1.bf16.msra.mxu0 %v1087
        %1097 = vmatprep.subr.bf16.mxu0 0
        %1098 = vmatpush1.bf16.msra.mxu0 0
        %1099 = vmatprep.subr.bf16.mxu0 0
        %1100 = vmatpush1.bf16.msra.mxu0 0
        %1101 = vmatprep.subr.bf16.mxu0 0
        %1102 = vmatpush1.bf16.msra.mxu0 0
        %1103 = vmatprep.subr.bf16.mxu0 0
        %1104 = vmatpush1.bf16.msra.mxu0 0
        %1105 = vmatprep.subr.bf16.mxu0 0
        %1106 = vmatpush1.bf16.msra.mxu0 0
        %1107 = vmatprep.subr.bf16.mxu0 0
        %1108 = vmatpush1.bf16.msra.mxu0 0
        %1109 = vmatprep.subr.bf16.mxu0 0
        %1110 = vmatpush1.bf16.msra.mxu0 0
        %1111 = vmatprep.subr.bf16.mxu0 0
        %1112 = vmatpush1.bf16.msra.mxu0 0
        %1113 = vmatprep.subr.bf16.mxu0 0
        %1114 = vmatpush1.bf16.msra.mxu0 0
        %1115 = vmatprep.subr.bf16.mxu0 0
        %1116 = vmatpush1.bf16.msra.mxu0 0
        %1117 = vmatprep.subr.bf16.mxu0 0
        %1118 = vmatpush1.bf16.msra.mxu0 0
        %1119 = vmatprep.subr.bf16.mxu0 0
        %1120 = vmatpush1.bf16.msra.mxu0 0
        %1121 = vmatprep.subr.bf16.mxu0 0
        %1122 = vmatpush1.bf16.msra.mxu0 0
        %1123 = vmatprep.subr.bf16.mxu0 0
        %1124 = vmatpush1.bf16.msra.mxu0 0
        %1125 = vmatprep.subr.bf16.mxu0 0
        %1126 = vmatpush1.bf16.msra.mxu0 0
        %1127 = vmatprep.mubr.bf16.mxu0 0
        %1128 = vmatmul.mubr.bf16.gmra.mrb[0].mxu0 %v1084
        %v1129 = vpop.f32.mrb[0].mxu0
        %v1130 = vadd.f32 0.0, %v1129
        %v1131 = vpop.f32.mrb[0].mxu0
        %v1132 = vadd.f32 0.0, %v1131
        %v1133 = vpop.f32.mrb[0].mxu0
        %v1134 = vpop.f32.mrb[0].mxu0
        %1135 = vdwg.mxu0
        %1136 = vmatprep.subr.bf16.mxu0 0
        %1137 = vmatpush1.bf16.msra.mxu0 %v1093
        %1138 = vmatprep.subr.bf16.mxu0 0
        %1139 = vmatpush1.bf16.msra.mxu0 0
        %1140 = vmatprep.subr.bf16.mxu0 0
        %1141 = vmatpush1.bf16.msra.mxu0 0
        %1142 = vmatprep.subr.bf16.mxu0 0
        %1143 = vmatpush1.bf16.msra.mxu0 0
        %1144 = vmatprep.subr.bf16.mxu0 0
        %1145 = vmatpush1.bf16.msra.mxu0 0
        %1146 = vmatprep.subr.bf16.mxu0 0
        %1147 = vmatpush1.bf16.msra.mxu0 0
        %1148 = vmatprep.subr.bf16.mxu0 0
        %1149 = vmatpush1.bf16.msra.mxu0 0
        %1150 = vmatprep.subr.bf16.mxu0 0
        %1151 = vmatpush1.bf16.msra.mxu0 0
        %1152 = vmatprep.subr.bf16.mxu0 0
        %1153 = vmatpush1.bf16.msra.mxu0 0
        %1154 = vmatprep.subr.bf16.mxu0 0
        %1155 = vmatpush1.bf16.msra.mxu0 0
        %1156 = vmatprep.subr.bf16.mxu0 0
        %1157 = vmatpush1.bf16.msra.mxu0 0
        %1158 = vmatprep.subr.bf16.mxu0 0
        %1159 = vmatpush1.bf16.msra.mxu0 0
        %1160 = vmatprep.subr.bf16.mxu0 0
        %1161 = vmatpush1.bf16.msra.mxu0 0
        %1162 = vmatprep.subr.bf16.mxu0 0
        %1163 = vmatpush1.bf16.msra.mxu0 0
        %1164 = vmatprep.subr.bf16.mxu0 0
        %1165 = vmatpush1.bf16.msra.mxu0 0
        %1166 = vmatprep.subr.bf16.mxu0 0
        %1167 = vmatpush1.bf16.msra.mxu0 0
        %1168 = vmatprep.mubr.bf16.mxu0 0
        %1169 = vmatmul.mubr.bf16.gmra.mrb[0].mxu0 %v1084
        %v1170 = vpop.f32.mrb[0].mxu0
        %v1171 = vadd.f32 0.0, %v1170
        %v1172 = vpop.f32.mrb[0].mxu0
        %v1173 = vpop.f32.mrb[0].mxu0
        %v1174 = vpop.f32.mrb[0].mxu0
        %1175 = vdwg.mxu0
        %v1176 = vadd.f32 %v1051, %v1130
        %v1177 = vadd.f32 %v1052, %v1132
        %v1178 = vadd.f32 %v1053, %v1171
        %v1179 = vld [vmem:[#allocation2] sm:$0x3f]
        %s1180 = scalar_lea.vmem %s2, 24
        %v1181 = vld [vmem:[%s1180] sm:$0xf]
        %v1183 = vcombine.high %v1179, %v1179
        %v1185 = vunpack.c.l.s4 1983009808
        %v1186 = vunpack.c.0.s8 %v1185
        %v1187 = vlaneseq
        %v1188 = vshrl.u32 %v1187, 7
        %v1189 = vsub.s32 %v1186, %v1188
        %v1190 = vrot.slane %v1179, %v1189
        %v1192 = vunpack.c.l.s4 1983009808
        %v1193 = vunpack.c.0.s8 %v1192
        %v1194 = vlaneseq
        %v1195 = vshrl.u32 %v1194, 7
        %v1196 = vsub.s32 %v1193, %v1195
        %v1197 = vrot.slane %v1183, %v1196
        %v1198 = vcombine.high %v1190, %v1190
        %1199 = vrot.lane.b32.xlu0 %v1190, 92
        %v1200 = vpop.permute.xlu0 %1199
        %1201 = vrot.lane.b32.xlu0 %v1198, 92
        %v1202 = vpop.permute.xlu0 %1201
        %1203 = vrot.lane.b32.xlu0 %v1197, 92
        %v1204 = vpop.permute.xlu0 %1203
        %vm1205 = vcmask 752640
        %v1206 = vsel %vm1205, %v1200, %v1202
        %v1207 = vsel %vm1205, %v1202, %v1204
        %v1209 = vsel %vm491, %v1181, 0
        %v1212 = vsel %vm495, %v1206, 0
        %v1215 = vsel %vm495, %v1207, 0
        %v1218 = vsel %vm495, %v1204, 0
        %1220 = vmatprep.subr.bf16.mxu0 %v1215
        %1221 = vmatpush1.bf16.msra.mxu0 %v1212
        %1222 = vmatprep.subr.bf16.mxu0 0
        %1223 = vmatpush1.bf16.msra.mxu0 0
        %1224 = vmatprep.subr.bf16.mxu0 0
        %1225 = vmatpush1.bf16.msra.mxu0 0
        %1226 = vmatprep.subr.bf16.mxu0 0
        %1227 = vmatpush1.bf16.msra.mxu0 0
        %1228 = vmatprep.subr.bf16.mxu0 0
        %1229 = vmatpush1.bf16.msra.mxu0 0
        %1230 = vmatprep.subr.bf16.mxu0 0
        %1231 = vmatpush1.bf16.msra.mxu0 0
        %1232 = vmatprep.subr.bf16.mxu0 0
        %1233 = vmatpush1.bf16.msra.mxu0 0
        %1234 = vmatprep.subr.bf16.mxu0 0
        %1235 = vmatpush1.bf16.msra.mxu0 0
        %1236 = vmatprep.subr.bf16.mxu0 0
        %1237 = vmatpush1.bf16.msra.mxu0 0
        %1238 = vmatprep.subr.bf16.mxu0 0
        %1239 = vmatpush1.bf16.msra.mxu0 0
        %1240 = vmatprep.subr.bf16.mxu0 0
        %1241 = vmatpush1.bf16.msra.mxu0 0
        %1242 = vmatprep.subr.bf16.mxu0 0
        %1243 = vmatpush1.bf16.msra.mxu0 0
        %1244 = vmatprep.subr.bf16.mxu0 0
        %1245 = vmatpush1.bf16.msra.mxu0 0
        %1246 = vmatprep.subr.bf16.mxu0 0
        %1247 = vmatpush1.bf16.msra.mxu0 0
        %1248 = vmatprep.subr.bf16.mxu0 0
        %1249 = vmatpush1.bf16.msra.mxu0 0
        %1250 = vmatprep.subr.bf16.mxu0 0
        %1251 = vmatpush1.bf16.msra.mxu0 0
        %1252 = vmatprep.mubr.bf16.mxu0 0
        %1253 = vmatmul.mubr.bf16.gmra.mrb[0].mxu0 %v1209
        %v1254 = vpop.f32.mrb[0].mxu0
        %v1255 = vadd.f32 0.0, %v1254
        %v1256 = vpop.f32.mrb[0].mxu0
        %v1257 = vadd.f32 0.0, %v1256
        %v1258 = vpop.f32.mrb[0].mxu0
        %v1259 = vpop.f32.mrb[0].mxu0
        %1260 = vdwg.mxu0
        %1261 = vmatprep.subr.bf16.mxu0 0
        %1262 = vmatpush1.bf16.msra.mxu0 %v1218
        %1263 = vmatprep.subr.bf16.mxu0 0
        %1264 = vmatpush1.bf16.msra.mxu0 0
        %1265 = vmatprep.subr.bf16.mxu0 0
        %1266 = vmatpush1.bf16.msra.mxu0 0
        %1267 = vmatprep.subr.bf16.mxu0 0
        %1268 = vmatpush1.bf16.msra.mxu0 0
        %1269 = vmatprep.subr.bf16.mxu0 0
        %1270 = vmatpush1.bf16.msra.mxu0 0
        %1271 = vmatprep.subr.bf16.mxu0 0
        %1272 = vmatpush1.bf16.msra.mxu0 0
        %1273 = vmatprep.subr.bf16.mxu0 0
        %1274 = vmatpush1.bf16.msra.mxu0 0
        %1275 = vmatprep.subr.bf16.mxu0 0
        %1276 = vmatpush1.bf16.msra.mxu0 0
        %1277 = vmatprep.subr.bf16.mxu0 0
        %1278 = vmatpush1.bf16.msra.mxu0 0
        %1279 = vmatprep.subr.bf16.mxu0 0
        %1280 = vmatpush1.bf16.msra.mxu0 0
        %1281 = vmatprep.subr.bf16.mxu0 0
        %1282 = vmatpush1.bf16.msra.mxu0 0
        %1283 = vmatprep.subr.bf16.mxu0 0
        %1284 = vmatpush1.bf16.msra.mxu0 0
        %1285 = vmatprep.subr.bf16.mxu0 0
        %1286 = vmatpush1.bf16.msra.mxu0 0
        %1287 = vmatprep.subr.bf16.mxu0 0
        %1288 = vmatpush1.bf16.msra.mxu0 0
        %1289 = vmatprep.subr.bf16.mxu0 0
        %1290 = vmatpush1.bf16.msra.mxu0 0
        %1291 = vmatprep.subr.bf16.mxu0 0
        %1292 = vmatpush1.bf16.msra.mxu0 0
        %1293 = vmatprep.mubr.bf16.mxu0 0
        %1294 = vmatmul.mubr.bf16.gmra.mrb[0].mxu0 %v1209
        %v1295 = vpop.f32.mrb[0].mxu0
        %v1296 = vadd.f32 0.0, %v1295
        %v1297 = vpop.f32.mrb[0].mxu0
        %v1298 = vpop.f32.mrb[0].mxu0
        %v1299 = vpop.f32.mrb[0].mxu0
        %1300 = vdwg.mxu0
        %v1301 = vadd.f32 %v1176, %v1255
        %v1302 = vadd.f32 %v1177, %v1257
        %v1303 = vadd.f32 %v1178, %v1296
        %v1304 = vld [vmem:[#allocation2] sm:$0x3f]
        %s1305 = scalar_lea.vmem %s2, 28
        %v1306 = vld [vmem:[%s1305] sm:$0xf]
        %v1308 = vcombine.high %v1304, %v1304
        %v1310 = vunpack.c.l.s4 1983009808
        %v1311 = vunpack.c.0.s8 %v1310
        %v1312 = vlaneseq
        %v1313 = vshrl.u32 %v1312, 7
        %v1314 = vsub.s32 %v1311, %v1313
        %v1315 = vrot.slane %v1304, %v1314
        %v1317 = vunpack.c.l.s4 1983009808
        %v1318 = vunpack.c.0.s8 %v1317
        %v1319 = vlaneseq
        %v1320 = vshrl.u32 %v1319, 7
        %v1321 = vsub.s32 %v1318, %v1320
        %v1322 = vrot.slane %v1308, %v1321
        %v1323 = vcombine.high %v1315, %v1315
        %1324 = vrot.lane.b32.xlu0 %v1315, 91
        %v1325 = vpop.permute.xlu0 %1324
        %1326 = vrot.lane.b32.xlu0 %v1323, 91
        %v1327 = vpop.permute.xlu0 %1326
        %1328 = vrot.lane.b32.xlu0 %v1322, 91
        %v1329 = vpop.permute.xlu0 %1328
        %vm1330 = vcmask 744448
        %v1331 = vsel %vm1330, %v1325, %v1327
        %v1332 = vsel %vm1330, %v1327, %v1329
        %v1334 = vsel %vm491, %v1306, 0
        %v1337 = vsel %vm495, %v1331, 0
        %v1340 = vsel %vm495, %v1332, 0
        %v1343 = vsel %vm495, %v1329, 0
        %1345 = vmatprep.subr.bf16.mxu0 %v1340
        %1346 = vmatpush1.bf16.msra.mxu0 %v1337
        %1347 = vmatprep.subr.bf16.mxu0 0
        %1348 = vmatpush1.bf16.msra.mxu0 0
        %1349 = vmatprep.subr.bf16.mxu0 0
        %1350 = vmatpush1.bf16.msra.mxu0 0
        %1351 = vmatprep.subr.bf16.mxu0 0
        %1352 = vmatpush1.bf16.msra.mxu0 0
        %1353 = vmatprep.subr.bf16.mxu0 0
        %1354 = vmatpush1.bf16.msra.mxu0 0
        %1355 = vmatprep.subr.bf16.mxu0 0
        %1356 = vmatpush1.bf16.msra.mxu0 0
        %1357 = vmatprep.subr.bf16.mxu0 0
        %1358 = vmatpush1.bf16.msra.mxu0 0
        %1359 = vmatprep.subr.bf16.mxu0 0
        %1360 = vmatpush1.bf16.msra.mxu0 0
        %1361 = vmatprep.subr.bf16.mxu0 0
        %1362 = vmatpush1.bf16.msra.mxu0 0
        %1363 = vmatprep.subr.bf16.mxu0 0
        %1364 = vmatpush1.bf16.msra.mxu0 0
        %1365 = vmatprep.subr.bf16.mxu0 0
        %1366 = vmatpush1.bf16.msra.mxu0 0
        %1367 = vmatprep.subr.bf16.mxu0 0
        %1368 = vmatpush1.bf16.msra.mxu0 0
        %1369 = vmatprep.subr.bf16.mxu0 0
        %1370 = vmatpush1.bf16.msra.mxu0 0
        %1371 = vmatprep.subr.bf16.mxu0 0
        %1372 = vmatpush1.bf16.msra.mxu0 0
        %1373 = vmatprep.subr.bf16.mxu0 0
        %1374 = vmatpush1.bf16.msra.mxu0 0
        %1375 = vmatprep.subr.bf16.mxu0 0
        %1376 = vmatpush1.bf16.msra.mxu0 0
        %1377 = vmatprep.mubr.bf16.mxu0 0
        %1378 = vmatmul.mubr.bf16.gmra.mrb[0].mxu0 %v1334
        %v1379 = vpop.f32.mrb[0].mxu0
        %v1380 = vadd.f32 0.0, %v1379
        %v1381 = vpop.f32.mrb[0].mxu0
        %v1382 = vadd.f32 0.0, %v1381
        %v1383 = vpop.f32.mrb[0].mxu0
        %v1384 = vpop.f32.mrb[0].mxu0
        %1385 = vdwg.mxu0
        %1386 = vmatprep.subr.bf16.mxu0 0
        %1387 = vmatpush1.bf16.msra.mxu0 %v1343
        %1388 = vmatprep.subr.bf16.mxu0 0
        %1389 = vmatpush1.bf16.msra.mxu0 0
        %1390 = vmatprep.subr.bf16.mxu0 0
        %1391 = vmatpush1.bf16.msra.mxu0 0
        %1392 = vmatprep.subr.bf16.mxu0 0
        %1393 = vmatpush1.bf16.msra.mxu0 0
        %1394 = vmatprep.subr.bf16.mxu0 0
        %1395 = vmatpush1.bf16.msra.mxu0 0
        %1396 = vmatprep.subr.bf16.mxu0 0
        %1397 = vmatpush1.bf16.msra.mxu0 0
        %1398 = vmatprep.subr.bf16.mxu0 0
        %1399 = vmatpush1.bf16.msra.mxu0 0
        %1400 = vmatprep.subr.bf16.mxu0 0
        %1401 = vmatpush1.bf16.msra.mxu0 0
        %1402 = vmatprep.subr.bf16.mxu0 0
        %1403 = vmatpush1.bf16.msra.mxu0 0
        %1404 = vmatprep.subr.bf16.mxu0 0
        %1405 = vmatpush1.bf16.msra.mxu0 0
        %1406 = vmatprep.subr.bf16.mxu0 0
        %1407 = vmatpush1.bf16.msra.mxu0 0
        %1408 = vmatprep.subr.bf16.mxu0 0
        %1409 = vmatpush1.bf16.msra.mxu0 0
        %1410 = vmatprep.subr.bf16.mxu0 0
        %1411 = vmatpush1.bf16.msra.mxu0 0
        %1412 = vmatprep.subr.bf16.mxu0 0
        %1413 = vmatpush1.bf16.msra.mxu0 0
        %1414 = vmatprep.subr.bf16.mxu0 0
        %1415 = vmatpush1.bf16.msra.mxu0 0
        %1416 = vmatprep.subr.bf16.mxu0 0
        %1417 = vmatpush1.bf16.msra.mxu0 0
        %1418 = vmatprep.mubr.bf16.mxu0 0
        %1419 = vmatmul.mubr.bf16.gmra.mrb[0].mxu0 %v1334
        %v1420 = vpop.f32.mrb[0].mxu0
        %v1421 = vadd.f32 0.0, %v1420
        %v1422 = vpop.f32.mrb[0].mxu0
        %v1423 = vpop.f32.mrb[0].mxu0
        %v1424 = vpop.f32.mrb[0].mxu0
        %1425 = vdwg.mxu0
        %v1426 = vadd.f32 %v1301, %v1380
        %v1427 = vadd.f32 %v1302, %v1382
        %v1428 = vadd.f32 %v1303, %v1421
        %v1429 = vld [vmem:[#allocation2] sm:$0x3f]
        %s1430 = scalar_lea.vmem %s2, 32
        %v1431 = vld [vmem:[%s1430] sm:$0xf]
        %v1433 = vcombine.high %v1429, %v1429
        %v1435 = vunpack.c.l.s4 1983009808
        %v1436 = vunpack.c.0.s8 %v1435
        %v1437 = vlaneseq
        %v1438 = vshrl.u32 %v1437, 7
        %v1439 = vsub.s32 %v1436, %v1438
        %v1440 = vrot.slane %v1429, %v1439
        %v1442 = vunpack.c.l.s4 1983009808
        %v1443 = vunpack.c.0.s8 %v1442
        %v1444 = vlaneseq
        %v1445 = vshrl.u32 %v1444, 7
        %v1446 = vsub.s32 %v1443, %v1445
        %v1447 = vrot.slane %v1433, %v1446
        %v1448 = vcombine.high %v1440, %v1440
        %1449 = vrot.lane.b32.xlu0 %v1440, 90
        %v1450 = vpop.permute.xlu0 %1449
        %1451 = vrot.lane.b32.xlu0 %v1448, 90
        %v1452 = vpop.permute.xlu0 %1451
        %1453 = vrot.lane.b32.xlu0 %v1447, 90
        %v1454 = vpop.permute.xlu0 %1453
        %vm1455 = vcmask 736256
        %v1456 = vsel %vm1455, %v1450, %v1452
        %v1457 = vsel %vm1455, %v1452, %v1454
        %v1459 = vsel %vm491, %v1431, 0
        %v1462 = vsel %vm495, %v1456, 0
        %v1465 = vsel %vm495, %v1457, 0
        %v1468 = vsel %vm495, %v1454, 0
        %1470 = vmatprep.subr.bf16.mxu0 %v1465
        %1471 = vmatpush1.bf16.msra.mxu0 %v1462
        %1472 = vmatprep.subr.bf16.mxu0 0
        %1473 = vmatpush1.bf16.msra.mxu0 0
        %1474 = vmatprep.subr.bf16.mxu0 0
        %1475 = vmatpush1.bf16.msra.mxu0 0
        %1476 = vmatprep.subr.bf16.mxu0 0
        %1477 = vmatpush1.bf16.msra.mxu0 0
        %1478 = vmatprep.subr.bf16.mxu0 0
        %1479 = vmatpush1.bf16.msra.mxu0 0
        %1480 = vmatprep.subr.bf16.mxu0 0
        %1481 = vmatpush1.bf16.msra.mxu0 0
        %1482 = vmatprep.subr.bf16.mxu0 0
        %1483 = vmatpush1.bf16.msra.mxu0 0
        %1484 = vmatprep.subr.bf16.mxu0 0
        %1485 = vmatpush1.bf16.msra.mxu0 0
        %1486 = vmatprep.subr.bf16.mxu0 0
        %1487 = vmatpush1.bf16.msra.mxu0 0
        %1488 = vmatprep.subr.bf16.mxu0 0
        %1489 = vmatpush1.bf16.msra.mxu0 0
        %1490 = vmatprep.subr.bf16.mxu0 0
        %1491 = vmatpush1.bf16.msra.mxu0 0
        %1492 = vmatprep.subr.bf16.mxu0 0
        %1493 = vmatpush1.bf16.msra.mxu0 0
        %1494 = vmatprep.subr.bf16.mxu0 0
        %1495 = vmatpush1.bf16.msra.mxu0 0
        %1496 = vmatprep.subr.bf16.mxu0 0
        %1497 = vmatpush1.bf16.msra.mxu0 0
        %1498 = vmatprep.subr.bf16.mxu0 0
        %1499 = vmatpush1.bf16.msra.mxu0 0
        %1500 = vmatprep.subr.bf16.mxu0 0
        %1501 = vmatpush1.bf16.msra.mxu0 0
        %1502 = vmatprep.mubr.bf16.mxu0 0
        %1503 = vmatmul.mubr.bf16.gmra.mrb[0].mxu0 %v1459
        %v1504 = vpop.f32.mrb[0].mxu0
        %v1505 = vadd.f32 0.0, %v1504
        %v1506 = vpop.f32.mrb[0].mxu0
        %v1507 = vadd.f32 0.0, %v1506
        %v1508 = vpop.f32.mrb[0].mxu0
        %v1509 = vpop.f32.mrb[0].mxu0
        %1510 = vdwg.mxu0
        %1511 = vmatprep.subr.bf16.mxu0 0
        %1512 = vmatpush1.bf16.msra.mxu0 %v1468
        %1513 = vmatprep.subr.bf16.mxu0 0
        %1514 = vmatpush1.bf16.msra.mxu0 0
        %1515 = vmatprep.subr.bf16.mxu0 0
        %1516 = vmatpush1.bf16.msra.mxu0 0
        %1517 = vmatprep.subr.bf16.mxu0 0
        %1518 = vmatpush1.bf16.msra.mxu0 0
        %1519 = vmatprep.subr.bf16.mxu0 0
        %1520 = vmatpush1.bf16.msra.mxu0 0
        %1521 = vmatprep.subr.bf16.mxu0 0
        %1522 = vmatpush1.bf16.msra.mxu0 0
        %1523 = vmatprep.subr.bf16.mxu0 0
        %1524 = vmatpush1.bf16.msra.mxu0 0
        %1525 = vmatprep.subr.bf16.mxu0 0
        %1526 = vmatpush1.bf16.msra.mxu0 0
        %1527 = vmatprep.subr.bf16.mxu0 0
        %1528 = vmatpush1.bf16.msra.mxu0 0
        %1529 = vmatprep.subr.bf16.mxu0 0
        %1530 = vmatpush1.bf16.msra.mxu0 0
        %1531 = vmatprep.subr.bf16.mxu0 0
        %1532 = vmatpush1.bf16.msra.mxu0 0
        %1533 = vmatprep.subr.bf16.mxu0 0
        %1534 = vmatpush1.bf16.msra.mxu0 0
        %1535 = vmatprep.subr.bf16.mxu0 0
        %1536 = vmatpush1.bf16.msra.mxu0 0
        %1537 = vmatprep.subr.bf16.mxu0 0
        %1538 = vmatpush1.bf16.msra.mxu0 0
        %1539 = vmatprep.subr.bf16.mxu0 0
        %1540 = vmatpush1.bf16.msra.mxu0 0
        %1541 = vmatprep.subr.bf16.mxu0 0
        %1542 = vmatpush1.bf16.msra.mxu0 0
        %1543 = vmatprep.mubr.bf16.mxu0 0
        %1544 = vmatmul.mubr.bf16.gmra.mrb[0].mxu0 %v1459
        %v1545 = vpop.f32.mrb[0].mxu0
        %v1546 = vadd.f32 0.0, %v1545
        %v1547 = vpop.f32.mrb[0].mxu0
        %v1548 = vpop.f32.mrb[0].mxu0
        %v1549 = vpop.f32.mrb[0].mxu0
        %1550 = vdwg.mxu0
        %v1551 = vadd.f32 %v1426, %v1505
        %v1552 = vadd.f32 %v1427, %v1507
        %v1553 = vadd.f32 %v1428, %v1546
        %v1554 = vld [vmem:[%s3] sm:$0xff]
        %1556 = vset.pattern.permute.xlu0 0
        %1557 = vperm.xlu0 %1556, %v1554
        %v1558 = vpop.permute.xlu0 %1557
        %v1560 = vadd.f32 %v1551, %v1558
        %v1561 = vadd.f32 %v1552, %v1558
        %v1562 = vadd.f32 %v1553, %v1558
        %v1563 = vmax.f32 %v1560, 0.0
        %v1564 = vmax.f32 %v1561, 0.0
        %v1565 = vmax.f32 %v1562, 0.0
        %v1566 = vld [vmem:[%s1] sm:$0x7]
        %v1568 = vlaneseq
        %v1569 = vshrl.u32 %v1568, 7
        %v1570 = vsub.s32 0, %v1569
        %v1571 = vrot.slane %v1566, %v1570
        %v1572 = vlaneseq
        %v1573 = vshrl.u32 %v1572, 7
        %v1574 = vsub.s32 1, %v1573
        %v1575 = vrot.slane %v1566, %v1574
        %v1576 = vlaneseq
        %v1577 = vshrl.u32 %v1576, 7
        %v1578 = vsub.s32 2, %v1577
        %v1579 = vrot.slane %v1566, %v1578
        %v1583 = vmul.f32 %v1563, %v1571
        %v1584 = vmul.f32 %v1564, %v1575
        %v1585 = vmul.f32 %v1565, %v1579
        %vm1586 = vcmask 150528
        %1587 = vst.msk [vmem:[#allocation3] sm:$0xf] %vm1586, 0
        %vm1588 = vcmask 552328
        %1589 = vst.msk [vmem:[#allocation3 + $0x8] sm:$0xf] %vm1588, 0
        %v1590 = vpack.c.bf16 %v1583, %v1583
        %v1591 = vpack.c.bf16 %v1584, %v1584
        %v1592 = vpack.c.bf16 %v1585, %v1585
        %v1596 = vunpack.c.l.b16 %v1590
        %v1597 = vunpack.c.l.b16 %v1591
        %v1598 = vunpack.c.l.b16 %v1592
        %v1599 = vpack.c.b16 %v1597, %v1596
        %v1600 = vpack.c.b16 %v1598, %v1598
        %1601 = vrot.lane.b32.xlu0 %v1599, 19
        %v1602 = vpop.permute.xlu0 %1601
        %1603 = vrot.lane.b32.xlu0 %v1600, 19
        %v1604 = vpop.permute.xlu0 %1603
        %v1605 = vrot.slane %v1602, 4
        %vm1606 = vcmask 154624
        %v1607 = vsel %vm1606, %v1605, %v1602
        %v1608 = vsel %vm1606, %v1605, %v1604
        %vm1611 = vcmask 1043608
        %vm1612 = vcmask 1047556
        %vm1613 = vmor %vm1612, %vm1611
        %1614 = vst.msk [vmem:[#allocation3] sm:$0xff] %vm1613, %v1607
        %vm1615 = vcmask 396288
        %1616 = vst.msk [vmem:[#allocation3 + $0x8] sm:$0xf] %vm1615, %v1608
        %v1617 = vld [vmem:[#allocation3] sm:$0xff]
        %v1618 = vld [vmem:[#allocation3 + $0x8] sm:$0xf]
        %v1619 = vld [vmem:[%s4] sm:$0xf]
        %s1620 = scalar_lea.vmem %s4, 4
        %v1621 = vld [vmem:[%s1620] sm:$0xf]
        %v1624 = vunpack.c.l.b16 %v1617
        %v1625 = vunpack.c.h.b16 %v1617
        %v1626 = vunpack.c.l.b16 %v1618
        %v1627 = vpack.c.b16 %v1624, %v1624
        %v1628 = vpack.c.b16 %v1625, %v1625
        %v1629 = vpack.c.b16 %v1626, %v1626
        %1630 = vrot.lane.b32.xlu0 %v1627, 127
        %v1631 = vpop.permute.xlu0 %1630
        %1632 = vrot.lane.b32.xlu0 %v1628, 127
        %v1633 = vpop.permute.xlu0 %1632
        %1634 = vrot.lane.b32.xlu0 %v1629, 127
        %v1635 = vpop.permute.xlu0 %1634
        %v1636 = vsel %vm488, %v1631, %v1633
        %v1637 = vsel %vm488, %v1633, %v1635
        %vm1638 = vcmask 64512
        %v1640 = vsel %vm1638, %v1621, 0
        %vm1642 = vcmask 1043456
        %v1644 = vsel %vm1642, %v1636, 0
        %v1647 = vsel %vm1642, %v1637, 0
        %v1650 = vsel %vm1642, %v1635, 0
        %1652 = vmatprep.subr.bf16.mxu0 %v1647
        %1653 = vmatpush1.bf16.msra.mxu0 %v1644
        %1654 = vmatprep.subr.bf16.mxu0 0
        %1655 = vmatpush1.bf16.msra.mxu0 0
        %1656 = vmatprep.subr.bf16.mxu0 0
        %1657 = vmatpush1.bf16.msra.mxu0 0
        %1658 = vmatprep.subr.bf16.mxu0 0
        %1659 = vmatpush1.bf16.msra.mxu0 0
        %1660 = vmatprep.subr.bf16.mxu0 0
        %1661 = vmatpush1.bf16.msra.mxu0 0
        %1662 = vmatprep.subr.bf16.mxu0 0
        %1663 = vmatpush1.bf16.msra.mxu0 0
        %1664 = vmatprep.subr.bf16.mxu0 0
        %1665 = vmatpush1.bf16.msra.mxu0 0
        %1666 = vmatprep.subr.bf16.mxu0 0
        %1667 = vmatpush1.bf16.msra.mxu0 0
        %1668 = vmatprep.subr.bf16.mxu0 0
        %1669 = vmatpush1.bf16.msra.mxu0 0
        %1670 = vmatprep.subr.bf16.mxu0 0
        %1671 = vmatpush1.bf16.msra.mxu0 0
        %1672 = vmatprep.subr.bf16.mxu0 0
        %1673 = vmatpush1.bf16.msra.mxu0 0
        %1674 = vmatprep.subr.bf16.mxu0 0
        %1675 = vmatpush1.bf16.msra.mxu0 0
        %1676 = vmatprep.subr.bf16.mxu0 0
        %1677 = vmatpush1.bf16.msra.mxu0 0
        %1678 = vmatprep.subr.bf16.mxu0 0
        %1679 = vmatpush1.bf16.msra.mxu0 0
        %1680 = vmatprep.subr.bf16.mxu0 0
        %1681 = vmatpush1.bf16.msra.mxu0 0
        %1682 = vmatprep.subr.bf16.mxu0 0
        %1683 = vmatpush1.bf16.msra.mxu0 0
        %1684 = vmatprep.mubr.bf16.mxu0 0
        %1685 = vmatmul.mubr.bf16.gmra.mrb[0].mxu0 %v1640
        %v1686 = vpop.f32.mrb[0].mxu0
        %v1687 = vadd.f32 0.0, %v1686
        %v1688 = vpop.f32.mrb[0].mxu0
        %v1689 = vadd.f32 0.0, %v1688
        %v1690 = vpop.f32.mrb[0].mxu0
        %v1691 = vpop.f32.mrb[0].mxu0
        %1692 = vdwg.mxu0
        %1693 = vmatprep.subr.bf16.mxu0 0
        %1694 = vmatpush1.bf16.msra.mxu0 %v1650
        %1695 = vmatprep.subr.bf16.mxu0 0
        %1696 = vmatpush1.bf16.msra.mxu0 0
        %1697 = vmatprep.subr.bf16.mxu0 0
        %1698 = vmatpush1.bf16.msra.mxu0 0
        %1699 = vmatprep.subr.bf16.mxu0 0
        %1700 = vmatpush1.bf16.msra.mxu0 0
        %1701 = vmatprep.subr.bf16.mxu0 0
        %1702 = vmatpush1.bf16.msra.mxu0 0
        %1703 = vmatprep.subr.bf16.mxu0 0
        %1704 = vmatpush1.bf16.msra.mxu0 0
        %1705 = vmatprep.subr.bf16.mxu0 0
        %1706 = vmatpush1.bf16.msra.mxu0 0
        %1707 = vmatprep.subr.bf16.mxu0 0
        %1708 = vmatpush1.bf16.msra.mxu0 0
        %1709 = vmatprep.subr.bf16.mxu0 0
        %1710 = vmatpush1.bf16.msra.mxu0 0
        %1711 = vmatprep.subr.bf16.mxu0 0
        %1712 = vmatpush1.bf16.msra.mxu0 0
        %1713 = vmatprep.subr.bf16.mxu0 0
        %1714 = vmatpush1.bf16.msra.mxu0 0
        %1715 = vmatprep.subr.bf16.mxu0 0
        %1716 = vmatpush1.bf16.msra.mxu0 0
        %1717 = vmatprep.subr.bf16.mxu0 0
        %1718 = vmatpush1.bf16.msra.mxu0 0
        %1719 = vmatprep.subr.bf16.mxu0 0
        %1720 = vmatpush1.bf16.msra.mxu0 0
        %1721 = vmatprep.subr.bf16.mxu0 0
        %1722 = vmatpush1.bf16.msra.mxu0 0
        %1723 = vmatprep.subr.bf16.mxu0 0
        %1724 = vmatpush1.bf16.msra.mxu0 0
        %1725 = vmatprep.mubr.bf16.mxu0 0
        %1726 = vmatmul.mubr.bf16.gmra.mrb[0].mxu0 %v1640
        %v1727 = vpop.f32.mrb[0].mxu0
        %v1728 = vadd.f32 0.0, %v1727
        %v1729 = vpop.f32.mrb[0].mxu0
        %v1730 = vpop.f32.mrb[0].mxu0
        %v1731 = vpop.f32.mrb[0].mxu0
        %1732 = vdwg.mxu0
        %v1734 = vsel %vm1638, %v1619, 0
        %v1737 = vsel %vm1642, %v1627, 0
        %v1740 = vsel %vm1642, %v1628, 0
        %v1743 = vsel %vm1642, %v1629, 0
        %1745 = vmatprep.subr.bf16.mxu0 %v1740
        %1746 = vmatpush1.bf16.msra.mxu0 %v1737
        %1747 = vmatprep.subr.bf16.mxu0 0
        %1748 = vmatpush1.bf16.msra.mxu0 0
        %1749 = vmatprep.subr.bf16.mxu0 0
        %1750 = vmatpush1.bf16.msra.mxu0 0
        %1751 = vmatprep.subr.bf16.mxu0 0
        %1752 = vmatpush1.bf16.msra.mxu0 0
        %1753 = vmatprep.subr.bf16.mxu0 0
        %1754 = vmatpush1.bf16.msra.mxu0 0
        %1755 = vmatprep.subr.bf16.mxu0 0
        %1756 = vmatpush1.bf16.msra.mxu0 0
        %1757 = vmatprep.subr.bf16.mxu0 0
        %1758 = vmatpush1.bf16.msra.mxu0 0
        %1759 = vmatprep.subr.bf16.mxu0 0
        %1760 = vmatpush1.bf16.msra.mxu0 0
        %1761 = vmatprep.subr.bf16.mxu0 0
        %1762 = vmatpush1.bf16.msra.mxu0 0
        %1763 = vmatprep.subr.bf16.mxu0 0
        %1764 = vmatpush1.bf16.msra.mxu0 0
        %1765 = vmatprep.subr.bf16.mxu0 0
        %1766 = vmatpush1.bf16.msra.mxu0 0
        %1767 = vmatprep.subr.bf16.mxu0 0
        %1768 = vmatpush1.bf16.msra.mxu0 0
        %1769 = vmatprep.subr.bf16.mxu0 0
        %1770 = vmatpush1.bf16.msra.mxu0 0
        %1771 = vmatprep.subr.bf16.mxu0 0
        %1772 = vmatpush1.bf16.msra.mxu0 0
        %1773 = vmatprep.subr.bf16.mxu0 0
        %1774 = vmatpush1.bf16.msra.mxu0 0
        %1775 = vmatprep.subr.bf16.mxu0 0
        %1776 = vmatpush1.bf16.msra.mxu0 0
        %1777 = vmatprep.mubr.bf16.mxu0 0
        %1778 = vmatmul.mubr.bf16.gmra.mrb[0].mxu0 %v1734
        %v1779 = vpop.f32.mrb[0].mxu0
        %v1780 = vadd.f32 %v1687, %v1779
        %v1781 = vpop.f32.mrb[0].mxu0
        %v1782 = vadd.f32 %v1689, %v1781
        %v1783 = vpop.f32.mrb[0].mxu0
        %v1784 = vpop.f32.mrb[0].mxu0
        %1785 = vdwg.mxu0
        %1786 = vmatprep.subr.bf16.mxu0 0
        %1787 = vmatpush1.bf16.msra.mxu0 %v1743
        %1788 = vmatprep.subr.bf16.mxu0 0
        %1789 = vmatpush1.bf16.msra.mxu0 0
        %1790 = vmatprep.subr.bf16.mxu0 0
        %1791 = vmatpush1.bf16.msra.mxu0 0
        %1792 = vmatprep.subr.bf16.mxu0 0
        %1793 = vmatpush1.bf16.msra.mxu0 0
        %1794 = vmatprep.subr.bf16.mxu0 0
        %1795 = vmatpush1.bf16.msra.mxu0 0
        %1796 = vmatprep.subr.bf16.mxu0 0
        %1797 = vmatpush1.bf16.msra.mxu0 0
        %1798 = vmatprep.subr.bf16.mxu0 0
        %1799 = vmatpush1.bf16.msra.mxu0 0
        %1800 = vmatprep.subr.bf16.mxu0 0
        %1801 = vmatpush1.bf16.msra.mxu0 0
        %1802 = vmatprep.subr.bf16.mxu0 0
        %1803 = vmatpush1.bf16.msra.mxu0 0
        %1804 = vmatprep.subr.bf16.mxu0 0
        %1805 = vmatpush1.bf16.msra.mxu0 0
        %1806 = vmatprep.subr.bf16.mxu0 0
        %1807 = vmatpush1.bf16.msra.mxu0 0
        %1808 = vmatprep.subr.bf16.mxu0 0
        %1809 = vmatpush1.bf16.msra.mxu0 0
        %1810 = vmatprep.subr.bf16.mxu0 0
        %1811 = vmatpush1.bf16.msra.mxu0 0
        %1812 = vmatprep.subr.bf16.mxu0 0
        %1813 = vmatpush1.bf16.msra.mxu0 0
        %1814 = vmatprep.subr.bf16.mxu0 0
        %1815 = vmatpush1.bf16.msra.mxu0 0
        %1816 = vmatprep.subr.bf16.mxu0 0
        %1817 = vmatpush1.bf16.msra.mxu0 0
        %1818 = vmatprep.mubr.bf16.mxu0 0
        %1819 = vmatmul.mubr.bf16.gmra.mrb[0].mxu0 %v1734
        %v1820 = vpop.f32.mrb[0].mxu0
        %v1821 = vadd.f32 %v1728, %v1820
        %v1822 = vpop.f32.mrb[0].mxu0
        %v1823 = vpop.f32.mrb[0].mxu0
        %v1824 = vpop.f32.mrb[0].mxu0
        %1825 = vdwg.mxu0
        %s1826 = scalar_lea.vmem %s4, 8
        %v1827 = vld [vmem:[%s1826] sm:$0xf]
        %1828 = vrot.lane.b32.xlu0 %v1627, 126
        %v1829 = vpop.permute.xlu0 %1828
        %1830 = vrot.lane.b32.xlu0 %v1628, 126
        %v1831 = vpop.permute.xlu0 %1830
        %1832 = vrot.lane.b32.xlu0 %v1629, 126
        %v1833 = vpop.permute.xlu0 %1832
        %v1834 = vsel %vm705, %v1829, %v1831
        %v1835 = vsel %vm705, %v1831, %v1833
        %v1837 = vsel %vm1638, %v1827, 0
        %v1840 = vsel %vm1642, %v1834, 0
        %v1843 = vsel %vm1642, %v1835, 0
        %v1846 = vsel %vm1642, %v1833, 0
        %1848 = vmatprep.subr.bf16.mxu0 %v1843
        %1849 = vmatpush1.bf16.msra.mxu0 %v1840
        %1850 = vmatprep.subr.bf16.mxu0 0
        %1851 = vmatpush1.bf16.msra.mxu0 0
        %1852 = vmatprep.subr.bf16.mxu0 0
        %1853 = vmatpush1.bf16.msra.mxu0 0
        %1854 = vmatprep.subr.bf16.mxu0 0
        %1855 = vmatpush1.bf16.msra.mxu0 0
        %1856 = vmatprep.subr.bf16.mxu0 0
        %1857 = vmatpush1.bf16.msra.mxu0 0
        %1858 = vmatprep.subr.bf16.mxu0 0
        %1859 = vmatpush1.bf16.msra.mxu0 0
        %1860 = vmatprep.subr.bf16.mxu0 0
        %1861 = vmatpush1.bf16.msra.mxu0 0
        %1862 = vmatprep.subr.bf16.mxu0 0
        %1863 = vmatpush1.bf16.msra.mxu0 0
        %1864 = vmatprep.subr.bf16.mxu0 0
        %1865 = vmatpush1.bf16.msra.mxu0 0
        %1866 = vmatprep.subr.bf16.mxu0 0
        %1867 = vmatpush1.bf16.msra.mxu0 0
        %1868 = vmatprep.subr.bf16.mxu0 0
        %1869 = vmatpush1.bf16.msra.mxu0 0
        %1870 = vmatprep.subr.bf16.mxu0 0
        %1871 = vmatpush1.bf16.msra.mxu0 0
        %1872 = vmatprep.subr.bf16.mxu0 0
        %1873 = vmatpush1.bf16.msra.mxu0 0
        %1874 = vmatprep.subr.bf16.mxu0 0
        %1875 = vmatpush1.bf16.msra.mxu0 0
        %1876 = vmatprep.subr.bf16.mxu0 0
        %1877 = vmatpush1.bf16.msra.mxu0 0
        %1878 = vmatprep.subr.bf16.mxu0 0
        %1879 = vmatpush1.bf16.msra.mxu0 0
        %1880 = vmatprep.mubr.bf16.mxu0 0
        %1881 = vmatmul.mubr.bf16.gmra.mrb[0].mxu0 %v1837
        %v1882 = vpop.f32.mrb[0].mxu0
        %v1883 = vadd.f32 0.0, %v1882
        %v1884 = vpop.f32.mrb[0].mxu0
        %v1885 = vadd.f32 0.0, %v1884
        %v1886 = vpop.f32.mrb[0].mxu0
        %v1887 = vpop.f32.mrb[0].mxu0
        %1888 = vdwg.mxu0
        %1889 = vmatprep.subr.bf16.mxu0 0
        %1890 = vmatpush1.bf16.msra.mxu0 %v1846
        %1891 = vmatprep.subr.bf16.mxu0 0
        %1892 = vmatpush1.bf16.msra.mxu0 0
        %1893 = vmatprep.subr.bf16.mxu0 0
        %1894 = vmatpush1.bf16.msra.mxu0 0
        %1895 = vmatprep.subr.bf16.mxu0 0
        %1896 = vmatpush1.bf16.msra.mxu0 0
        %1897 = vmatprep.subr.bf16.mxu0 0
        %1898 = vmatpush1.bf16.msra.mxu0 0
        %1899 = vmatprep.subr.bf16.mxu0 0
        %1900 = vmatpush1.bf16.msra.mxu0 0
        %1901 = vmatprep.subr.bf16.mxu0 0
        %1902 = vmatpush1.bf16.msra.mxu0 0
        %1903 = vmatprep.subr.bf16.mxu0 0
        %1904 = vmatpush1.bf16.msra.mxu0 0
        %1905 = vmatprep.subr.bf16.mxu0 0
        %1906 = vmatpush1.bf16.msra.mxu0 0
        %1907 = vmatprep.subr.bf16.mxu0 0
        %1908 = vmatpush1.bf16.msra.mxu0 0
        %1909 = vmatprep.subr.bf16.mxu0 0
        %1910 = vmatpush1.bf16.msra.mxu0 0
        %1911 = vmatprep.subr.bf16.mxu0 0
        %1912 = vmatpush1.bf16.msra.mxu0 0
        %1913 = vmatprep.subr.bf16.mxu0 0
        %1914 = vmatpush1.bf16.msra.mxu0 0
        %1915 = vmatprep.subr.bf16.mxu0 0
        %1916 = vmatpush1.bf16.msra.mxu0 0
        %1917 = vmatprep.subr.bf16.mxu0 0
        %1918 = vmatpush1.bf16.msra.mxu0 0
        %1919 = vmatprep.subr.bf16.mxu0 0
        %1920 = vmatpush1.bf16.msra.mxu0 0
        %1921 = vmatprep.mubr.bf16.mxu0 0
        %1922 = vmatmul.mubr.bf16.gmra.mrb[0].mxu0 %v1837
        %v1923 = vpop.f32.mrb[0].mxu0
        %v1924 = vadd.f32 0.0, %v1923
        %v1925 = vpop.f32.mrb[0].mxu0
        %v1926 = vpop.f32.mrb[0].mxu0
        %v1927 = vpop.f32.mrb[0].mxu0
        %1928 = vdwg.mxu0
        %v1929 = vadd.f32 %v1780, %v1883
        %v1930 = vadd.f32 %v1782, %v1885
        %v1931 = vadd.f32 %v1821, %v1924
        %s1932 = scalar_lea.vmem %s4, 12
        %v1933 = vld [vmem:[%s1932] sm:$0xf]
        %1934 = vrot.lane.b32.xlu0 %v1627, 110
        %v1935 = vpop.permute.xlu0 %1934
        %1936 = vrot.lane.b32.xlu0 %v1628, 110
        %v1937 = vpop.permute.xlu0 %1936
        %1938 = vrot.lane.b32.xlu0 %v1629, 110
        %v1939 = vpop.permute.xlu0 %1938
        %v1940 = vsel %vm830, %v1935, %v1937
        %v1941 = vsel %vm830, %v1937, %v1939
        %v1943 = vsel %vm1638, %v1933, 0
        %v1946 = vsel %vm1642, %v1940, 0
        %v1949 = vsel %vm1642, %v1941, 0
        %v1952 = vsel %vm1642, %v1939, 0
        %1954 = vmatprep.subr.bf16.mxu0 %v1949
        %1955 = vmatpush1.bf16.msra.mxu0 %v1946
        %1956 = vmatprep.subr.bf16.mxu0 0
        %1957 = vmatpush1.bf16.msra.mxu0 0
        %1958 = vmatprep.subr.bf16.mxu0 0
        %1959 = vmatpush1.bf16.msra.mxu0 0
        %1960 = vmatprep.subr.bf16.mxu0 0
        %1961 = vmatpush1.bf16.msra.mxu0 0
        %1962 = vmatprep.subr.bf16.mxu0 0
        %1963 = vmatpush1.bf16.msra.mxu0 0
        %1964 = vmatprep.subr.bf16.mxu0 0
        %1965 = vmatpush1.bf16.msra.mxu0 0
        %1966 = vmatprep.subr.bf16.mxu0 0
        %1967 = vmatpush1.bf16.msra.mxu0 0
        %1968 = vmatprep.subr.bf16.mxu0 0
        %1969 = vmatpush1.bf16.msra.mxu0 0
        %1970 = vmatprep.subr.bf16.mxu0 0
        %1971 = vmatpush1.bf16.msra.mxu0 0
        %1972 = vmatprep.subr.bf16.mxu0 0
        %1973 = vmatpush1.bf16.msra.mxu0 0
        %1974 = vmatprep.subr.bf16.mxu0 0
        %1975 = vmatpush1.bf16.msra.mxu0 0
        %1976 = vmatprep.subr.bf16.mxu0 0
        %1977 = vmatpush1.bf16.msra.mxu0 0
        %1978 = vmatprep.subr.bf16.mxu0 0
        %1979 = vmatpush1.bf16.msra.mxu0 0
        %1980 = vmatprep.subr.bf16.mxu0 0
        %1981 = vmatpush1.bf16.msra.mxu0 0
        %1982 = vmatprep.subr.bf16.mxu0 0
        %1983 = vmatpush1.bf16.msra.mxu0 0
        %1984 = vmatprep.subr.bf16.mxu0 0
        %1985 = vmatpush1.bf16.msra.mxu0 0
        %1986 = vmatprep.mubr.bf16.mxu0 0
        %1987 = vmatmul.mubr.bf16.gmra.mrb[0].mxu0 %v1943
        %v1988 = vpop.f32.mrb[0].mxu0
        %v1989 = vadd.f32 0.0, %v1988
        %v1990 = vpop.f32.mrb[0].mxu0
        %v1991 = vadd.f32 0.0, %v1990
        %v1992 = vpop.f32.mrb[0].mxu0
        %v1993 = vpop.f32.mrb[0].mxu0
        %1994 = vdwg.mxu0
        %1995 = vmatprep.subr.bf16.mxu0 0
        %1996 = vmatpush1.bf16.msra.mxu0 %v1952
        %1997 = vmatprep.subr.bf16.mxu0 0
        %1998 = vmatpush1.bf16.msra.mxu0 0
        %1999 = vmatprep.subr.bf16.mxu0 0
        %2000 = vmatpush1.bf16.msra.mxu0 0
        %2001 = vmatprep.subr.bf16.mxu0 0
        %2002 = vmatpush1.bf16.msra.mxu0 0
        %2003 = vmatprep.subr.bf16.mxu0 0
        %2004 = vmatpush1.bf16.msra.mxu0 0
        %2005 = vmatprep.subr.bf16.mxu0 0
        %2006 = vmatpush1.bf16.msra.mxu0 0
        %2007 = vmatprep.subr.bf16.mxu0 0
        %2008 = vmatpush1.bf16.msra.mxu0 0
        %2009 = vmatprep.subr.bf16.mxu0 0
        %2010 = vmatpush1.bf16.msra.mxu0 0
        %2011 = vmatprep.subr.bf16.mxu0 0
        %2012 = vmatpush1.bf16.msra.mxu0 0
        %2013 = vmatprep.subr.bf16.mxu0 0
        %2014 = vmatpush1.bf16.msra.mxu0 0
        %2015 = vmatprep.subr.bf16.mxu0 0
        %2016 = vmatpush1.bf16.msra.mxu0 0
        %2017 = vmatprep.subr.bf16.mxu0 0
        %2018 = vmatpush1.bf16.msra.mxu0 0
        %2019 = vmatprep.subr.bf16.mxu0 0
        %2020 = vmatpush1.bf16.msra.mxu0 0
        %2021 = vmatprep.subr.bf16.mxu0 0
        %2022 = vmatpush1.bf16.msra.mxu0 0
        %2023 = vmatprep.subr.bf16.mxu0 0
        %2024 = vmatpush1.bf16.msra.mxu0 0
        %2025 = vmatprep.subr.bf16.mxu0 0
        %2026 = vmatpush1.bf16.msra.mxu0 0
        %2027 = vmatprep.mubr.bf16.mxu0 0
        %2028 = vmatmul.mubr.bf16.gmra.mrb[0].mxu0 %v1943
        %v2029 = vpop.f32.mrb[0].mxu0
        %v2030 = vadd.f32 0.0, %v2029
        %v2031 = vpop.f32.mrb[0].mxu0
        %v2032 = vpop.f32.mrb[0].mxu0
        %v2033 = vpop.f32.mrb[0].mxu0
        %2034 = vdwg.mxu0
        %v2035 = vadd.f32 %v1929, %v1989
        %v2036 = vadd.f32 %v1930, %v1991
        %v2037 = vadd.f32 %v1931, %v2030
        %s2038 = scalar_lea.vmem %s4, 16
        %v2039 = vld [vmem:[%s2038] sm:$0xf]
        %2040 = vrot.lane.b32.xlu0 %v1627, 109
        %v2041 = vpop.permute.xlu0 %2040
        %2042 = vrot.lane.b32.xlu0 %v1628, 109
        %v2043 = vpop.permute.xlu0 %2042
        %2044 = vrot.lane.b32.xlu0 %v1629, 109
        %v2045 = vpop.permute.xlu0 %2044
        %v2046 = vsel %vm955, %v2041, %v2043
        %v2047 = vsel %vm955, %v2043, %v2045
        %v2049 = vsel %vm1638, %v2039, 0
        %v2052 = vsel %vm1642, %v2046, 0
        %v2055 = vsel %vm1642, %v2047, 0
        %v2058 = vsel %vm1642, %v2045, 0
        %2060 = vmatprep.subr.bf16.mxu0 %v2055
        %2061 = vmatpush1.bf16.msra.mxu0 %v2052
        %2062 = vmatprep.subr.bf16.mxu0 0
        %2063 = vmatpush1.bf16.msra.mxu0 0
        %2064 = vmatprep.subr.bf16.mxu0 0
        %2065 = vmatpush1.bf16.msra.mxu0 0
        %2066 = vmatprep.subr.bf16.mxu0 0
        %2067 = vmatpush1.bf16.msra.mxu0 0
        %2068 = vmatprep.subr.bf16.mxu0 0
        %2069 = vmatpush1.bf16.msra.mxu0 0
        %2070 = vmatprep.subr.bf16.mxu0 0
        %2071 = vmatpush1.bf16.msra.mxu0 0
        %2072 = vmatprep.subr.bf16.mxu0 0
        %2073 = vmatpush1.bf16.msra.mxu0 0
        %2074 = vmatprep.subr.bf16.mxu0 0
        %2075 = vmatpush1.bf16.msra.mxu0 0
        %2076 = vmatprep.subr.bf16.mxu0 0
        %2077 = vmatpush1.bf16.msra.mxu0 0
        %2078 = vmatprep.subr.bf16.mxu0 0
        %2079 = vmatpush1.bf16.msra.mxu0 0
        %2080 = vmatprep.subr.bf16.mxu0 0
        %2081 = vmatpush1.bf16.msra.mxu0 0
        %2082 = vmatprep.subr.bf16.mxu0 0
        %2083 = vmatpush1.bf16.msra.mxu0 0
        %2084 = vmatprep.subr.bf16.mxu0 0
        %2085 = vmatpush1.bf16.msra.mxu0 0
        %2086 = vmatprep.subr.bf16.mxu0 0
        %2087 = vmatpush1.bf16.msra.mxu0 0
        %2088 = vmatprep.subr.bf16.mxu0 0
        %2089 = vmatpush1.bf16.msra.mxu0 0
        %2090 = vmatprep.subr.bf16.mxu0 0
        %2091 = vmatpush1.bf16.msra.mxu0 0
        %2092 = vmatprep.mubr.bf16.mxu0 0
        %2093 = vmatmul.mubr.bf16.gmra.mrb[0].mxu0 %v2049
        %v2094 = vpop.f32.mrb[0].mxu0
        %v2095 = vadd.f32 0.0, %v2094
        %v2096 = vpop.f32.mrb[0].mxu0
        %v2097 = vadd.f32 0.0, %v2096
        %v2098 = vpop.f32.mrb[0].mxu0
        %v2099 = vpop.f32.mrb[0].mxu0
        %2100 = vdwg.mxu0
        %2101 = vmatprep.subr.bf16.mxu0 0
        %2102 = vmatpush1.bf16.msra.mxu0 %v2058
        %2103 = vmatprep.subr.bf16.mxu0 0
        %2104 = vmatpush1.bf16.msra.mxu0 0
        %2105 = vmatprep.subr.bf16.mxu0 0
        %2106 = vmatpush1.bf16.msra.mxu0 0
        %2107 = vmatprep.subr.bf16.mxu0 0
        %2108 = vmatpush1.bf16.msra.mxu0 0
        %2109 = vmatprep.subr.bf16.mxu0 0
        %2110 = vmatpush1.bf16.msra.mxu0 0
        %2111 = vmatprep.subr.bf16.mxu0 0
        %2112 = vmatpush1.bf16.msra.mxu0 0
        %2113 = vmatprep.subr.bf16.mxu0 0
        %2114 = vmatpush1.bf16.msra.mxu0 0
        %2115 = vmatprep.subr.bf16.mxu0 0
        %2116 = vmatpush1.bf16.msra.mxu0 0
        %2117 = vmatprep.subr.bf16.mxu0 0
        %2118 = vmatpush1.bf16.msra.mxu0 0
        %2119 = vmatprep.subr.bf16.mxu0 0
        %2120 = vmatpush1.bf16.msra.mxu0 0
        %2121 = vmatprep.subr.bf16.mxu0 0
        %2122 = vmatpush1.bf16.msra.mxu0 0
        %2123 = vmatprep.subr.bf16.mxu0 0
        %2124 = vmatpush1.bf16.msra.mxu0 0
        %2125 = vmatprep.subr.bf16.mxu0 0
        %2126 = vmatpush1.bf16.msra.mxu0 0
        %2127 = vmatprep.subr.bf16.mxu0 0
        %2128 = vmatpush1.bf16.msra.mxu0 0
        %2129 = vmatprep.subr.bf16.mxu0 0
        %2130 = vmatpush1.bf16.msra.mxu0 0
        %2131 = vmatprep.subr.bf16.mxu0 0
        %2132 = vmatpush1.bf16.msra.mxu0 0
        %2133 = vmatprep.mubr.bf16.mxu0 0
        %2134 = vmatmul.mubr.bf16.gmra.mrb[0].mxu0 %v2049
        %v2135 = vpop.f32.mrb[0].mxu0
        %v2136 = vadd.f32 0.0, %v2135
        %v2137 = vpop.f32.mrb[0].mxu0
        %v2138 = vpop.f32.mrb[0].mxu0
        %v2139 = vpop.f32.mrb[0].mxu0
        %2140 = vdwg.mxu0
        %v2141 = vadd.f32 %v2035, %v2095
        %v2142 = vadd.f32 %v2036, %v2097
        %v2143 = vadd.f32 %v2037, %v2136
        %s2144 = scalar_lea.vmem %s4, 20
        %v2145 = vld [vmem:[%s2144] sm:$0xf]
        %2146 = vrot.lane.b32.xlu0 %v1627, 108
        %v2147 = vpop.permute.xlu0 %2146
        %2148 = vrot.lane.b32.xlu0 %v1628, 108
        %v2149 = vpop.permute.xlu0 %2148
        %2150 = vrot.lane.b32.xlu0 %v1629, 108
        %v2151 = vpop.permute.xlu0 %2150
        %v2152 = vsel %vm1080, %v2147, %v2149
        %v2153 = vsel %vm1080, %v2149, %v2151
        %v2155 = vsel %vm1638, %v2145, 0
        %v2158 = vsel %vm1642, %v2152, 0
        %v2161 = vsel %vm1642, %v2153, 0
        %v2164 = vsel %vm1642, %v2151, 0
        %2166 = vmatprep.subr.bf16.mxu0 %v2161
        %2167 = vmatpush1.bf16.msra.mxu0 %v2158
        %2168 = vmatprep.subr.bf16.mxu0 0
        %2169 = vmatpush1.bf16.msra.mxu0 0
        %2170 = vmatprep.subr.bf16.mxu0 0
        %2171 = vmatpush1.bf16.msra.mxu0 0
        %2172 = vmatprep.subr.bf16.mxu0 0
        %2173 = vmatpush1.bf16.msra.mxu0 0
        %2174 = vmatprep.subr.bf16.mxu0 0
        %2175 = vmatpush1.bf16.msra.mxu0 0
        %2176 = vmatprep.subr.bf16.mxu0 0
        %2177 = vmatpush1.bf16.msra.mxu0 0
        %2178 = vmatprep.subr.bf16.mxu0 0
        %2179 = vmatpush1.bf16.msra.mxu0 0
        %2180 = vmatprep.subr.bf16.mxu0 0
        %2181 = vmatpush1.bf16.msra.mxu0 0
        %2182 = vmatprep.subr.bf16.mxu0 0
        %2183 = vmatpush1.bf16.msra.mxu0 0
        %2184 = vmatprep.subr.bf16.mxu0 0
        %2185 = vmatpush1.bf16.msra.mxu0 0
        %2186 = vmatprep.subr.bf16.mxu0 0
        %2187 = vmatpush1.bf16.msra.mxu0 0
        %2188 = vmatprep.subr.bf16.mxu0 0
        %2189 = vmatpush1.bf16.msra.mxu0 0
        %2190 = vmatprep.subr.bf16.mxu0 0
        %2191 = vmatpush1.bf16.msra.mxu0 0
        %2192 = vmatprep.subr.bf16.mxu0 0
        %2193 = vmatpush1.bf16.msra.mxu0 0
        %2194 = vmatprep.subr.bf16.mxu0 0
        %2195 = vmatpush1.bf16.msra.mxu0 0
        %2196 = vmatprep.subr.bf16.mxu0 0
        %2197 = vmatpush1.bf16.msra.mxu0 0
        %2198 = vmatprep.mubr.bf16.mxu0 0
        %2199 = vmatmul.mubr.bf16.gmra.mrb[0].mxu0 %v2155
        %v2200 = vpop.f32.mrb[0].mxu0
        %v2201 = vadd.f32 0.0, %v2200
        %v2202 = vpop.f32.mrb[0].mxu0
        %v2203 = vadd.f32 0.0, %v2202
        %v2204 = vpop.f32.mrb[0].mxu0
        %v2205 = vpop.f32.mrb[0].mxu0
        %2206 = vdwg.mxu0
        %2207 = vmatprep.subr.bf16.mxu0 0
        %2208 = vmatpush1.bf16.msra.mxu0 %v2164
        %2209 = vmatprep.subr.bf16.mxu0 0
        %2210 = vmatpush1.bf16.msra.mxu0 0
        %2211 = vmatprep.subr.bf16.mxu0 0
        %2212 = vmatpush1.bf16.msra.mxu0 0
        %2213 = vmatprep.subr.bf16.mxu0 0
        %2214 = vmatpush1.bf16.msra.mxu0 0
        %2215 = vmatprep.subr.bf16.mxu0 0
        %2216 = vmatpush1.bf16.msra.mxu0 0
        %2217 = vmatprep.subr.bf16.mxu0 0
        %2218 = vmatpush1.bf16.msra.mxu0 0
        %2219 = vmatprep.subr.bf16.mxu0 0
        %2220 = vmatpush1.bf16.msra.mxu0 0
        %2221 = vmatprep.subr.bf16.mxu0 0
        %2222 = vmatpush1.bf16.msra.mxu0 0
        %2223 = vmatprep.subr.bf16.mxu0 0
        %2224 = vmatpush1.bf16.msra.mxu0 0
        %2225 = vmatprep.subr.bf16.mxu0 0
        %2226 = vmatpush1.bf16.msra.mxu0 0
        %2227 = vmatprep.subr.bf16.mxu0 0
        %2228 = vmatpush1.bf16.msra.mxu0 0
        %2229 = vmatprep.subr.bf16.mxu0 0
        %2230 = vmatpush1.bf16.msra.mxu0 0
        %2231 = vmatprep.subr.bf16.mxu0 0
        %2232 = vmatpush1.bf16.msra.mxu0 0
        %2233 = vmatprep.subr.bf16.mxu0 0
        %2234 = vmatpush1.bf16.msra.mxu0 0
        %2235 = vmatprep.subr.bf16.mxu0 0
        %2236 = vmatpush1.bf16.msra.mxu0 0
        %2237 = vmatprep.subr.bf16.mxu0 0
        %2238 = vmatpush1.bf16.msra.mxu0 0
        %2239 = vmatprep.mubr.bf16.mxu0 0
        %2240 = vmatmul.mubr.bf16.gmra.mrb[0].mxu0 %v2155
        %v2241 = vpop.f32.mrb[0].mxu0
        %v2242 = vadd.f32 0.0, %v2241
        %v2243 = vpop.f32.mrb[0].mxu0
        %v2244 = vpop.f32.mrb[0].mxu0
        %v2245 = vpop.f32.mrb[0].mxu0
        %2246 = vdwg.mxu0
        %v2247 = vadd.f32 %v2141, %v2201
        %v2248 = vadd.f32 %v2142, %v2203
        %v2249 = vadd.f32 %v2143, %v2242
        %s2250 = scalar_lea.vmem %s4, 24
        %v2251 = vld [vmem:[%s2250] sm:$0xf]
        %2252 = vrot.lane.b32.xlu0 %v1627, 92
        %v2253 = vpop.permute.xlu0 %2252
        %2254 = vrot.lane.b32.xlu0 %v1628, 92
        %v2255 = vpop.permute.xlu0 %2254
        %2256 = vrot.lane.b32.xlu0 %v1629, 92
        %v2257 = vpop.permute.xlu0 %2256
        %v2258 = vsel %vm1205, %v2253, %v2255
        %v2259 = vsel %vm1205, %v2255, %v2257
        %v2261 = vsel %vm1638, %v2251, 0
        %v2264 = vsel %vm1642, %v2258, 0
        %v2267 = vsel %vm1642, %v2259, 0
        %v2270 = vsel %vm1642, %v2257, 0
        %2272 = vmatprep.subr.bf16.mxu0 %v2267
        %2273 = vmatpush1.bf16.msra.mxu0 %v2264
        %2274 = vmatprep.subr.bf16.mxu0 0
        %2275 = vmatpush1.bf16.msra.mxu0 0
        %2276 = vmatprep.subr.bf16.mxu0 0
        %2277 = vmatpush1.bf16.msra.mxu0 0
        %2278 = vmatprep.subr.bf16.mxu0 0
        %2279 = vmatpush1.bf16.msra.mxu0 0
        %2280 = vmatprep.subr.bf16.mxu0 0
        %2281 = vmatpush1.bf16.msra.mxu0 0
        %2282 = vmatprep.subr.bf16.mxu0 0
        %2283 = vmatpush1.bf16.msra.mxu0 0
        %2284 = vmatprep.subr.bf16.mxu0 0
        %2285 = vmatpush1.bf16.msra.mxu0 0
        %2286 = vmatprep.subr.bf16.mxu0 0
        %2287 = vmatpush1.bf16.msra.mxu0 0
        %2288 = vmatprep.subr.bf16.mxu0 0
        %2289 = vmatpush1.bf16.msra.mxu0 0
        %2290 = vmatprep.subr.bf16.mxu0 0
        %2291 = vmatpush1.bf16.msra.mxu0 0
        %2292 = vmatprep.subr.bf16.mxu0 0
        %2293 = vmatpush1.bf16.msra.mxu0 0
        %2294 = vmatprep.subr.bf16.mxu0 0
        %2295 = vmatpush1.bf16.msra.mxu0 0
        %2296 = vmatprep.subr.bf16.mxu0 0
        %2297 = vmatpush1.bf16.msra.mxu0 0
        %2298 = vmatprep.subr.bf16.mxu0 0
        %2299 = vmatpush1.bf16.msra.mxu0 0
        %2300 = vmatprep.subr.bf16.mxu0 0
        %2301 = vmatpush1.bf16.msra.mxu0 0
        %2302 = vmatprep.subr.bf16.mxu0 0
        %2303 = vmatpush1.bf16.msra.mxu0 0
        %2304 = vmatprep.mubr.bf16.mxu0 0
        %2305 = vmatmul.mubr.bf16.gmra.mrb[0].mxu0 %v2261
        %v2306 = vpop.f32.mrb[0].mxu0
        %v2307 = vadd.f32 0.0, %v2306
        %v2308 = vpop.f32.mrb[0].mxu0
        %v2309 = vadd.f32 0.0, %v2308
        %v2310 = vpop.f32.mrb[0].mxu0
        %v2311 = vpop.f32.mrb[0].mxu0
        %2312 = vdwg.mxu0
        %2313 = vmatprep.subr.bf16.mxu0 0
        %2314 = vmatpush1.bf16.msra.mxu0 %v2270
        %2315 = vmatprep.subr.bf16.mxu0 0
        %2316 = vmatpush1.bf16.msra.mxu0 0
        %2317 = vmatprep.subr.bf16.mxu0 0
        %2318 = vmatpush1.bf16.msra.mxu0 0
        %2319 = vmatprep.subr.bf16.mxu0 0
        %2320 = vmatpush1.bf16.msra.mxu0 0
        %2321 = vmatprep.subr.bf16.mxu0 0
        %2322 = vmatpush1.bf16.msra.mxu0 0
        %2323 = vmatprep.subr.bf16.mxu0 0
        %2324 = vmatpush1.bf16.msra.mxu0 0
        %2325 = vmatprep.subr.bf16.mxu0 0
        %2326 = vmatpush1.bf16.msra.mxu0 0
        %2327 = vmatprep.subr.bf16.mxu0 0
        %2328 = vmatpush1.bf16.msra.mxu0 0
        %2329 = vmatprep.subr.bf16.mxu0 0
        %2330 = vmatpush1.bf16.msra.mxu0 0
        %2331 = vmatprep.subr.bf16.mxu0 0
        %2332 = vmatpush1.bf16.msra.mxu0 0
        %2333 = vmatprep.subr.bf16.mxu0 0
        %2334 = vmatpush1.bf16.msra.mxu0 0
        %2335 = vmatprep.subr.bf16.mxu0 0
        %2336 = vmatpush1.bf16.msra.mxu0 0
        %2337 = vmatprep.subr.bf16.mxu0 0
        %2338 = vmatpush1.bf16.msra.mxu0 0
        %2339 = vmatprep.subr.bf16.mxu0 0
        %2340 = vmatpush1.bf16.msra.mxu0 0
        %2341 = vmatprep.subr.bf16.mxu0 0
        %2342 = vmatpush1.bf16.msra.mxu0 0
        %2343 = vmatprep.subr.bf16.mxu0 0
        %2344 = vmatpush1.bf16.msra.mxu0 0
        %2345 = vmatprep.mubr.bf16.mxu0 0
        %2346 = vmatmul.mubr.bf16.gmra.mrb[0].mxu0 %v2261
        %v2347 = vpop.f32.mrb[0].mxu0
        %v2348 = vadd.f32 0.0, %v2347
        %v2349 = vpop.f32.mrb[0].mxu0
        %v2350 = vpop.f32.mrb[0].mxu0
        %v2351 = vpop.f32.mrb[0].mxu0
        %2352 = vdwg.mxu0
        %v2353 = vadd.f32 %v2247, %v2307
        %v2354 = vadd.f32 %v2248, %v2309
        %v2355 = vadd.f32 %v2249, %v2348
        %s2356 = scalar_lea.vmem %s4, 28
        %v2357 = vld [vmem:[%s2356] sm:$0xf]
        %2358 = vrot.lane.b32.xlu0 %v1627, 91
        %v2359 = vpop.permute.xlu0 %2358
        %2360 = vrot.lane.b32.xlu0 %v1628, 91
        %v2361 = vpop.permute.xlu0 %2360
        %2362 = vrot.lane.b32.xlu0 %v1629, 91
        %v2363 = vpop.permute.xlu0 %2362
        %v2364 = vsel %vm1330, %v2359, %v2361
        %v2365 = vsel %vm1330, %v2361, %v2363
        %v2367 = vsel %vm1638, %v2357, 0
        %v2370 = vsel %vm1642, %v2364, 0
        %v2373 = vsel %vm1642, %v2365, 0
        %v2376 = vsel %vm1642, %v2363, 0
        %2378 = vmatprep.subr.bf16.mxu0 %v2373
        %2379 = vmatpush1.bf16.msra.mxu0 %v2370
        %2380 = vmatprep.subr.bf16.mxu0 0
        %2381 = vmatpush1.bf16.msra.mxu0 0
        %2382 = vmatprep.subr.bf16.mxu0 0
        %2383 = vmatpush1.bf16.msra.mxu0 0
        %2384 = vmatprep.subr.bf16.mxu0 0
        %2385 = vmatpush1.bf16.msra.mxu0 0
        %2386 = vmatprep.subr.bf16.mxu0 0
        %2387 = vmatpush1.bf16.msra.mxu0 0
        %2388 = vmatprep.subr.bf16.mxu0 0
        %2389 = vmatpush1.bf16.msra.mxu0 0
        %2390 = vmatprep.subr.bf16.mxu0 0
        %2391 = vmatpush1.bf16.msra.mxu0 0
        %2392 = vmatprep.subr.bf16.mxu0 0
        %2393 = vmatpush1.bf16.msra.mxu0 0
        %2394 = vmatprep.subr.bf16.mxu0 0
        %2395 = vmatpush1.bf16.msra.mxu0 0
        %2396 = vmatprep.subr.bf16.mxu0 0
        %2397 = vmatpush1.bf16.msra.mxu0 0
        %2398 = vmatprep.subr.bf16.mxu0 0
        %2399 = vmatpush1.bf16.msra.mxu0 0
        %2400 = vmatprep.subr.bf16.mxu0 0
        %2401 = vmatpush1.bf16.msra.mxu0 0
        %2402 = vmatprep.subr.bf16.mxu0 0
        %2403 = vmatpush1.bf16.msra.mxu0 0
        %2404 = vmatprep.subr.bf16.mxu0 0
        %2405 = vmatpush1.bf16.msra.mxu0 0
        %2406 = vmatprep.subr.bf16.mxu0 0
        %2407 = vmatpush1.bf16.msra.mxu0 0
        %2408 = vmatprep.subr.bf16.mxu0 0
        %2409 = vmatpush1.bf16.msra.mxu0 0
        %2410 = vmatprep.mubr.bf16.mxu0 0
        %2411 = vmatmul.mubr.bf16.gmra.mrb[0].mxu0 %v2367
        %v2412 = vpop.f32.mrb[0].mxu0
        %v2413 = vadd.f32 0.0, %v2412
        %v2414 = vpop.f32.mrb[0].mxu0
        %v2415 = vadd.f32 0.0, %v2414
        %v2416 = vpop.f32.mrb[0].mxu0
        %v2417 = vpop.f32.mrb[0].mxu0
        %2418 = vdwg.mxu0
        %2419 = vmatprep.subr.bf16.mxu0 0
        %2420 = vmatpush1.bf16.msra.mxu0 %v2376
        %2421 = vmatprep.subr.bf16.mxu0 0
        %2422 = vmatpush1.bf16.msra.mxu0 0
        %2423 = vmatprep.subr.bf16.mxu0 0
        %2424 = vmatpush1.bf16.msra.mxu0 0
        %2425 = vmatprep.subr.bf16.mxu0 0
        %2426 = vmatpush1.bf16.msra.mxu0 0
        %2427 = vmatprep.subr.bf16.mxu0 0
        %2428 = vmatpush1.bf16.msra.mxu0 0
        %2429 = vmatprep.subr.bf16.mxu0 0
        %2430 = vmatpush1.bf16.msra.mxu0 0
        %2431 = vmatprep.subr.bf16.mxu0 0
        %2432 = vmatpush1.bf16.msra.mxu0 0
        %2433 = vmatprep.subr.bf16.mxu0 0
        %2434 = vmatpush1.bf16.msra.mxu0 0
        %2435 = vmatprep.subr.bf16.mxu0 0
        %2436 = vmatpush1.bf16.msra.mxu0 0
        %2437 = vmatprep.subr.bf16.mxu0 0
        %2438 = vmatpush1.bf16.msra.mxu0 0
        %2439 = vmatprep.subr.bf16.mxu0 0
        %2440 = vmatpush1.bf16.msra.mxu0 0
        %2441 = vmatprep.subr.bf16.mxu0 0
        %2442 = vmatpush1.bf16.msra.mxu0 0
        %2443 = vmatprep.subr.bf16.mxu0 0
        %2444 = vmatpush1.bf16.msra.mxu0 0
        %2445 = vmatprep.subr.bf16.mxu0 0
        %2446 = vmatpush1.bf16.msra.mxu0 0
        %2447 = vmatprep.subr.bf16.mxu0 0
        %2448 = vmatpush1.bf16.msra.mxu0 0
        %2449 = vmatprep.subr.bf16.mxu0 0
        %2450 = vmatpush1.bf16.msra.mxu0 0
        %2451 = vmatprep.mubr.bf16.mxu0 0
        %2452 = vmatmul.mubr.bf16.gmra.mrb[0].mxu0 %v2367
        %v2453 = vpop.f32.mrb[0].mxu0
        %v2454 = vadd.f32 0.0, %v2453
        %v2455 = vpop.f32.mrb[0].mxu0
        %v2456 = vpop.f32.mrb[0].mxu0
        %v2457 = vpop.f32.mrb[0].mxu0
        %2458 = vdwg.mxu0
        %v2459 = vadd.f32 %v2353, %v2413
        %v2460 = vadd.f32 %v2354, %v2415
        %v2461 = vadd.f32 %v2355, %v2454
        %s2462 = scalar_lea.vmem %s4, 32
        %v2463 = vld [vmem:[%s2462] sm:$0xf]
        %2464 = vrot.lane.b32.xlu0 %v1627, 90
        %v2465 = vpop.permute.xlu0 %2464
        %2466 = vrot.lane.b32.xlu0 %v1628, 90
        %v2467 = vpop.permute.xlu0 %2466
        %2468 = vrot.lane.b32.xlu0 %v1629, 90
        %v2469 = vpop.permute.xlu0 %2468
        %v2470 = vsel %vm1455, %v2465, %v2467
        %v2471 = vsel %vm1455, %v2467, %v2469
        %v2473 = vsel %vm1638, %v2463, 0
        %v2476 = vsel %vm1642, %v2470, 0
        %v2479 = vsel %vm1642, %v2471, 0
        %v2482 = vsel %vm1642, %v2469, 0
        %2484 = vmatprep.subr.bf16.mxu0 %v2479
        %2485 = vmatpush1.bf16.msra.mxu0 %v2476
        %2486 = vmatprep.subr.bf16.mxu0 0
        %2487 = vmatpush1.bf16.msra.mxu0 0
        %2488 = vmatprep.subr.bf16.mxu0 0
        %2489 = vmatpush1.bf16.msra.mxu0 0
        %2490 = vmatprep.subr.bf16.mxu0 0
        %2491 = vmatpush1.bf16.msra.mxu0 0
        %2492 = vmatprep.subr.bf16.mxu0 0
        %2493 = vmatpush1.bf16.msra.mxu0 0
        %2494 = vmatprep.subr.bf16.mxu0 0
        %2495 = vmatpush1.bf16.msra.mxu0 0
        %2496 = vmatprep.subr.bf16.mxu0 0
        %2497 = vmatpush1.bf16.msra.mxu0 0
        %2498 = vmatprep.subr.bf16.mxu0 0
        %2499 = vmatpush1.bf16.msra.mxu0 0
        %2500 = vmatprep.subr.bf16.mxu0 0
        %2501 = vmatpush1.bf16.msra.mxu0 0
        %2502 = vmatprep.subr.bf16.mxu0 0
        %2503 = vmatpush1.bf16.msra.mxu0 0
        %2504 = vmatprep.subr.bf16.mxu0 0
        %2505 = vmatpush1.bf16.msra.mxu0 0
        %2506 = vmatprep.subr.bf16.mxu0 0
        %2507 = vmatpush1.bf16.msra.mxu0 0
        %2508 = vmatprep.subr.bf16.mxu0 0
        %2509 = vmatpush1.bf16.msra.mxu0 0
        %2510 = vmatprep.subr.bf16.mxu0 0
        %2511 = vmatpush1.bf16.msra.mxu0 0
        %2512 = vmatprep.subr.bf16.mxu0 0
        %2513 = vmatpush1.bf16.msra.mxu0 0
        %2514 = vmatprep.subr.bf16.mxu0 0
        %2515 = vmatpush1.bf16.msra.mxu0 0
        %2516 = vmatprep.mubr.bf16.mxu0 0
        %2517 = vmatmul.mubr.bf16.gmra.mrb[0].mxu0 %v2473
        %v2518 = vpop.f32.mrb[0].mxu0
        %v2519 = vadd.f32 0.0, %v2518
        %v2520 = vpop.f32.mrb[0].mxu0
        %v2521 = vadd.f32 0.0, %v2520
        %v2522 = vpop.f32.mrb[0].mxu0
        %v2523 = vpop.f32.mrb[0].mxu0
        %2524 = vdwg.mxu0
        %2525 = vmatprep.subr.bf16.mxu0 0
        %2526 = vmatpush1.bf16.msra.mxu0 %v2482
        %2527 = vmatprep.subr.bf16.mxu0 0
        %2528 = vmatpush1.bf16.msra.mxu0 0
        %2529 = vmatprep.subr.bf16.mxu0 0
        %2530 = vmatpush1.bf16.msra.mxu0 0
        %2531 = vmatprep.subr.bf16.mxu0 0
        %2532 = vmatpush1.bf16.msra.mxu0 0
        %2533 = vmatprep.subr.bf16.mxu0 0
        %2534 = vmatpush1.bf16.msra.mxu0 0
        %2535 = vmatprep.subr.bf16.mxu0 0
        %2536 = vmatpush1.bf16.msra.mxu0 0
        %2537 = vmatprep.subr.bf16.mxu0 0
        %2538 = vmatpush1.bf16.msra.mxu0 0
        %2539 = vmatprep.subr.bf16.mxu0 0
        %2540 = vmatpush1.bf16.msra.mxu0 0
        %2541 = vmatprep.subr.bf16.mxu0 0
        %2542 = vmatpush1.bf16.msra.mxu0 0
        %2543 = vmatprep.subr.bf16.mxu0 0
        %2544 = vmatpush1.bf16.msra.mxu0 0
        %2545 = vmatprep.subr.bf16.mxu0 0
        %2546 = vmatpush1.bf16.msra.mxu0 0
        %2547 = vmatprep.subr.bf16.mxu0 0
        %2548 = vmatpush1.bf16.msra.mxu0 0
        %2549 = vmatprep.subr.bf16.mxu0 0
        %2550 = vmatpush1.bf16.msra.mxu0 0
        %2551 = vmatprep.subr.bf16.mxu0 0
        %2552 = vmatpush1.bf16.msra.mxu0 0
        %2553 = vmatprep.subr.bf16.mxu0 0
        %2554 = vmatpush1.bf16.msra.mxu0 0
        %2555 = vmatprep.subr.bf16.mxu0 0
        %2556 = vmatpush1.bf16.msra.mxu0 0
        %2557 = vmatprep.mubr.bf16.mxu0 0
        %2558 = vmatmul.mubr.bf16.gmra.mrb[0].mxu0 %v2473
        %v2559 = vpop.f32.mrb[0].mxu0
        %v2560 = vadd.f32 0.0, %v2559
        %v2561 = vpop.f32.mrb[0].mxu0
        %v2562 = vpop.f32.mrb[0].mxu0
        %v2563 = vpop.f32.mrb[0].mxu0
        %2564 = vdwg.mxu0
        %v2565 = vadd.f32 %v2459, %v2519
        %v2566 = vadd.f32 %v2460, %v2521
        %v2567 = vadd.f32 %v2461, %v2560
        %v2568 = vld [vmem:[%s5] sm:$0xff]
        %2570 = vset.pattern.permute.xlu0 0
        %2571 = vperm.xlu0 %2570, %v2568
        %v2572 = vpop.permute.xlu0 %2571
        %v2574 = vadd.f32 %v2565, %v2572
        %v2575 = vadd.f32 %v2566, %v2572
        %v2576 = vadd.f32 %v2567, %v2572
        %v2577 = vld [vmem:[#allocation2] sm:$0x3f]
        %v2578 = vld [vmem:[%s6] sm:$0xf]
        %v2580 = vcombine.high %v2577, %v2577
        %v2582 = vunpack.c.l.s4 1983009808
        %v2583 = vunpack.c.0.s8 %v2582
        %v2584 = vlaneseq
        %v2585 = vshrl.u32 %v2584, 7
        %v2586 = vsub.s32 %v2583, %v2585
        %v2587 = vrot.slane %v2577, %v2586
        %v2589 = vunpack.c.l.s4 1983009808
        %v2590 = vunpack.c.0.s8 %v2589
        %v2591 = vlaneseq
        %v2592 = vshrl.u32 %v2591, 7
        %v2593 = vsub.s32 %v2590, %v2592
        %v2594 = vrot.slane %v2580, %v2593
        %v2595 = vcombine.high %v2587, %v2587
        %2596 = vrot.lane.b32.xlu0 %v2587, 109
        %v2597 = vpop.permute.xlu0 %2596
        %2598 = vrot.lane.b32.xlu0 %v2595, 109
        %v2599 = vpop.permute.xlu0 %2598
        %2600 = vrot.lane.b32.xlu0 %v2594, 109
        %v2601 = vpop.permute.xlu0 %2600
        %v2602 = vsel %vm955, %v2597, %v2599
        %v2603 = vsel %vm955, %v2599, %v2601
        %v2605 = vsel %vm491, %v2578, 0
        %v2608 = vsel %vm495, %v2602, 0
        %v2611 = vsel %vm495, %v2603, 0
        %v2614 = vsel %vm495, %v2601, 0
        %2616 = vmatprep.subr.bf16.mxu0 %v2611
        %2617 = vmatpush1.bf16.msra.mxu0 %v2608
        %2618 = vmatprep.subr.bf16.mxu0 0
        %2619 = vmatpush1.bf16.msra.mxu0 0
        %2620 = vmatprep.subr.bf16.mxu0 0
        %2621 = vmatpush1.bf16.msra.mxu0 0
        %2622 = vmatprep.subr.bf16.mxu0 0
        %2623 = vmatpush1.bf16.msra.mxu0 0
        %2624 = vmatprep.subr.bf16.mxu0 0
        %2625 = vmatpush1.bf16.msra.mxu0 0
        %2626 = vmatprep.subr.bf16.mxu0 0
        %2627 = vmatpush1.bf16.msra.mxu0 0
        %2628 = vmatprep.subr.bf16.mxu0 0
        %2629 = vmatpush1.bf16.msra.mxu0 0
        %2630 = vmatprep.subr.bf16.mxu0 0
        %2631 = vmatpush1.bf16.msra.mxu0 0
        %2632 = vmatprep.subr.bf16.mxu0 0
        %2633 = vmatpush1.bf16.msra.mxu0 0
        %2634 = vmatprep.subr.bf16.mxu0 0
        %2635 = vmatpush1.bf16.msra.mxu0 0
        %2636 = vmatprep.subr.bf16.mxu0 0
        %2637 = vmatpush1.bf16.msra.mxu0 0
        %2638 = vmatprep.subr.bf16.mxu0 0
        %2639 = vmatpush1.bf16.msra.mxu0 0
        %2640 = vmatprep.subr.bf16.mxu0 0
        %2641 = vmatpush1.bf16.msra.mxu0 0
        %2642 = vmatprep.subr.bf16.mxu0 0
        %2643 = vmatpush1.bf16.msra.mxu0 0
        %2644 = vmatprep.subr.bf16.mxu0 0
        %2645 = vmatpush1.bf16.msra.mxu0 0
        %2646 = vmatprep.subr.bf16.mxu0 0
        %2647 = vmatpush1.bf16.msra.mxu0 0
        %2648 = vmatprep.mubr.bf16.mxu0 0
        %2649 = vmatmul.mubr.bf16.gmra.mrb[0].mxu0 %v2605
        %v2650 = vpop.f32.mrb[0].mxu0
        %v2651 = vadd.f32 0.0, %v2650
        %v2652 = vpop.f32.mrb[0].mxu0
        %v2653 = vadd.f32 0.0, %v2652
        %v2654 = vpop.f32.mrb[0].mxu0
        %v2655 = vpop.f32.mrb[0].mxu0
        %2656 = vdwg.mxu0
        %2657 = vmatprep.subr.bf16.mxu0 0
        %2658 = vmatpush1.bf16.msra.mxu0 %v2614
        %2659 = vmatprep.subr.bf16.mxu0 0
        %2660 = vmatpush1.bf16.msra.mxu0 0
        %2661 = vmatprep.subr.bf16.mxu0 0
        %2662 = vmatpush1.bf16.msra.mxu0 0
        %2663 = vmatprep.subr.bf16.mxu0 0
        %2664 = vmatpush1.bf16.msra.mxu0 0
        %2665 = vmatprep.subr.bf16.mxu0 0
        %2666 = vmatpush1.bf16.msra.mxu0 0
        %2667 = vmatprep.subr.bf16.mxu0 0
        %2668 = vmatpush1.bf16.msra.mxu0 0
        %2669 = vmatprep.subr.bf16.mxu0 0
        %2670 = vmatpush1.bf16.msra.mxu0 0
        %2671 = vmatprep.subr.bf16.mxu0 0
        %2672 = vmatpush1.bf16.msra.mxu0 0
        %2673 = vmatprep.subr.bf16.mxu0 0
        %2674 = vmatpush1.bf16.msra.mxu0 0
        %2675 = vmatprep.subr.bf16.mxu0 0
        %2676 = vmatpush1.bf16.msra.mxu0 0
        %2677 = vmatprep.subr.bf16.mxu0 0
        %2678 = vmatpush1.bf16.msra.mxu0 0
        %2679 = vmatprep.subr.bf16.mxu0 0
        %2680 = vmatpush1.bf16.msra.mxu0 0
        %2681 = vmatprep.subr.bf16.mxu0 0
        %2682 = vmatpush1.bf16.msra.mxu0 0
        %2683 = vmatprep.subr.bf16.mxu0 0
        %2684 = vmatpush1.bf16.msra.mxu0 0
        %2685 = vmatprep.subr.bf16.mxu0 0
        %2686 = vmatpush1.bf16.msra.mxu0 0
        %2687 = vmatprep.subr.bf16.mxu0 0
        %2688 = vmatpush1.bf16.msra.mxu0 0
        %2689 = vmatprep.mubr.bf16.mxu0 0
        %2690 = vmatmul.mubr.bf16.gmra.mrb[0].mxu0 %v2605
        %v2691 = vpop.f32.mrb[0].mxu0
        %v2692 = vadd.f32 0.0, %v2691
        %v2693 = vpop.f32.mrb[0].mxu0
        %v2694 = vpop.f32.mrb[0].mxu0
        %v2695 = vpop.f32.mrb[0].mxu0
        %2696 = vdwg.mxu0
        %v2697 = vadd.f32 %v2574, %v2651
        %v2698 = vadd.f32 %v2575, %v2653
        %v2699 = vadd.f32 %v2576, %v2692
        %v2700 = vld [vmem:[%s7] sm:$0xff]
        %2702 = vset.pattern.permute.xlu0 0
        %2703 = vperm.xlu0 %2702, %v2700
        %v2704 = vpop.permute.xlu0 %2703
        %v2706 = vadd.f32 %v2697, %v2704
        %v2707 = vadd.f32 %v2698, %v2704
        %v2708 = vadd.f32 %v2699, %v2704
        %v2709 = vmax.f32 %v2706, 0.0
        %v2710 = vmax.f32 %v2707, 0.0
        %v2711 = vmax.f32 %v2708, 0.0
        %v2712 = vpack.c.bf16 %v2709, %v2709
        %v2713 = vpack.c.bf16 %v2710, %v2710
        %v2714 = vpack.c.bf16 %v2711, %v2711
        %vm2715 = vcmask 125952
        %2716 = vst.msk [vmem:[%s298] sm:$0xf] %vm2715, %v2712
        %v2718 = vunpack.c.l.b16 %v2712
        %v2719 = vpack.c.b16 %v2718, %v2718
        %2720 = vrot.lane.b32.xlu0 %v2719, 126
        %v2721 = vpop.permute.xlu0 %2720
        %vm2723 = vcmask 257152
        %2724 = vst.msk [vmem:[%s298] sm:$0xf] %vm2723, %v2721
        %2725 = vrot.lane.b32.xlu0 %v2719, 124
        %v2726 = vpop.permute.xlu0 %2725
        %vm2728 = vcmask 388352
        %2729 = vst.msk [vmem:[%s298] sm:$0xf] %vm2728, %v2726
        %2730 = vrot.lane.b32.xlu0 %v2719, 122
        %v2731 = vpop.permute.xlu0 %2730
        %vm2733 = vcmask 519552
        %2734 = vst.msk [vmem:[%s298] sm:$0xf] %vm2733, %v2731
        %2735 = vrot.lane.b32.xlu0 %v2719, 120
        %v2736 = vpop.permute.xlu0 %2735
        %vm2738 = vcmask 650752
        %2739 = vst.msk [vmem:[%s298] sm:$0xf] %vm2738, %v2736
        %2740 = vrot.lane.b32.xlu0 %v2719, 118
        %v2741 = vpop.permute.xlu0 %2740
        %vm2743 = vcmask 781952
        %2744 = vst.msk [vmem:[%s298] sm:$0xf] %vm2743, %v2741
        %2745 = vrot.lane.b32.xlu0 %v2719, 116
        %v2746 = vpop.permute.xlu0 %2745
        %vm2748 = vcmask 913152
        %2749 = vst.msk [vmem:[%s298] sm:$0xf] %vm2748, %v2746
        %v2751 = vunpack.c.l.b16 %v2713
        %v2752 = vpack.c.b16 %v2751, %v2718
        %2753 = vrot.lane.b32.xlu0 %v2752, 114
        %v2754 = vpop.permute.xlu0 %2753
        %v2755 = vrot.slane %v2754, 4
        %vm2756 = vcmask 932864
        %v2757 = vsel %vm2756, %v2754, %v2755
        %vm2759 = vcmask 1044352
        %2760 = vst.msk [vmem:[%s298] sm:$0xf] %vm2759, %v2757
        %v2761 = vpack.c.b16 %v2751, %v2751
        %2762 = vrot.lane.b32.xlu0 %v2761, 112
        %v2763 = vpop.permute.xlu0 %2762
        %2765 = vst.msk [vmem:[%s298 + $0x4] sm:$0xf] %vm2715, %v2763
        %2766 = vrot.lane.b32.xlu0 %v2761, 110
        %v2767 = vpop.permute.xlu0 %2766
        %2769 = vst.msk [vmem:[%s298 + $0x4] sm:$0xf] %vm2723, %v2767
        %2770 = vrot.lane.b32.xlu0 %v2761, 108
        %v2771 = vpop.permute.xlu0 %2770
        %2773 = vst.msk [vmem:[%s298 + $0x4] sm:$0xf] %vm2728, %v2771
        %2774 = vrot.lane.b32.xlu0 %v2761, 106
        %v2775 = vpop.permute.xlu0 %2774
        %2777 = vst.msk [vmem:[%s298 + $0x4] sm:$0xf] %vm2733, %v2775
        %2778 = vrot.lane.b32.xlu0 %v2761, 104
        %v2779 = vpop.permute.xlu0 %2778
        %2781 = vst.msk [vmem:[%s298 + $0x4] sm:$0xf] %vm2738, %v2779
        %2782 = vrot.lane.b32.xlu0 %v2761, 102
        %v2783 = vpop.permute.xlu0 %2782
        %2785 = vst.msk [vmem:[%s298 + $0x4] sm:$0xf] %vm2743, %v2783
        %v2787 = vunpack.c.l.b16 %v2714
        %v2788 = vpack.c.b16 %v2787, %v2751
        %2789 = vrot.lane.b32.xlu0 %v2788, 100
        %v2790 = vpop.permute.xlu0 %2789
        %v2791 = vrot.slane %v2790, 4
        %vm2792 = vcmask 818176
        %v2793 = vsel %vm2792, %v2790, %v2791
        %2795 = vst.msk [vmem:[%s298 + $0x4] sm:$0xf] %vm2748, %v2793
        %v2796 = vpack.c.b16 %v2787, %v2787
        %2797 = vrot.lane.b32.xlu0 %v2796, 98
        %v2798 = vpop.permute.xlu0 %2797
        %2800 = vst.msk [vmem:[%s298 + $0x4] sm:$0xf] %vm2759, %v2798
        %s2801 = sand.u32 %s203, 1
        %s2802 = scalar_lea.sflag [#allocation5], %s2801
        %s2803 = sand.u32 %s203, 1
        %s2804 = smul.addr %s2803, 8
        %s2805 = scalar_lea.vmem [#allocation4], %s2804
        // Predicated region
        $region53: #{tpu_custom_call.1} parent=51 // pred_check
          %p2806 = pneg %p213
        $region54: #{tpu_custom_call.1} parent=51 // pred_check_branch
          %2808 = sbr.rel (%p2806) target = $region56
        $region55: #{tpu_custom_call.1} parent=51 // pred_region
          %s2810 = ssub.s32 128, 128
          %2811 = vsyncadd %s2802, %s2810
          %s2812 = smul.addr %s22, 2
          %s2813 = smul.addr %s2812, 64
          %s2814 = scalar_lea.hbm %s8, %s2813
          %s2816 = sshll.u32 %s2805, 4
          %s2817 = int_to_ptr.vmem [resolvable:$true] %s2816
          %2819 = dma.vmem_to_hbm [thread:$0]  %s2817, 128, %s2814, %s2802
        $region56: #{tpu_custom_call.1} parent=51 // pred_fallthru
          _
      $region52: #{tpu_custom_call.1} parent=5 // pred_fallthru
        _
      %p2820 = scmp.le.s32.totalorder 2, %s17
      // Predicated region
      $region57: #{tpu_custom_call.1} parent=5 // pred_check
        %p2821 = pneg %p2820
      $region58: #{tpu_custom_call.1} parent=5 // pred_check_branch
        %2823 = sbr.rel (%p2821) target = $region60
      $region59: #{tpu_custom_call.1} parent=5 // pred_region
        %s2824 = ssub.s32 %s17, 2
        // Predicated region
        $region61: #{tpu_custom_call.1} parent=59 // pred_check
          %p2825 = pneg %p219
        $region62: #{tpu_custom_call.1} parent=59 // pred_check_branch
          %2827 = sbr.rel (%p2825) target = $region64
        $region63: #{tpu_custom_call.1} parent=59 // pred_region
          %s2828 = sand.u32 %s204, 1
          %s2829 = scalar_lea.sflag [#allocation5], %s2828
          %s2830 = sand.u32 %s204, 1
          %s2831 = smul.addr %s2830, 8
          %s2832 = scalar_lea.vmem [#allocation4], %s2831
          %2833 = dma.done %s2829, 128
        $region64: #{tpu_custom_call.1} parent=59 // pred_fallthru
          _
      $region60: #{tpu_custom_call.1} parent=5 // pred_fallthru
        _
    $region6: #{tpu_custom_call.1} parent=1 // loop_footer
      %s21 = sadd.s32 1, %s17
    $region7: #{tpu_custom_call.1} parent=1 // loop_footer_branch
      %16 = sbr.rel target = $region3
    $region8: #{tpu_custom_call.1} parent=1 // loop_exit
      _
    %2834 = vsyncpa [#allocation5], 1
    %s2835 = scalar_lea.sflag [#allocation5], 1
    %2836 = vsyncpa %s2835, 1

</llo_original>
